<compile_context>
chip_gen: v6e
topology: v6e:2x2x1
jax: 0.10.0
libtpu: 0.0.40
codegen_flags: <defaults>
</compile_context>

<pallas_src>
import functools

import jax
import jax.numpy as jnp
from jax.experimental import pallas as pl
from jax.experimental.pallas import tpu as pltpu


HIDDEN = 256
BN_EPS = 1e-5
LANES = 128


def _round_up(n, m):
    return ((n + m - 1) // m) * m


def _bucket_rows(b, mult):
    """Fixed-bucket batch padding: next power of two, at least `mult` rows.

    Keeps the padded kernel shape stable across nearby batch sizes; the true
    batch size is handed to the kernel as an SMEM scalar, so a new batch size
    within the same bucket does not change the kernel at all.
    """
    b = max(int(b), mult)
    return _round_up(1 << (b - 1).bit_length(), mult)


def _dqn_kernel(b_ref, x_ref, w1_ref, b1_ref, w2_ref, b2_ref,
                gamma_ref, beta_ref, hw_ref, hb_ref, q_ref,
                *, n_actions_sq, matmul_dtype, precision):
    b_pad = x_ref.shape[0]
    head_lanes = hw_ref.shape[1]

    b_true = b_ref[0, 0]                          # dynamic true batch (SMEM)
    inv_b = 1.0 / b_true.astype(jnp.float32)

    # Narrow (b_pad, 1) f32 row mask over the TRUE batch rows; reused for the
    # BatchNorm statistics and for mean(A).
    row = jax.lax.broadcasted_iota(jnp.int32, (b_pad, 1), 0)
    row_mask = (row < b_true).astype(jnp.float32)

    dot = functools.partial(jnp.dot, preferred_element_type=jnp.float32,
                            precision=precision)

    # ----- lin + relu (x cast to the MXU dtype here, not in the wrapper) ----
    h = dot(x_ref[...].astype(matmul_dtype), w1_ref[...]) + b1_ref[...]
    h = jnp.maximum(h, 0.0)

    # ----- hid ---------------------------------------------------------------
    h = dot(h.astype(matmul_dtype), w2_ref[...]) + b2_ref[...]

    # ----- BatchNorm1d, training mode: batch mean / biased variance ---------
    # Two-pass (mean, then centered variance) over the true rows only.
    mean = jnp.sum(h * row_mask, axis=0, keepdims=True) * inv_b
    cen = (h - mean) * row_mask
    var = jnp.sum(cen * cen, axis=0, keepdims=True) * inv_b
    h = (h - mean) * jax.lax.rsqrt(var + BN_EPS) * gamma_ref[...] + beta_ref[...]

    # ----- relu --------------------------------------------------------------
    h = jnp.maximum(h, 0.0)

    # ----- fused dueling heads: one lane-dense matmul ------------------------
    # lane 0 = V, lanes 1..nA = A, remaining lanes = exact zeros.
    heads = dot(h.astype(matmul_dtype), hw_ref[...]) + hb_ref[...]

    # scalar mean(A) over the true batch rows and the nA advantage lanes.
    lane = jax.lax.broadcasted_iota(jnp.int32, (1, head_lanes), 1)
    lane_mask = ((lane >= 1) & (lane < 1 + n_actions_sq)).astype(jnp.float32)
    a_rowsum = jnp.sum(heads * lane_mask, axis=1, keepdims=True)   # (b_pad, 1)
    mean_a = jnp.sum(a_rowsum * row_mask) * inv_b * (1.0 / float(n_actions_sq))

    # q = V + A - mean(A), written lane-dense (no masked stores); the wrapper
    # slices [:B, 1:1+nA].  Lane 0 / padding lanes / padded rows hold garbage.
    q_ref[...] = heads[:, 0:1] + heads - mean_a


def prepare_params(params, matmul_dtype=jnp.bfloat16):
    """One-time weight packing / casting — call at agent construction, NOT per
    forward.  bf16 matmul operands are MXU-native on v5e, v6e and v7x (use it
    everywhere); all elementwise / BatchNorm math stays f32 in the kernel.
    Pass matmul_dtype=jnp.float32 for parity with the f32 PyTorch module."""
    nA = params["wa"].shape[1]
    head_lanes = _round_up(1 + nA, LANES)
    head_w = jnp.concatenate([params["wv"], params["wa"]], axis=1)   # (256, 1+nA)
    head_b = jnp.concatenate([params["bv"], params["ba"]], axis=1)   # (1, 1+nA)
    head_w = jnp.pad(head_w, ((0, 0), (0, head_lanes - (1 + nA))))
    head_b = jnp.pad(head_b, ((0, 0), (0, head_lanes - (1 + nA))))
    return {
        "w1": params["w1"].astype(matmul_dtype), "b1": params["b1"],
        "w2": params["w2"].astype(matmul_dtype), "b2": params["b2"],
        "gamma": params["gamma"], "beta": params["beta"],
        "head_w": head_w.astype(matmul_dtype), "head_b": head_b,
    }


def dqn_forward(x, packed, n_actions_sq):
    """DQNAgent.forward.  x: (B, state_shape) f32, B > 1 (BatchNorm branch).

    Traceable; wrap in jax.jit (static_argnames='n_actions_sq') or fold into
    the caller's jitted RL step so the pad, the kernel and the output slice
    fuse into a single dispatch.
    """
    B, state_shape = x.shape
    assert B > 1, "BatchNorm branch of the reference module requires batch > 1"
    matmul_dtype = packed["w1"].dtype
    head_lanes = packed["head_w"].shape[1]

    # Fixed-bucket row padding: multiples of 16 for bf16 sublane packing.
    pad_mult = 16 if matmul_dtype == jnp.bfloat16 else 8
    b_pad = _bucket_rows(B, pad_mult)
    if b_pad != B:
        x = jnp.pad(x, ((0, b_pad - B), (0, 0)))
    b_true = jnp.full((1, 1), B, jnp.int32)       # SMEM scalar -> kernel body
                                                  # independent of the exact B.

    args = (b_true, x, packed["w1"], packed["b1"], packed["w2"], packed["b2"],
            packed["gamma"], packed["beta"], packed["head_w"], packed["head_b"])

    smem = pl.BlockSpec(memory_space=pltpu.MemorySpace.SMEM)
    vmem = pl.BlockSpec(memory_space=pltpu.MemorySpace.VMEM)

    # --- VMEM budget, derived from the actual chip (v7x: 64 MiB per TC) ------
    param_bytes = sum(int(a.size) * a.dtype.itemsize for a in args[2:])
    x_bytes = int(x.size) * x.dtype.itemsize
    out_bytes = b_pad * head_lanes * 4
    act_bytes = b_pad * HIDDEN * 4 * 6            # a few live f32 intermediates
    try:
        vmem_cap = int(pltpu.get_tpu_info().vmem_capacity_bytes)
    except Exception:                              # pragma: no cover
        vmem_cap = 64 * 1024 * 1024
    vmem_limit = int(min(vmem_cap // 2,
                         max(16 * 1024 * 1024,
                             4 * (param_bytes + x_bytes + act_bytes + out_bytes))))

    flops = 2 * b_pad * (state_shape * HIDDEN + HIDDEN * HIDDEN
                         + HIDDEN * head_lanes)
    cost = pl.CostEstimate(flops=flops,
                           transcendentals=HIDDEN,              # rsqrt per column
                           bytes_accessed=param_bytes + x_bytes + out_bytes)

    precision = (jax.lax.Precision.HIGHEST
                 if matmul_dtype == jnp.float32 else None)
    kernel = functools.partial(_dqn_kernel, n_actions_sq=n_actions_sq,
                               matmul_dtype=matmul_dtype, precision=precision)

    out = pl.pallas_call(
        kernel,
        out_shape=jax.ShapeDtypeStruct((b_pad, head_lanes), jnp.float32),
        in_specs=[smem] + [vmem] * (len(args) - 1),
        out_specs=vmem,
        compiler_params=pltpu.CompilerParams(vmem_limit_bytes=vmem_limit),
        cost_estimate=cost,
    )(*args)

    # TODO(synk): at production batches (>= ~256 rows) switch to a batch-tiled
    # grid with two-pass cross-tile BN and dimension_semantics=("parallel",...)
    # so v7x's two TensorCores both contribute; gridless is right at small B.
    return out[:B, 1:1 + n_actions_sq]


def init_params(key, state_shape, n_actions):
    """Deterministic synthetic parameters (shapes match the PyTorch module)."""
    nA = n_actions ** 2
    ks = jax.random.split(key, 8)

    def lin(kw, kb, fan_in, fan_out):
        bound = 1.0 / jnp.sqrt(fan_in)
        w = jax.random.uniform(kw, (fan_in, fan_out), jnp.float32, -bound, bound)
        b = jax.random.uniform(kb, (1, fan_out), jnp.float32, -bound, bound)
        return w, b

    w1, b1 = lin(ks[0], ks[1], state_shape, HIDDEN)
    w2, b2 = lin(ks[2], ks[3], HIDDEN, HIDDEN)
    wv, bv = lin(ks[4], ks[5], HIDDEN, 1)
    wa, ba = lin(ks[6], ks[7], HIDDEN, nA)

    return {
        "w1": w1, "b1": b1,
        "w2": w2, "b2": b2,
        "gamma": jnp.ones((1, HIDDEN), jnp.float32),   # BatchNorm weight init
        "beta": jnp.zeros((1, HIDDEN), jnp.float32),   # BatchNorm bias init
        "wv": wv, "bv": bv,
        "wa": wa, "ba": ba,
    }


def dqn_reference(x, p, matmul_dtype=jnp.float32):
    """Pure-JAX reference (training-mode BN).  Applies the same matmul-operand
    casts / precision as the kernel so the two are directly comparable."""
    precision = (jax.lax.Precision.HIGHEST
                 if matmul_dtype == jnp.float32 else None)
    cast = lambda a: a.astype(matmul_dtype)
    dot = lambda a, b: jnp.dot(cast(a), cast(b),
                               preferred_element_type=jnp.float32,
                               precision=precision)

    h = jnp.maximum(dot(x, p["w1"]) + p["b1"], 0.0)
    h = dot(h, p["w2"]) + p["b2"]
    mean = jnp.mean(h, axis=0, keepdims=True)
    var = jnp.mean((h - mean) ** 2, axis=0, keepdims=True)
    h = (h - mean) / jnp.sqrt(var + BN_EPS) * p["gamma"] + p["beta"]
    h = jnp.maximum(h, 0.0)
    v = dot(h, p["wv"]) + p["bv"]
    a = dot(h, p["wa"]) + p["ba"]
    return v + a - jnp.mean(a)


# TODO(synk): BatchNorm running_mean/running_var updates (training side effect),
# the B==1 "skip BN" branch, and the host-side epsilon-greedy numpy sampling are
# not kernel work and are intentionally omitted; forward outputs are unaffected.


if __name__ == "__main__":
    key = jax.random.PRNGKey(0)
    k_param, k_state = jax.random.split(key)

    batch = 12         # > 1 so BN is active; non-bucket size exercises the
                       # row-padding / SMEM-b_true path.  Real RL callers
                       # should batch 128-256+ states per call.
    state_shape = 32
    n_actions = 4      # -> 16 q-values per state
    nA = n_actions ** 2

    params = init_params(k_param, state_shape, n_actions)
    x = jax.random.normal(k_state, (batch, state_shape), jnp.float32)

    fwd = jax.jit(dqn_forward, static_argnames=("n_actions_sq",))

    # Exact-f32 parity path (Precision.HIGHEST matmuls).
    packed32 = prepare_params(params, matmul_dtype=jnp.float32)
    q32 = jax.block_until_ready(fwd(x, packed32, n_actions_sq=nA))
    r32 = dqn_reference(x, params, matmul_dtype=jnp.float32)
    assert q32.shape == (batch, nA)
    assert jnp.allclose(q32, r32, atol=1e-4, rtol=1e-4), "f32 mismatch vs reference"

    # bf16-operand path (default; MXU-native on v5e/v6e/v7x).
    packed16 = prepare_params(params, matmul_dtype=jnp.bfloat16)
    q16 = jax.block_until_ready(fwd(x, packed16, n_actions_sq=nA))
    r16 = dqn_reference(x, params, matmul_dtype=jnp.bfloat16)
    assert q16.shape == (batch, nA)
    assert jnp.allclose(q16, r16, atol=2e-3, rtol=2e-3), "bf16 mismatch vs reference"

    print("KERNEL_OK")
</pallas_src>

<mosaic_0001>
module attributes {stable_mosaic.version = 11 : i64} {
  func.func @_dqn_kernel(%arg0: memref<1x1xi32, #tpu.memory_space<smem>>, %arg1: memref<16x32xf32, #tpu.memory_space<vmem>>, %arg2: memref<32x256xf32, #tpu.memory_space<vmem>>, %arg3: memref<1x256xf32, #tpu.memory_space<vmem>>, %arg4: memref<256x256xf32, #tpu.memory_space<vmem>>, %arg5: memref<1x256xf32, #tpu.memory_space<vmem>>, %arg6: memref<1x256xf32, #tpu.memory_space<vmem>>, %arg7: memref<1x256xf32, #tpu.memory_space<vmem>>, %arg8: memref<256x128xf32, #tpu.memory_space<vmem>>, %arg9: memref<1x128xf32, #tpu.memory_space<vmem>>, %arg10: memref<16x128xf32, #tpu.memory_space<vmem>>) attributes {dimension_semantics = [], scalar_prefetch = 0 : i64, scratch_operands = 0 : i64, tpu.core_type = #tpu.core_type<tc>} {
    %c0 = arith.constant 0 : index
    %c0_0 = arith.constant 0 : index
    %0 = memref.load %arg0[%c0, %c0_0] : memref<1x1xi32, #tpu.memory_space<smem>>
    %1 = arith.sitofp %0 : i32 to f32
    %cst = arith.constant 1.000000e+00 : f32
    %2 = arith.divf %cst, %1 : f32
    %3 = tpu.iota {dimensions = array<i32: 0>} : vector<16x1xi32>
    %4 = vector.broadcast %0 : i32 to vector<16x1xi32>
    %5 = arith.cmpi slt, %3, %4 : vector<16x1xi32>
    %6 = arith.extui %5 : vector<16x1xi1> to vector<16x1xi32>
    %7 = arith.sitofp %6 : vector<16x1xi32> to vector<16x1xf32>
    %c0_1 = arith.constant 0 : index
    %c0_2 = arith.constant 0 : index
    %8 = vector.load %arg1[%c0_1, %c0_2] : memref<16x32xf32, #tpu.memory_space<vmem>>, vector<16x32xf32>
    %c0_3 = arith.constant 0 : index
    %c0_4 = arith.constant 0 : index
    %9 = vector.load %arg2[%c0_3, %c0_4] : memref<32x256xf32, #tpu.memory_space<vmem>>, vector<32x256xf32>
    %cst_5 = arith.constant dense<0.000000e+00> : vector<16x256xf32>
    %10 = tpu.matmul %8, %9, %cst_5 {dimension_numbers = #tpu.dot_dimension_numbers<[1], [0], [0], [1], [0, 0, 1, 1], [], []>, precision = #tpu.contract_precision<fp32>} : vector<16x32xf32>, vector<32x256xf32>, vector<16x256xf32> -> vector<16x256xf32>
    %c0_6 = arith.constant 0 : index
    %c0_7 = arith.constant 0 : index
    %11 = vector.load %arg3[%c0_6, %c0_7] : memref<1x256xf32, #tpu.memory_space<vmem>>, vector<1x256xf32>
    %12 = vector.broadcast %11 : vector<1x256xf32> to vector<16x256xf32>
    %13 = arith.addf %10, %12 : vector<16x256xf32>
    %cst_8 = arith.constant 0.000000e+00 : f32
    %14 = vector.broadcast %cst_8 : f32 to vector<16x256xf32>
    %15 = arith.maximumf %13, %14 : vector<16x256xf32>
    %c0_9 = arith.constant 0 : index
    %c0_10 = arith.constant 0 : index
    %16 = vector.load %arg4[%c0_9, %c0_10] : memref<256x256xf32, #tpu.memory_space<vmem>>, vector<256x256xf32>
    %cst_11 = arith.constant dense<0.000000e+00> : vector<16x256xf32>
    %17 = tpu.matmul %15, %16, %cst_11 {dimension_numbers = #tpu.dot_dimension_numbers<[1], [0], [0], [1], [0, 0, 1, 1], [], []>, precision = #tpu.contract_precision<fp32>} : vector<16x256xf32>, vector<256x256xf32>, vector<16x256xf32> -> vector<16x256xf32>
    %c0_12 = arith.constant 0 : index
    %c0_13 = arith.constant 0 : index
    %18 = vector.load %arg5[%c0_12, %c0_13] : memref<1x256xf32, #tpu.memory_space<vmem>>, vector<1x256xf32>
    %19 = vector.broadcast %18 : vector<1x256xf32> to vector<16x256xf32>
    %20 = arith.addf %17, %19 : vector<16x256xf32>
    %21 = vector.broadcast %7 : vector<16x1xf32> to vector<16x256xf32>
    %22 = arith.mulf %20, %21 : vector<16x256xf32>
    %cst_14 = arith.constant dense<0.000000e+00> : vector<256xf32>
    %23 = vector.multi_reduction <add>, %22, %cst_14 [0] : vector<16x256xf32> to vector<256xf32>
    %24 = vector.shape_cast %23 : vector<256xf32> to vector<1x256xf32>
    %25 = vector.broadcast %2 : f32 to vector<1x256xf32>
    %26 = arith.mulf %24, %25 : vector<1x256xf32>
    %27 = vector.broadcast %26 : vector<1x256xf32> to vector<16x256xf32>
    %28 = arith.subf %20, %27 : vector<16x256xf32>
    %29 = vector.broadcast %7 : vector<16x1xf32> to vector<16x256xf32>
    %30 = arith.mulf %28, %29 : vector<16x256xf32>
    %31 = arith.mulf %30, %30 : vector<16x256xf32>
    %cst_15 = arith.constant dense<0.000000e+00> : vector<256xf32>
    %32 = vector.multi_reduction <add>, %31, %cst_15 [0] : vector<16x256xf32> to vector<256xf32>
    %33 = vector.shape_cast %32 : vector<256xf32> to vector<1x256xf32>
    %34 = vector.broadcast %2 : f32 to vector<1x256xf32>
    %35 = arith.mulf %33, %34 : vector<1x256xf32>
    %36 = vector.broadcast %26 : vector<1x256xf32> to vector<16x256xf32>
    %37 = arith.subf %20, %36 : vector<16x256xf32>
    %cst_16 = arith.constant 9.99999974E-6 : f32
    %38 = vector.broadcast %cst_16 : f32 to vector<1x256xf32>
    %39 = arith.addf %35, %38 : vector<1x256xf32>
    %40 = math.rsqrt %39 : vector<1x256xf32>
    %41 = vector.broadcast %40 : vector<1x256xf32> to vector<16x256xf32>
    %42 = arith.mulf %37, %41 : vector<16x256xf32>
    %c0_17 = arith.constant 0 : index
    %c0_18 = arith.constant 0 : index
    %43 = vector.load %arg6[%c0_17, %c0_18] : memref<1x256xf32, #tpu.memory_space<vmem>>, vector<1x256xf32>
    %44 = vector.broadcast %43 : vector<1x256xf32> to vector<16x256xf32>
    %45 = arith.mulf %42, %44 : vector<16x256xf32>
    %c0_19 = arith.constant 0 : index
    %c0_20 = arith.constant 0 : index
    %46 = vector.load %arg7[%c0_19, %c0_20] : memref<1x256xf32, #tpu.memory_space<vmem>>, vector<1x256xf32>
    %47 = vector.broadcast %46 : vector<1x256xf32> to vector<16x256xf32>
    %48 = arith.addf %45, %47 : vector<16x256xf32>
    %cst_21 = arith.constant 0.000000e+00 : f32
    %49 = vector.broadcast %cst_21 : f32 to vector<16x256xf32>
    %50 = arith.maximumf %48, %49 : vector<16x256xf32>
    %c0_22 = arith.constant 0 : index
    %c0_23 = arith.constant 0 : index
    %51 = vector.load %arg8[%c0_22, %c0_23] : memref<256x128xf32, #tpu.memory_space<vmem>>, vector<256x128xf32>
    %cst_24 = arith.constant dense<0.000000e+00> : vector<16x128xf32>
    %52 = tpu.matmul %50, %51, %cst_24 {dimension_numbers = #tpu.dot_dimension_numbers<[1], [0], [0], [1], [0, 0, 1, 1], [], []>, precision = #tpu.contract_precision<fp32>} : vector<16x256xf32>, vector<256x128xf32>, vector<16x128xf32> -> vector<16x128xf32>
    %c0_25 = arith.constant 0 : index
    %c0_26 = arith.constant 0 : index
    %53 = vector.load %arg9[%c0_25, %c0_26] : memref<1x128xf32, #tpu.memory_space<vmem>>, vector<1x128xf32>
    %54 = vector.broadcast %53 : vector<1x128xf32> to vector<16x128xf32>
    %55 = arith.addf %52, %54 : vector<16x128xf32>
    %56 = tpu.iota {dimensions = array<i32: 1>} : vector<1x128xi32>
    %c1_i32 = arith.constant 1 : i32
    %57 = vector.broadcast %c1_i32 : i32 to vector<1x128xi32>
    %58 = arith.cmpi sge, %56, %57 : vector<1x128xi32>
    %c17_i32 = arith.constant 17 : i32
    %59 = vector.broadcast %c17_i32 : i32 to vector<1x128xi32>
    %60 = arith.cmpi slt, %56, %59 : vector<1x128xi32>
    %61 = arith.andi %58, %60 : vector<1x128xi1>
    %62 = arith.extui %61 : vector<1x128xi1> to vector<1x128xi32>
    %63 = arith.sitofp %62 : vector<1x128xi32> to vector<1x128xf32>
    %64 = vector.broadcast %63 : vector<1x128xf32> to vector<16x128xf32>
    %65 = arith.mulf %55, %64 : vector<16x128xf32>
    %cst_27 = arith.constant dense<0.000000e+00> : vector<16xf32>
    %66 = vector.multi_reduction <add>, %65, %cst_27 [1] : vector<16x128xf32> to vector<16xf32>
    %67 = vector.shape_cast %66 : vector<16xf32> to vector<16x1xf32>
    %68 = arith.mulf %67, %7 : vector<16x1xf32>
    %69 = vector.shape_cast %68 : vector<16x1xf32> to vector<1x16x1xf32>
    %cst_28 = arith.constant dense<0.000000e+00> : vector<1xf32>
    %70 = vector.multi_reduction <add>, %69, %cst_28 [1, 2] : vector<1x16x1xf32> to vector<1xf32>
    %71 = vector.shape_cast %70 : vector<1xf32> to vector<1x1x1xf32>
    %72 = vector.extract %71[0, 0, 0] : f32 from vector<1x1x1xf32>
    %73 = arith.mulf %72, %2 : f32
    %cst_29 = arith.constant 6.250000e-02 : f32
    %74 = arith.mulf %73, %cst_29 : f32
    %75 = vector.extract_strided_slice %55 {offsets = [0, 0], sizes = [16, 1], strides = [1, 1]} : vector<16x128xf32> to vector<16x1xf32>
    %76 = vector.broadcast %75 : vector<16x1xf32> to vector<16x128xf32>
    %77 = arith.addf %76, %55 : vector<16x128xf32>
    %78 = vector.broadcast %74 : f32 to vector<16x128xf32>
    %79 = arith.subf %77, %78 : vector<16x128xf32>
    %c0_30 = arith.constant 0 : index
    %c0_31 = arith.constant 0 : index
    %80 = vector.load %arg10[%c0_30, %c0_31] : memref<16x128xf32, #tpu.memory_space<vmem>>, vector<16x128xf32>
    tpu.vector_store %arg10[%c0_30, %c0_31], %79 {strides = array<i32>} : memref<16x128xf32, #tpu.memory_space<vmem>>, vector<16x128xf32>,
    return
  }
}

</mosaic_0001>

<llo_original>
// kernel: dqn_forward.1
$region0: #{dqn_forward.1}
  #allocation0 [shape = 'u32[]', space=smem, size = 0x4, offset = 0x4, fixed_abs, tag = 'smem constant byte address 0x4 - core index']
  #allocation1 [shape = 'u32[144,128]{1,0:T(1,128)}', space=vmem, size = 0x12000, scoped, tag = 'internal scratch']
  #allocation2 [shape = 's32[1,1]{1,0:T(1,128)S(6)}', space=smem, size = 0x200, scoped, tag = 'scoped memory for dqn_forward.1']
  %s0 = inlined_call_operand.<no memory space> [shape: s32[1,1], index: 0, kind: input, shape index: {}]
  %s1 = inlined_call_operand.vmem [shape: f32[16,32], index: 1, kind: input, shape index: {}]
  %s2 = inlined_call_operand.hbm [shape: f32[32,256], index: 2, kind: input, shape index: {}]
  %s3 = inlined_call_operand.vmem [shape: f32[1,256], index: 3, kind: input, shape index: {}]
  %s4 = inlined_call_operand.hbm [shape: f32[256,256], index: 4, kind: input, shape index: {}]
  %s5 = inlined_call_operand.vmem [shape: f32[1,256], index: 5, kind: input, shape index: {}]
  %s6 = inlined_call_operand.vmem [shape: f32[1,256], index: 6, kind: input, shape index: {}]
  %s7 = inlined_call_operand.vmem [shape: f32[1,256], index: 7, kind: input, shape index: {}]
  %s8 = inlined_call_operand.hbm [shape: f32[256,128], index: 8, kind: input, shape index: {}]
  %s9 = inlined_call_operand.vmem [shape: f32[1,128], index: 9, kind: input, shape index: {}]
  %s10 = inlined_call_operand.vmem [shape: f32[16,128], index: 10, kind: output, shape index: {}]
  %s11 = sld [smem:[#allocation0]]
  $region62: #{dqn_forward.1} parent=0
    _
  %s13 = ssub.s32 1, %s11
  %s14 = scalar_select 0, %s13, %s11
  %15 = sst [smem:[#allocation2]] %s0
  $region1: #{dqn_forward.1} parent=0
    #allocation3 [shape = 'u8[32768]{0}', space=vmem, size = 0x8000, scoped, tag = 'input window, operand 2, single buffered']
    #allocation4 [shape = 's32[1]{0}', space=sflag, size = 0x4, scoped, tag = 'scoped memory for dqn_forward.1']
    #allocation5 [shape = 'u8[262144]{0}', space=vmem, size = 0x40000, scoped, tag = 'input window, operand 4, single buffered']
    #allocation6 [shape = 's32[1]{0}', space=sflag, size = 0x4, scoped, tag = 'scoped memory for dqn_forward.1']
    #allocation7 [shape = 'u8[131072]{0}', space=vmem, size = 0x20000, scoped, tag = 'input window, operand 8, single buffered']
    %16 = vsyncpa [#allocation4], 0
    %17 = vsyncpa [#allocation6], 0
    // Predicated region
    $region2: #{dqn_forward.1} parent=1 // pred_check
      _
    $region3: #{dqn_forward.1} parent=1 // pred_check_branch
      %19 = sbr.rel (0) target = $region5
    $region4: #{dqn_forward.1} parent=1 // pred_region
      _
    $region5: #{dqn_forward.1} parent=1 // pred_fallthru
      _
    // Predicated region
    $region6: #{dqn_forward.1} parent=1 // pred_check
      _
    $region7: #{dqn_forward.1} parent=1 // pred_check_branch
      %21 = sbr.rel (0) target = $region9
    $region8: #{dqn_forward.1} parent=1 // pred_region
      _
    $region9: #{dqn_forward.1} parent=1 // pred_fallthru
      _
    // Predicated region
    $region10: #{dqn_forward.1} parent=1 // pred_check
      _
    $region11: #{dqn_forward.1} parent=1 // pred_check_branch
      %23 = sbr.rel (0) target = $region13
    $region12: #{dqn_forward.1} parent=1 // pred_region
      %s25 = ssub.s32 1024, 1024
      %26 = vsyncadd [#allocation4], %s25
      %s27 = sshll.u32 [#allocation3], 4
      %s28 = int_to_ptr.vmem [resolvable:$true] %s27
      %33 = dma.hbm_to_vmem [thread:$0]  %s2, 1024, %s28, [#allocation4], 256, 256, 16
    $region13: #{dqn_forward.1} parent=1 // pred_fallthru
      _
    // Predicated region
    $region14: #{dqn_forward.1} parent=1 // pred_check
      _
    $region15: #{dqn_forward.1} parent=1 // pred_check_branch
      %35 = sbr.rel (0) target = $region17
    $region16: #{dqn_forward.1} parent=1 // pred_region
      _
    $region17: #{dqn_forward.1} parent=1 // pred_fallthru
      _
    // Predicated region
    $region18: #{dqn_forward.1} parent=1 // pred_check
      _
    $region19: #{dqn_forward.1} parent=1 // pred_check_branch
      %37 = sbr.rel (0) target = $region21
    $region20: #{dqn_forward.1} parent=1 // pred_region
      %s39 = ssub.s32 8192, 8192
      %40 = vsyncadd [#allocation6], %s39
      %s41 = sshll.u32 [#allocation5], 4
      %s42 = int_to_ptr.vmem [resolvable:$true] %s41
      %47 = dma.hbm_to_vmem [thread:$0]  %s4, 8192, %s42, [#allocation6], 256, 256, 16
    $region21: #{dqn_forward.1} parent=1 // pred_fallthru
      _
    // Predicated region
    $region22: #{dqn_forward.1} parent=1 // pred_check
      _
    $region23: #{dqn_forward.1} parent=1 // pred_check_branch
      %49 = sbr.rel (0) target = $region25
    $region24: #{dqn_forward.1} parent=1 // pred_region
      _
    $region25: #{dqn_forward.1} parent=1 // pred_fallthru
      _
    // Predicated region
    $region26: #{dqn_forward.1} parent=1 // pred_check
      _
    $region27: #{dqn_forward.1} parent=1 // pred_check_branch
      %51 = sbr.rel (0) target = $region29
    $region28: #{dqn_forward.1} parent=1 // pred_region
      _
    $region29: #{dqn_forward.1} parent=1 // pred_fallthru
      _
    // Predicated region
    $region30: #{dqn_forward.1} parent=1 // pred_check
      _
    $region31: #{dqn_forward.1} parent=1 // pred_check_branch
      %53 = sbr.rel (0) target = $region33
    $region32: #{dqn_forward.1} parent=1 // pred_region
      _
    $region33: #{dqn_forward.1} parent=1 // pred_fallthru
      _
    // Predicated region
    $region34: #{dqn_forward.1} parent=1 // pred_check
      _
    $region35: #{dqn_forward.1} parent=1 // pred_check_branch
      %55 = sbr.rel (0) target = $region37
    $region36: #{dqn_forward.1} parent=1 // pred_region
      %s57 = ssub.s32 4096, 4096
      %58 = vsyncadd [#allocation6], %s57
      %s59 = sshll.u32 [#allocation7], 4
      %s60 = int_to_ptr.vmem [resolvable:$true] %s59
      %65 = dma.hbm_to_vmem [thread:$0]  %s8, 4096, %s60, [#allocation6], 128, 128, 8
    $region37: #{dqn_forward.1} parent=1 // pred_fallthru
      _
    // Predicated region
    $region38: #{dqn_forward.1} parent=1 // pred_check
      _
    $region39: #{dqn_forward.1} parent=1 // pred_check_branch
      %67 = sbr.rel (0) target = $region41
    $region40: #{dqn_forward.1} parent=1 // pred_region
      _
    $region41: #{dqn_forward.1} parent=1 // pred_fallthru
      _
    // Predicated region
    $region42: #{dqn_forward.1} parent=1 // pred_check
      _
    $region43: #{dqn_forward.1} parent=1 // pred_check_branch
      %69 = sbr.rel (0) target = $region45
    $region44: #{dqn_forward.1} parent=1 // pred_region
      %70 = dma.done [#allocation4], 1024
    $region45: #{dqn_forward.1} parent=1 // pred_fallthru
      _
    // Predicated region
    $region46: #{dqn_forward.1} parent=1 // pred_check
      _
    $region47: #{dqn_forward.1} parent=1 // pred_check_branch
      %72 = sbr.rel (0) target = $region49
    $region48: #{dqn_forward.1} parent=1 // pred_region
      %73 = dma.done [#allocation6], 8192
    $region49: #{dqn_forward.1} parent=1 // pred_fallthru
      _
    // Predicated region
    $region50: #{dqn_forward.1} parent=1 // pred_check
      _
    $region51: #{dqn_forward.1} parent=1 // pred_check_branch
      %75 = sbr.rel (0) target = $region53
    $region52: #{dqn_forward.1} parent=1 // pred_region
      %76 = dma.done [#allocation6], 4096
    $region53: #{dqn_forward.1} parent=1 // pred_fallthru
      _
    %s77 = sld [smem:[#allocation2]]
    %s78 = scvt.s32.f32 %s77
    %v79 = vstv %s78
    %v80 = vrcp.pop %v79
    %s81 = vtos %v80
    %v82 = vlaneseq
    %v83 = vshrl.u32 %v82, 7
    %v84 = vadd.s32 %v83, 8
    %v85 = vstv %s77
    %vm86 = vcmp.lt.s32.totalorder %v83, %v85
    %vm87 = vcmp.lt.s32.totalorder %v84, %v85
    %v88 = vsel %vm86, 1, 0
    %v89 = vsel %vm87, 1, 0
    %v90 = vcvt.s32.f32 %v88
    %v91 = vcvt.s32.f32 %v89
    %v92 = vld [vmem:[%s1] sm:$0xff]
    %v93 = vld [vmem:[%s1 + $0x8] sm:$0xff]
    %v94 = vld [vmem:[#allocation3] sm:$0xff]
    %v95 = vld [vmem:[#allocation3 + $0x8] sm:$0xff]
    %v96 = vld [vmem:[#allocation3 + $0x10] sm:$0xff]
    %v97 = vld [vmem:[#allocation3 + $0x18] sm:$0xff]
    %v98 = vld [vmem:[#allocation3 + $0x20] sm:$0xff]
    %v99 = vld [vmem:[#allocation3 + $0x28] sm:$0xff]
    %v100 = vld [vmem:[#allocation3 + $0x30] sm:$0xff]
    %v101 = vld [vmem:[#allocation3 + $0x38] sm:$0xff]
    %v102 = vld [vmem:[%s3] sm:$0x3]
    %v104 = vlaneseq
    %v105 = vshrl.u32 %v104, 7
    %v106 = vsub.s32 0, %v105
    %v107 = vrot.slane %v102, %v106
    %v108 = vlaneseq
    %v109 = vshrl.u32 %v108, 7
    %v110 = vsub.s32 1, %v109
    %v111 = vrot.slane %v102, %v110
    %vm114 = vcmask 261120
    %v116 = vsel %vm114, %v92, 0
    %v119 = vsel %vm114, %v93, 0
    %121 = vmatprep.subr.mxu0 0.0
    %122 = vmatpush1.msra.mxu0 0.0
    %123 = vmatprep.subr.mxu0 0.0
    %124 = vmatpush1.msra.mxu0 0.0
    %125 = vmatprep.subr.mxu0 0.0
    %126 = vmatpush1.msra.mxu0 0.0
    %127 = vmatprep.subr.mxu0 0.0
    %128 = vmatpush1.msra.mxu0 0.0
    %129 = vmatprep.subr.mxu0 0.0
    %130 = vmatpush1.msra.mxu0 0.0
    %131 = vmatprep.subr.mxu0 0.0
    %132 = vmatpush1.msra.mxu0 0.0
    %133 = vmatprep.subr.mxu0 0.0
    %134 = vmatpush1.msra.mxu0 0.0
    %135 = vmatprep.subr.mxu0 0.0
    %136 = vmatpush1.msra.mxu0 0.0
    %137 = vmatprep.subr.mxu0 0.0
    %138 = vmatpush1.msra.mxu0 0.0
    %139 = vmatprep.subr.mxu0 0.0
    %140 = vmatpush1.msra.mxu0 0.0
    %141 = vmatprep.subr.mxu0 0.0
    %142 = vmatpush1.msra.mxu0 0.0
    %143 = vmatprep.subr.mxu0 0.0
    %144 = vmatpush1.msra.mxu0 0.0
    %v145 = vand.u32 %v101, 4294901760
    %146 = vmatprep.subr.mxu0 %v145
    %v147 = vand.u32 %v100, 4294901760
    %148 = vmatpush1.msra.mxu0 %v147
    %v149 = vand.u32 %v99, 4294901760
    %150 = vmatprep.subr.mxu0 %v149
    %v151 = vand.u32 %v98, 4294901760
    %152 = vmatpush1.msra.mxu0 %v151
    %v153 = vand.u32 %v97, 4294901760
    %154 = vmatprep.subr.mxu0 %v153
    %v155 = vand.u32 %v96, 4294901760
    %156 = vmatpush1.msra.mxu0 %v155
    %v157 = vand.u32 %v95, 4294901760
    %158 = vmatprep.subr.mxu0 %v157
    %v159 = vand.u32 %v94, 4294901760
    %160 = vmatpush1.msra.mxu0 %v159
    %161 = vmatprep.subr.mxu0 0.0
    %162 = vmatpush2.msra.mxu0 0.0
    %163 = vmatprep.subr.mxu0 0.0
    %164 = vmatpush2.msra.mxu0 0.0
    %165 = vmatprep.subr.mxu0 0.0
    %166 = vmatpush2.msra.mxu0 0.0
    %167 = vmatprep.subr.mxu0 0.0
    %168 = vmatpush2.msra.mxu0 0.0
    %169 = vmatprep.subr.mxu0 0.0
    %170 = vmatpush2.msra.mxu0 0.0
    %171 = vmatprep.subr.mxu0 0.0
    %172 = vmatpush2.msra.mxu0 0.0
    %173 = vmatprep.subr.mxu0 0.0
    %174 = vmatpush2.msra.mxu0 0.0
    %175 = vmatprep.subr.mxu0 0.0
    %176 = vmatpush2.msra.mxu0 0.0
    %177 = vmatprep.subr.mxu0 0.0
    %178 = vmatpush2.msra.mxu0 0.0
    %179 = vmatprep.subr.mxu0 0.0
    %180 = vmatpush2.msra.mxu0 0.0
    %181 = vmatprep.subr.mxu0 0.0
    %182 = vmatpush2.msra.mxu0 0.0
    %183 = vmatprep.subr.mxu0 0.0
    %184 = vmatpush2.msra.mxu0 0.0
    %185 = vmatprep.subr.mxu0 0.0
    %186 = vmatpush2.msra.mxu0 0.0
    %187 = vmatprep.subr.mxu0 0.0
    %188 = vmatpush2.msra.mxu0 0.0
    %189 = vmatprep.subr.mxu0 0.0
    %190 = vmatpush2.msra.mxu0 0.0
    %191 = vmatprep.subr.mxu0 0.0
    %192 = vmatpush2.msra.mxu0 0.0
    %193 = vmatprep.mubr.f32.mxu0 0.0
    %v194 = vand.u32 %v116, 4294901760
    %v195 = vsub.f32 %v116, %v194
    %v196 = vand.u32 %v195, 4294901760
    %v197 = vsub.f32 %v195, %v196
    %v198 = vand.u32 %v197, 4294901760
    %199 = vmatmul.mubr.f32.gmra.mxu0 %v198
    %v200 = vpop.f32.mrf.mxu0
    %v201 = vadd.f32 %v107, %v200
    %v202 = vpop.f32.mrf.mxu0
    %v203 = vadd.f32 %v111, %v202
    %204 = vmatprep.mubr.f32.mxu0 0.0
    %v205 = vand.u32 %v119, 4294901760
    %v206 = vsub.f32 %v119, %v205
    %v207 = vand.u32 %v206, 4294901760
    %v208 = vsub.f32 %v206, %v207
    %v209 = vand.u32 %v208, 4294901760
    %210 = vmatmul.mubr.f32.gmra.mxu0 %v209
    %v211 = vpop.f32.mrf.mxu0
    %v212 = vadd.f32 %v107, %v211
    %v213 = vpop.f32.mrf.mxu0
    %v214 = vadd.f32 %v111, %v213
    %215 = vdwg.mxu0
    %216 = vmatprep.subr.mxu0 0.0
    %217 = vmatpush1.msra.mxu0 0.0
    %218 = vmatprep.subr.mxu0 0.0
    %219 = vmatpush1.msra.mxu0 0.0
    %220 = vmatprep.subr.mxu0 0.0
    %221 = vmatpush1.msra.mxu0 0.0
    %222 = vmatprep.subr.mxu0 0.0
    %223 = vmatpush1.msra.mxu0 0.0
    %224 = vmatprep.subr.mxu0 0.0
    %225 = vmatpush1.msra.mxu0 0.0
    %226 = vmatprep.subr.mxu0 0.0
    %227 = vmatpush1.msra.mxu0 0.0
    %228 = vmatprep.subr.mxu0 0.0
    %229 = vmatpush1.msra.mxu0 0.0
    %230 = vmatprep.subr.mxu0 0.0
    %231 = vmatpush1.msra.mxu0 0.0
    %232 = vmatprep.subr.mxu0 0.0
    %233 = vmatpush1.msra.mxu0 0.0
    %234 = vmatprep.subr.mxu0 0.0
    %235 = vmatpush1.msra.mxu0 0.0
    %236 = vmatprep.subr.mxu0 0.0
    %237 = vmatpush1.msra.mxu0 0.0
    %238 = vmatprep.subr.mxu0 0.0
    %239 = vmatpush1.msra.mxu0 0.0
    %v240 = vand.u32 %v101, 4294901760
    %v241 = vsub.f32 %v101, %v240
    %v242 = vand.u32 %v241, 4294901760
    %v243 = vsub.f32 %v241, %v242
    %v244 = vand.u32 %v243, 4294901760
    %245 = vmatprep.subr.mxu0 %v244
    %v246 = vand.u32 %v100, 4294901760
    %v247 = vsub.f32 %v100, %v246
    %v248 = vand.u32 %v247, 4294901760
    %v249 = vsub.f32 %v247, %v248
    %v250 = vand.u32 %v249, 4294901760
    %251 = vmatpush1.msra.mxu0 %v250
    %v252 = vand.u32 %v99, 4294901760
    %v253 = vsub.f32 %v99, %v252
    %v254 = vand.u32 %v253, 4294901760
    %v255 = vsub.f32 %v253, %v254
    %v256 = vand.u32 %v255, 4294901760
    %257 = vmatprep.subr.mxu0 %v256
    %v258 = vand.u32 %v98, 4294901760
    %v259 = vsub.f32 %v98, %v258
    %v260 = vand.u32 %v259, 4294901760
    %v261 = vsub.f32 %v259, %v260
    %v262 = vand.u32 %v261, 4294901760
    %263 = vmatpush1.msra.mxu0 %v262
    %v264 = vand.u32 %v97, 4294901760
    %v265 = vsub.f32 %v97, %v264
    %v266 = vand.u32 %v265, 4294901760
    %v267 = vsub.f32 %v265, %v266
    %v268 = vand.u32 %v267, 4294901760
    %269 = vmatprep.subr.mxu0 %v268
    %v270 = vand.u32 %v96, 4294901760
    %v271 = vsub.f32 %v96, %v270
    %v272 = vand.u32 %v271, 4294901760
    %v273 = vsub.f32 %v271, %v272
    %v274 = vand.u32 %v273, 4294901760
    %275 = vmatpush1.msra.mxu0 %v274
    %v276 = vand.u32 %v95, 4294901760
    %v277 = vsub.f32 %v95, %v276
    %v278 = vand.u32 %v277, 4294901760
    %v279 = vsub.f32 %v277, %v278
    %v280 = vand.u32 %v279, 4294901760
    %281 = vmatprep.subr.mxu0 %v280
    %v282 = vand.u32 %v94, 4294901760
    %v283 = vsub.f32 %v94, %v282
    %v284 = vand.u32 %v283, 4294901760
    %v285 = vsub.f32 %v283, %v284
    %v286 = vand.u32 %v285, 4294901760
    %287 = vmatpush1.msra.mxu0 %v286
    %288 = vmatprep.subr.mxu0 0.0
    %289 = vmatpush2.msra.mxu0 0.0
    %290 = vmatprep.subr.mxu0 0.0
    %291 = vmatpush2.msra.mxu0 0.0
    %292 = vmatprep.subr.mxu0 0.0
    %293 = vmatpush2.msra.mxu0 0.0
    %294 = vmatprep.subr.mxu0 0.0
    %295 = vmatpush2.msra.mxu0 0.0
    %296 = vmatprep.subr.mxu0 0.0
    %297 = vmatpush2.msra.mxu0 0.0
    %298 = vmatprep.subr.mxu0 0.0
    %299 = vmatpush2.msra.mxu0 0.0
    %300 = vmatprep.subr.mxu0 0.0
    %301 = vmatpush2.msra.mxu0 0.0
    %302 = vmatprep.subr.mxu0 0.0
    %303 = vmatpush2.msra.mxu0 0.0
    %304 = vmatprep.subr.mxu0 0.0
    %305 = vmatpush2.msra.mxu0 0.0
    %306 = vmatprep.subr.mxu0 0.0
    %307 = vmatpush2.msra.mxu0 0.0
    %308 = vmatprep.subr.mxu0 0.0
    %309 = vmatpush2.msra.mxu0 0.0
    %310 = vmatprep.subr.mxu0 0.0
    %311 = vmatpush2.msra.mxu0 0.0
    %312 = vmatprep.subr.mxu0 0.0
    %313 = vmatpush2.msra.mxu0 0.0
    %314 = vmatprep.subr.mxu0 0.0
    %315 = vmatpush2.msra.mxu0 0.0
    %316 = vmatprep.subr.mxu0 0.0
    %317 = vmatpush2.msra.mxu0 0.0
    %318 = vmatprep.subr.mxu0 0.0
    %319 = vmatpush2.msra.mxu0 0.0
    %320 = vmatprep.mubr.f32.mxu0 0.0
    %v321 = vand.u32 %v116, 4294901760
    %322 = vmatmul.mubr.f32.gmra.mxu0 %v321
    %v323 = vpop.f32.mrf.mxu0
    %v324 = vadd.f32 %v201, %v323
    %v325 = vpop.f32.mrf.mxu0
    %v326 = vadd.f32 %v203, %v325
    %327 = vmatprep.mubr.f32.mxu0 0.0
    %v328 = vand.u32 %v119, 4294901760
    %329 = vmatmul.mubr.f32.gmra.mxu0 %v328
    %v330 = vpop.f32.mrf.mxu0
    %v331 = vadd.f32 %v212, %v330
    %v332 = vpop.f32.mrf.mxu0
    %v333 = vadd.f32 %v214, %v332
    %334 = vdwg.mxu0
    %335 = vmatprep.subr.mxu0 0.0
    %336 = vmatpush1.msra.mxu0 0.0
    %337 = vmatprep.subr.mxu0 0.0
    %338 = vmatpush1.msra.mxu0 0.0
    %339 = vmatprep.subr.mxu0 0.0
    %340 = vmatpush1.msra.mxu0 0.0
    %341 = vmatprep.subr.mxu0 0.0
    %342 = vmatpush1.msra.mxu0 0.0
    %343 = vmatprep.subr.mxu0 0.0
    %344 = vmatpush1.msra.mxu0 0.0
    %345 = vmatprep.subr.mxu0 0.0
    %346 = vmatpush1.msra.mxu0 0.0
    %347 = vmatprep.subr.mxu0 0.0
    %348 = vmatpush1.msra.mxu0 0.0
    %349 = vmatprep.subr.mxu0 0.0
    %350 = vmatpush1.msra.mxu0 0.0
    %351 = vmatprep.subr.mxu0 0.0
    %352 = vmatpush1.msra.mxu0 0.0
    %353 = vmatprep.subr.mxu0 0.0
    %354 = vmatpush1.msra.mxu0 0.0
    %355 = vmatprep.subr.mxu0 0.0
    %356 = vmatpush1.msra.mxu0 0.0
    %357 = vmatprep.subr.mxu0 0.0
    %358 = vmatpush1.msra.mxu0 0.0
    %v359 = vand.u32 %v101, 4294901760
    %v360 = vsub.f32 %v101, %v359
    %361 = vmatprep.subr.mxu0 %v360
    %v362 = vand.u32 %v100, 4294901760
    %v363 = vsub.f32 %v100, %v362
    %364 = vmatpush1.msra.mxu0 %v363
    %v365 = vand.u32 %v99, 4294901760
    %v366 = vsub.f32 %v99, %v365
    %367 = vmatprep.subr.mxu0 %v366
    %v368 = vand.u32 %v98, 4294901760
    %v369 = vsub.f32 %v98, %v368
    %370 = vmatpush1.msra.mxu0 %v369
    %v371 = vand.u32 %v97, 4294901760
    %v372 = vsub.f32 %v97, %v371
    %373 = vmatprep.subr.mxu0 %v372
    %v374 = vand.u32 %v96, 4294901760
    %v375 = vsub.f32 %v96, %v374
    %376 = vmatpush1.msra.mxu0 %v375
    %v377 = vand.u32 %v95, 4294901760
    %v378 = vsub.f32 %v95, %v377
    %379 = vmatprep.subr.mxu0 %v378
    %v380 = vand.u32 %v94, 4294901760
    %v381 = vsub.f32 %v94, %v380
    %382 = vmatpush1.msra.mxu0 %v381
    %383 = vmatprep.subr.mxu0 0.0
    %384 = vmatpush2.msra.mxu0 0.0
    %385 = vmatprep.subr.mxu0 0.0
    %386 = vmatpush2.msra.mxu0 0.0
    %387 = vmatprep.subr.mxu0 0.0
    %388 = vmatpush2.msra.mxu0 0.0
    %389 = vmatprep.subr.mxu0 0.0
    %390 = vmatpush2.msra.mxu0 0.0
    %391 = vmatprep.subr.mxu0 0.0
    %392 = vmatpush2.msra.mxu0 0.0
    %393 = vmatprep.subr.mxu0 0.0
    %394 = vmatpush2.msra.mxu0 0.0
    %395 = vmatprep.subr.mxu0 0.0
    %396 = vmatpush2.msra.mxu0 0.0
    %397 = vmatprep.subr.mxu0 0.0
    %398 = vmatpush2.msra.mxu0 0.0
    %399 = vmatprep.subr.mxu0 0.0
    %400 = vmatpush2.msra.mxu0 0.0
    %401 = vmatprep.subr.mxu0 0.0
    %402 = vmatpush2.msra.mxu0 0.0
    %403 = vmatprep.subr.mxu0 0.0
    %404 = vmatpush2.msra.mxu0 0.0
    %405 = vmatprep.subr.mxu0 0.0
    %406 = vmatpush2.msra.mxu0 0.0
    %407 = vmatprep.subr.mxu0 0.0
    %408 = vmatpush2.msra.mxu0 0.0
    %409 = vmatprep.subr.mxu0 0.0
    %410 = vmatpush2.msra.mxu0 0.0
    %411 = vmatprep.subr.mxu0 0.0
    %412 = vmatpush2.msra.mxu0 0.0
    %413 = vmatprep.subr.mxu0 0.0
    %414 = vmatpush2.msra.mxu0 0.0
    %415 = vmatprep.mubr.f32.mxu0 0.0
    %v416 = vand.u32 %v116, 4294901760
    %v417 = vsub.f32 %v116, %v416
    %418 = vmatmul.mubr.f32.gmra.mxu0 %v417
    %v419 = vpop.f32.mrf.mxu0
    %v420 = vadd.f32 %v324, %v419
    %v421 = vpop.f32.mrf.mxu0
    %v422 = vadd.f32 %v326, %v421
    %423 = vmatprep.mubr.f32.mxu0 0.0
    %v424 = vand.u32 %v119, 4294901760
    %v425 = vsub.f32 %v119, %v424
    %426 = vmatmul.mubr.f32.gmra.mxu0 %v425
    %v427 = vpop.f32.mrf.mxu0
    %v428 = vadd.f32 %v331, %v427
    %v429 = vpop.f32.mrf.mxu0
    %v430 = vadd.f32 %v333, %v429
    %431 = vdwg.mxu0
    %432 = vmatprep.subr.mxu0 0.0
    %433 = vmatpush1.msra.mxu0 0.0
    %434 = vmatprep.subr.mxu0 0.0
    %435 = vmatpush1.msra.mxu0 0.0
    %436 = vmatprep.subr.mxu0 0.0
    %437 = vmatpush1.msra.mxu0 0.0
    %438 = vmatprep.subr.mxu0 0.0
    %439 = vmatpush1.msra.mxu0 0.0
    %440 = vmatprep.subr.mxu0 0.0
    %441 = vmatpush1.msra.mxu0 0.0
    %442 = vmatprep.subr.mxu0 0.0
    %443 = vmatpush1.msra.mxu0 0.0
    %444 = vmatprep.subr.mxu0 0.0
    %445 = vmatpush1.msra.mxu0 0.0
    %446 = vmatprep.subr.mxu0 0.0
    %447 = vmatpush1.msra.mxu0 0.0
    %448 = vmatprep.subr.mxu0 0.0
    %449 = vmatpush1.msra.mxu0 0.0
    %450 = vmatprep.subr.mxu0 0.0
    %451 = vmatpush1.msra.mxu0 0.0
    %452 = vmatprep.subr.mxu0 0.0
    %453 = vmatpush1.msra.mxu0 0.0
    %454 = vmatprep.subr.mxu0 0.0
    %455 = vmatpush1.msra.mxu0 0.0
    %v456 = vand.u32 %v101, 4294901760
    %457 = vmatprep.subr.mxu0 %v456
    %v458 = vand.u32 %v100, 4294901760
    %459 = vmatpush1.msra.mxu0 %v458
    %v460 = vand.u32 %v99, 4294901760
    %461 = vmatprep.subr.mxu0 %v460
    %v462 = vand.u32 %v98, 4294901760
    %463 = vmatpush1.msra.mxu0 %v462
    %v464 = vand.u32 %v97, 4294901760
    %465 = vmatprep.subr.mxu0 %v464
    %v466 = vand.u32 %v96, 4294901760
    %467 = vmatpush1.msra.mxu0 %v466
    %v468 = vand.u32 %v95, 4294901760
    %469 = vmatprep.subr.mxu0 %v468
    %v470 = vand.u32 %v94, 4294901760
    %471 = vmatpush1.msra.mxu0 %v470
    %472 = vmatprep.subr.mxu0 0.0
    %473 = vmatpush2.msra.mxu0 0.0
    %474 = vmatprep.subr.mxu0 0.0
    %475 = vmatpush2.msra.mxu0 0.0
    %476 = vmatprep.subr.mxu0 0.0
    %477 = vmatpush2.msra.mxu0 0.0
    %478 = vmatprep.subr.mxu0 0.0
    %479 = vmatpush2.msra.mxu0 0.0
    %480 = vmatprep.subr.mxu0 0.0
    %481 = vmatpush2.msra.mxu0 0.0
    %482 = vmatprep.subr.mxu0 0.0
    %483 = vmatpush2.msra.mxu0 0.0
    %484 = vmatprep.subr.mxu0 0.0
    %485 = vmatpush2.msra.mxu0 0.0
    %486 = vmatprep.subr.mxu0 0.0
    %487 = vmatpush2.msra.mxu0 0.0
    %488 = vmatprep.subr.mxu0 0.0
    %489 = vmatpush2.msra.mxu0 0.0
    %490 = vmatprep.subr.mxu0 0.0
    %491 = vmatpush2.msra.mxu0 0.0
    %492 = vmatprep.subr.mxu0 0.0
    %493 = vmatpush2.msra.mxu0 0.0
    %494 = vmatprep.subr.mxu0 0.0
    %495 = vmatpush2.msra.mxu0 0.0
    %496 = vmatprep.subr.mxu0 0.0
    %497 = vmatpush2.msra.mxu0 0.0
    %498 = vmatprep.subr.mxu0 0.0
    %499 = vmatpush2.msra.mxu0 0.0
    %500 = vmatprep.subr.mxu0 0.0
    %501 = vmatpush2.msra.mxu0 0.0
    %502 = vmatprep.subr.mxu0 0.0
    %503 = vmatpush2.msra.mxu0 0.0
    %504 = vmatprep.mubr.f32.mxu0 0.0
    %v505 = vand.u32 %v116, 4294901760
    %v506 = vsub.f32 %v116, %v505
    %v507 = vand.u32 %v506, 4294901760
    %508 = vmatmul.mubr.f32.gmra.mxu0 %v507
    %v509 = vpop.f32.mrf.mxu0
    %v510 = vadd.f32 %v420, %v509
    %v511 = vpop.f32.mrf.mxu0
    %v512 = vadd.f32 %v422, %v511
    %513 = vmatprep.mubr.f32.mxu0 0.0
    %v514 = vand.u32 %v119, 4294901760
    %v515 = vsub.f32 %v119, %v514
    %v516 = vand.u32 %v515, 4294901760
    %517 = vmatmul.mubr.f32.gmra.mxu0 %v516
    %v518 = vpop.f32.mrf.mxu0
    %v519 = vadd.f32 %v428, %v518
    %v520 = vpop.f32.mrf.mxu0
    %v521 = vadd.f32 %v430, %v520
    %522 = vdwg.mxu0
    %523 = vmatprep.subr.mxu0 0.0
    %524 = vmatpush1.msra.mxu0 0.0
    %525 = vmatprep.subr.mxu0 0.0
    %526 = vmatpush1.msra.mxu0 0.0
    %527 = vmatprep.subr.mxu0 0.0
    %528 = vmatpush1.msra.mxu0 0.0
    %529 = vmatprep.subr.mxu0 0.0
    %530 = vmatpush1.msra.mxu0 0.0
    %531 = vmatprep.subr.mxu0 0.0
    %532 = vmatpush1.msra.mxu0 0.0
    %533 = vmatprep.subr.mxu0 0.0
    %534 = vmatpush1.msra.mxu0 0.0
    %535 = vmatprep.subr.mxu0 0.0
    %536 = vmatpush1.msra.mxu0 0.0
    %537 = vmatprep.subr.mxu0 0.0
    %538 = vmatpush1.msra.mxu0 0.0
    %539 = vmatprep.subr.mxu0 0.0
    %540 = vmatpush1.msra.mxu0 0.0
    %541 = vmatprep.subr.mxu0 0.0
    %542 = vmatpush1.msra.mxu0 0.0
    %543 = vmatprep.subr.mxu0 0.0
    %544 = vmatpush1.msra.mxu0 0.0
    %545 = vmatprep.subr.mxu0 0.0
    %546 = vmatpush1.msra.mxu0 0.0
    %v547 = vand.u32 %v101, 4294901760
    %v548 = vsub.f32 %v101, %v547
    %v549 = vand.u32 %v548, 4294901760
    %550 = vmatprep.subr.mxu0 %v549
    %v551 = vand.u32 %v100, 4294901760
    %v552 = vsub.f32 %v100, %v551
    %v553 = vand.u32 %v552, 4294901760
    %554 = vmatpush1.msra.mxu0 %v553
    %v555 = vand.u32 %v99, 4294901760
    %v556 = vsub.f32 %v99, %v555
    %v557 = vand.u32 %v556, 4294901760
    %558 = vmatprep.subr.mxu0 %v557
    %v559 = vand.u32 %v98, 4294901760
    %v560 = vsub.f32 %v98, %v559
    %v561 = vand.u32 %v560, 4294901760
    %562 = vmatpush1.msra.mxu0 %v561
    %v563 = vand.u32 %v97, 4294901760
    %v564 = vsub.f32 %v97, %v563
    %v565 = vand.u32 %v564, 4294901760
    %566 = vmatprep.subr.mxu0 %v565
    %v567 = vand.u32 %v96, 4294901760
    %v568 = vsub.f32 %v96, %v567
    %v569 = vand.u32 %v568, 4294901760
    %570 = vmatpush1.msra.mxu0 %v569
    %v571 = vand.u32 %v95, 4294901760
    %v572 = vsub.f32 %v95, %v571
    %v573 = vand.u32 %v572, 4294901760
    %574 = vmatprep.subr.mxu0 %v573
    %v575 = vand.u32 %v94, 4294901760
    %v576 = vsub.f32 %v94, %v575
    %v577 = vand.u32 %v576, 4294901760
    %578 = vmatpush1.msra.mxu0 %v577
    %579 = vmatprep.subr.mxu0 0.0
    %580 = vmatpush2.msra.mxu0 0.0
    %581 = vmatprep.subr.mxu0 0.0
    %582 = vmatpush2.msra.mxu0 0.0
    %583 = vmatprep.subr.mxu0 0.0
    %584 = vmatpush2.msra.mxu0 0.0
    %585 = vmatprep.subr.mxu0 0.0
    %586 = vmatpush2.msra.mxu0 0.0
    %587 = vmatprep.subr.mxu0 0.0
    %588 = vmatpush2.msra.mxu0 0.0
    %589 = vmatprep.subr.mxu0 0.0
    %590 = vmatpush2.msra.mxu0 0.0
    %591 = vmatprep.subr.mxu0 0.0
    %592 = vmatpush2.msra.mxu0 0.0
    %593 = vmatprep.subr.mxu0 0.0
    %594 = vmatpush2.msra.mxu0 0.0
    %595 = vmatprep.subr.mxu0 0.0
    %596 = vmatpush2.msra.mxu0 0.0
    %597 = vmatprep.subr.mxu0 0.0
    %598 = vmatpush2.msra.mxu0 0.0
    %599 = vmatprep.subr.mxu0 0.0
    %600 = vmatpush2.msra.mxu0 0.0
    %601 = vmatprep.subr.mxu0 0.0
    %602 = vmatpush2.msra.mxu0 0.0
    %603 = vmatprep.subr.mxu0 0.0
    %604 = vmatpush2.msra.mxu0 0.0
    %605 = vmatprep.subr.mxu0 0.0
    %606 = vmatpush2.msra.mxu0 0.0
    %607 = vmatprep.subr.mxu0 0.0
    %608 = vmatpush2.msra.mxu0 0.0
    %609 = vmatprep.subr.mxu0 0.0
    %610 = vmatpush2.msra.mxu0 0.0
    %611 = vmatprep.mubr.f32.mxu0 0.0
    %v612 = vand.u32 %v116, 4294901760
    %613 = vmatmul.mubr.f32.gmra.mxu0 %v612
    %v614 = vpop.f32.mrf.mxu0
    %v615 = vadd.f32 %v510, %v614
    %v616 = vpop.f32.mrf.mxu0
    %v617 = vadd.f32 %v512, %v616
    %618 = vmatprep.mubr.f32.mxu0 0.0
    %v619 = vand.u32 %v119, 4294901760
    %620 = vmatmul.mubr.f32.gmra.mxu0 %v619
    %v621 = vpop.f32.mrf.mxu0
    %v622 = vadd.f32 %v519, %v621
    %v623 = vpop.f32.mrf.mxu0
    %v624 = vadd.f32 %v521, %v623
    %625 = vdwg.mxu0
    %626 = vmatprep.subr.mxu0 0.0
    %627 = vmatpush1.msra.mxu0 0.0
    %628 = vmatprep.subr.mxu0 0.0
    %629 = vmatpush1.msra.mxu0 0.0
    %630 = vmatprep.subr.mxu0 0.0
    %631 = vmatpush1.msra.mxu0 0.0
    %632 = vmatprep.subr.mxu0 0.0
    %633 = vmatpush1.msra.mxu0 0.0
    %634 = vmatprep.subr.mxu0 0.0
    %635 = vmatpush1.msra.mxu0 0.0
    %636 = vmatprep.subr.mxu0 0.0
    %637 = vmatpush1.msra.mxu0 0.0
    %638 = vmatprep.subr.mxu0 0.0
    %639 = vmatpush1.msra.mxu0 0.0
    %640 = vmatprep.subr.mxu0 0.0
    %641 = vmatpush1.msra.mxu0 0.0
    %642 = vmatprep.subr.mxu0 0.0
    %643 = vmatpush1.msra.mxu0 0.0
    %644 = vmatprep.subr.mxu0 0.0
    %645 = vmatpush1.msra.mxu0 0.0
    %646 = vmatprep.subr.mxu0 0.0
    %647 = vmatpush1.msra.mxu0 0.0
    %648 = vmatprep.subr.mxu0 0.0
    %649 = vmatpush1.msra.mxu0 0.0
    %v650 = vand.u32 %v101, 4294901760
    %651 = vmatprep.subr.mxu0 %v650
    %v652 = vand.u32 %v100, 4294901760
    %653 = vmatpush1.msra.mxu0 %v652
    %v654 = vand.u32 %v99, 4294901760
    %655 = vmatprep.subr.mxu0 %v654
    %v656 = vand.u32 %v98, 4294901760
    %657 = vmatpush1.msra.mxu0 %v656
    %v658 = vand.u32 %v97, 4294901760
    %659 = vmatprep.subr.mxu0 %v658
    %v660 = vand.u32 %v96, 4294901760
    %661 = vmatpush1.msra.mxu0 %v660
    %v662 = vand.u32 %v95, 4294901760
    %663 = vmatprep.subr.mxu0 %v662
    %v664 = vand.u32 %v94, 4294901760
    %665 = vmatpush1.msra.mxu0 %v664
    %666 = vmatprep.subr.mxu0 0.0
    %667 = vmatpush2.msra.mxu0 0.0
    %668 = vmatprep.subr.mxu0 0.0
    %669 = vmatpush2.msra.mxu0 0.0
    %670 = vmatprep.subr.mxu0 0.0
    %671 = vmatpush2.msra.mxu0 0.0
    %672 = vmatprep.subr.mxu0 0.0
    %673 = vmatpush2.msra.mxu0 0.0
    %674 = vmatprep.subr.mxu0 0.0
    %675 = vmatpush2.msra.mxu0 0.0
    %676 = vmatprep.subr.mxu0 0.0
    %677 = vmatpush2.msra.mxu0 0.0
    %678 = vmatprep.subr.mxu0 0.0
    %679 = vmatpush2.msra.mxu0 0.0
    %680 = vmatprep.subr.mxu0 0.0
    %681 = vmatpush2.msra.mxu0 0.0
    %682 = vmatprep.subr.mxu0 0.0
    %683 = vmatpush2.msra.mxu0 0.0
    %684 = vmatprep.subr.mxu0 0.0
    %685 = vmatpush2.msra.mxu0 0.0
    %686 = vmatprep.subr.mxu0 0.0
    %687 = vmatpush2.msra.mxu0 0.0
    %688 = vmatprep.subr.mxu0 0.0
    %689 = vmatpush2.msra.mxu0 0.0
    %690 = vmatprep.subr.mxu0 0.0
    %691 = vmatpush2.msra.mxu0 0.0
    %692 = vmatprep.subr.mxu0 0.0
    %693 = vmatpush2.msra.mxu0 0.0
    %694 = vmatprep.subr.mxu0 0.0
    %695 = vmatpush2.msra.mxu0 0.0
    %696 = vmatprep.subr.mxu0 0.0
    %697 = vmatpush2.msra.mxu0 0.0
    %698 = vmatprep.mubr.f32.mxu0 0.0
    %v699 = vand.u32 %v116, 4294901760
    %700 = vmatmul.mubr.f32.gmra.mxu0 %v699
    %v701 = vpop.f32.mrf.mxu0
    %v702 = vadd.f32 %v615, %v701
    %v703 = vpop.f32.mrf.mxu0
    %v704 = vadd.f32 %v617, %v703
    %705 = vmatprep.mubr.f32.mxu0 0.0
    %v706 = vand.u32 %v119, 4294901760
    %707 = vmatmul.mubr.f32.gmra.mxu0 %v706
    %v708 = vpop.f32.mrf.mxu0
    %v709 = vadd.f32 %v622, %v708
    %v710 = vpop.f32.mrf.mxu0
    %v711 = vadd.f32 %v624, %v710
    %712 = vdwg.mxu0
    %v713 = vmax.f32 %v702, 0.0
    %v714 = vmax.f32 %v704, 0.0
    %v715 = vmax.f32 %v709, 0.0
    %v716 = vmax.f32 %v711, 0.0
    %v717 = vld [vmem:[#allocation5] sm:$0xff]
    %v718 = vld [vmem:[#allocation5 + $0x8] sm:$0xff]
    %v719 = vld [vmem:[#allocation5 + $0x10] sm:$0xff]
    %v720 = vld [vmem:[#allocation5 + $0x18] sm:$0xff]
    %v721 = vld [vmem:[#allocation5 + $0x20] sm:$0xff]
    %v722 = vld [vmem:[#allocation5 + $0x28] sm:$0xff]
    %v723 = vld [vmem:[#allocation5 + $0x30] sm:$0xff]
    %v724 = vld [vmem:[#allocation5 + $0x38] sm:$0xff]
    %v725 = vld [vmem:[#allocation5 + $0x40] sm:$0xff]
    %v726 = vld [vmem:[#allocation5 + $0x48] sm:$0xff]
    %v727 = vld [vmem:[#allocation5 + $0x50] sm:$0xff]
    %v728 = vld [vmem:[#allocation5 + $0x58] sm:$0xff]
    %v729 = vld [vmem:[#allocation5 + $0x60] sm:$0xff]
    %v730 = vld [vmem:[#allocation5 + $0x68] sm:$0xff]
    %v731 = vld [vmem:[#allocation5 + $0x70] sm:$0xff]
    %v732 = vld [vmem:[#allocation5 + $0x78] sm:$0xff]
    %v733 = vld [vmem:[#allocation5 + $0x80] sm:$0xff]
    %v734 = vld [vmem:[#allocation5 + $0x88] sm:$0xff]
    %v735 = vld [vmem:[#allocation5 + $0x90] sm:$0xff]
    %v736 = vld [vmem:[#allocation5 + $0x98] sm:$0xff]
    %v737 = vld [vmem:[#allocation5 + $0xa0] sm:$0xff]
    %v738 = vld [vmem:[#allocation5 + $0xa8] sm:$0xff]
    %v739 = vld [vmem:[#allocation5 + $0xb0] sm:$0xff]
    %v740 = vld [vmem:[#allocation5 + $0xb8] sm:$0xff]
    %v741 = vld [vmem:[#allocation5 + $0xc0] sm:$0xff]
    %v742 = vld [vmem:[#allocation5 + $0xc8] sm:$0xff]
    %v743 = vld [vmem:[#allocation5 + $0xd0] sm:$0xff]
    %v744 = vld [vmem:[#allocation5 + $0xd8] sm:$0xff]
    %v745 = vld [vmem:[#allocation5 + $0xe0] sm:$0xff]
    %v746 = vld [vmem:[#allocation5 + $0xe8] sm:$0xff]
    %v747 = vld [vmem:[#allocation5 + $0xf0] sm:$0xff]
    %v748 = vld [vmem:[#allocation5 + $0xf8] sm:$0xff]
    %v749 = vld [vmem:[#allocation5 + $0x100] sm:$0xff]
    %v750 = vld [vmem:[#allocation5 + $0x108] sm:$0xff]
    %v751 = vld [vmem:[#allocation5 + $0x110] sm:$0xff]
    %v752 = vld [vmem:[#allocation5 + $0x118] sm:$0xff]
    %v753 = vld [vmem:[#allocation5 + $0x120] sm:$0xff]
    %v754 = vld [vmem:[#allocation5 + $0x128] sm:$0xff]
    %v755 = vld [vmem:[#allocation5 + $0x130] sm:$0xff]
    %v756 = vld [vmem:[#allocation5 + $0x138] sm:$0xff]
    %v757 = vld [vmem:[#allocation5 + $0x140] sm:$0xff]
    %v758 = vld [vmem:[#allocation5 + $0x148] sm:$0xff]
    %v759 = vld [vmem:[#allocation5 + $0x150] sm:$0xff]
    %v760 = vld [vmem:[#allocation5 + $0x158] sm:$0xff]
    %v761 = vld [vmem:[#allocation5 + $0x160] sm:$0xff]
    %v762 = vld [vmem:[#allocation5 + $0x168] sm:$0xff]
    %v763 = vld [vmem:[#allocation5 + $0x170] sm:$0xff]
    %v764 = vld [vmem:[#allocation5 + $0x178] sm:$0xff]
    %v765 = vld [vmem:[#allocation5 + $0x180] sm:$0xff]
    %v766 = vld [vmem:[#allocation5 + $0x188] sm:$0xff]
    %v767 = vld [vmem:[#allocation5 + $0x190] sm:$0xff]
    %v768 = vld [vmem:[#allocation5 + $0x198] sm:$0xff]
    %v769 = vld [vmem:[#allocation5 + $0x1a0] sm:$0xff]
    %v770 = vld [vmem:[#allocation5 + $0x1a8] sm:$0xff]
    %v771 = vld [vmem:[#allocation5 + $0x1b0] sm:$0xff]
    %v772 = vld [vmem:[#allocation5 + $0x1b8] sm:$0xff]
    %v773 = vld [vmem:[#allocation5 + $0x1c0] sm:$0xff]
    %v774 = vld [vmem:[#allocation5 + $0x1c8] sm:$0xff]
    %v775 = vld [vmem:[#allocation5 + $0x1d0] sm:$0xff]
    %v776 = vld [vmem:[#allocation5 + $0x1d8] sm:$0xff]
    %v777 = vld [vmem:[#allocation5 + $0x1e0] sm:$0xff]
    %v778 = vld [vmem:[#allocation5 + $0x1e8] sm:$0xff]
    %v779 = vld [vmem:[#allocation5 + $0x1f0] sm:$0xff]
    %v780 = vld [vmem:[#allocation5 + $0x1f8] sm:$0xff]
    %v781 = vld [vmem:[%s5] sm:$0x3]
    %v783 = vlaneseq
    %v784 = vshrl.u32 %v783, 7
    %v785 = vsub.s32 0, %v784
    %v786 = vrot.slane %v781, %v785
    %v787 = vlaneseq
    %v788 = vshrl.u32 %v787, 7
    %v789 = vsub.s32 1, %v788
    %v790 = vrot.slane %v781, %v789
    %v793 = vand.u32 %v748, 4294901760
    %794 = vmatprep.subr.mxu0 %v793
    %v795 = vand.u32 %v747, 4294901760
    %796 = vmatpush1.msra.mxu0 %v795
    %v797 = vand.u32 %v746, 4294901760
    %798 = vmatprep.subr.mxu0 %v797
    %v799 = vand.u32 %v745, 4294901760
    %800 = vmatpush1.msra.mxu0 %v799
    %v801 = vand.u32 %v744, 4294901760
    %802 = vmatprep.subr.mxu0 %v801
    %v803 = vand.u32 %v743, 4294901760
    %804 = vmatpush1.msra.mxu0 %v803
    %v805 = vand.u32 %v742, 4294901760
    %806 = vmatprep.subr.mxu0 %v805
    %v807 = vand.u32 %v741, 4294901760
    %808 = vmatpush1.msra.mxu0 %v807
    %v809 = vand.u32 %v740, 4294901760
    %810 = vmatprep.subr.mxu0 %v809
    %v811 = vand.u32 %v739, 4294901760
    %812 = vmatpush1.msra.mxu0 %v811
    %v813 = vand.u32 %v738, 4294901760
    %814 = vmatprep.subr.mxu0 %v813
    %v815 = vand.u32 %v737, 4294901760
    %816 = vmatpush1.msra.mxu0 %v815
    %v817 = vand.u32 %v736, 4294901760
    %818 = vmatprep.subr.mxu0 %v817
    %v819 = vand.u32 %v735, 4294901760
    %820 = vmatpush1.msra.mxu0 %v819
    %v821 = vand.u32 %v734, 4294901760
    %822 = vmatprep.subr.mxu0 %v821
    %v823 = vand.u32 %v733, 4294901760
    %824 = vmatpush1.msra.mxu0 %v823
    %v825 = vand.u32 %v732, 4294901760
    %826 = vmatprep.subr.mxu0 %v825
    %v827 = vand.u32 %v731, 4294901760
    %828 = vmatpush1.msra.mxu0 %v827
    %v829 = vand.u32 %v730, 4294901760
    %830 = vmatprep.subr.mxu0 %v829
    %v831 = vand.u32 %v729, 4294901760
    %832 = vmatpush1.msra.mxu0 %v831
    %v833 = vand.u32 %v728, 4294901760
    %834 = vmatprep.subr.mxu0 %v833
    %v835 = vand.u32 %v727, 4294901760
    %836 = vmatpush1.msra.mxu0 %v835
    %v837 = vand.u32 %v726, 4294901760
    %838 = vmatprep.subr.mxu0 %v837
    %v839 = vand.u32 %v725, 4294901760
    %840 = vmatpush1.msra.mxu0 %v839
    %v841 = vand.u32 %v724, 4294901760
    %842 = vmatprep.subr.mxu0 %v841
    %v843 = vand.u32 %v723, 4294901760
    %844 = vmatpush1.msra.mxu0 %v843
    %v845 = vand.u32 %v722, 4294901760
    %846 = vmatprep.subr.mxu0 %v845
    %v847 = vand.u32 %v721, 4294901760
    %848 = vmatpush1.msra.mxu0 %v847
    %v849 = vand.u32 %v720, 4294901760
    %850 = vmatprep.subr.mxu0 %v849
    %v851 = vand.u32 %v719, 4294901760
    %852 = vmatpush1.msra.mxu0 %v851
    %v853 = vand.u32 %v718, 4294901760
    %854 = vmatprep.subr.mxu0 %v853
    %v855 = vand.u32 %v717, 4294901760
    %856 = vmatpush1.msra.mxu0 %v855
    %v857 = vand.u32 %v780, 4294901760
    %858 = vmatprep.subr.mxu0 %v857
    %v859 = vand.u32 %v779, 4294901760
    %860 = vmatpush2.msra.mxu0 %v859
    %v861 = vand.u32 %v778, 4294901760
    %862 = vmatprep.subr.mxu0 %v861
    %v863 = vand.u32 %v777, 4294901760
    %864 = vmatpush2.msra.mxu0 %v863
    %v865 = vand.u32 %v776, 4294901760
    %866 = vmatprep.subr.mxu0 %v865
    %v867 = vand.u32 %v775, 4294901760
    %868 = vmatpush2.msra.mxu0 %v867
    %v869 = vand.u32 %v774, 4294901760
    %870 = vmatprep.subr.mxu0 %v869
    %v871 = vand.u32 %v773, 4294901760
    %872 = vmatpush2.msra.mxu0 %v871
    %v873 = vand.u32 %v772, 4294901760
    %874 = vmatprep.subr.mxu0 %v873
    %v875 = vand.u32 %v771, 4294901760
    %876 = vmatpush2.msra.mxu0 %v875
    %v877 = vand.u32 %v770, 4294901760
    %878 = vmatprep.subr.mxu0 %v877
    %v879 = vand.u32 %v769, 4294901760
    %880 = vmatpush2.msra.mxu0 %v879
    %v881 = vand.u32 %v768, 4294901760
    %882 = vmatprep.subr.mxu0 %v881
    %v883 = vand.u32 %v767, 4294901760
    %884 = vmatpush2.msra.mxu0 %v883
    %v885 = vand.u32 %v766, 4294901760
    %886 = vmatprep.subr.mxu0 %v885
    %v887 = vand.u32 %v765, 4294901760
    %888 = vmatpush2.msra.mxu0 %v887
    %v889 = vand.u32 %v764, 4294901760
    %890 = vmatprep.subr.mxu0 %v889
    %v891 = vand.u32 %v763, 4294901760
    %892 = vmatpush2.msra.mxu0 %v891
    %v893 = vand.u32 %v762, 4294901760
    %894 = vmatprep.subr.mxu0 %v893
    %v895 = vand.u32 %v761, 4294901760
    %896 = vmatpush2.msra.mxu0 %v895
    %v897 = vand.u32 %v760, 4294901760
    %898 = vmatprep.subr.mxu0 %v897
    %v899 = vand.u32 %v759, 4294901760
    %900 = vmatpush2.msra.mxu0 %v899
    %v901 = vand.u32 %v758, 4294901760
    %902 = vmatprep.subr.mxu0 %v901
    %v903 = vand.u32 %v757, 4294901760
    %904 = vmatpush2.msra.mxu0 %v903
    %v905 = vand.u32 %v756, 4294901760
    %906 = vmatprep.subr.mxu0 %v905
    %v907 = vand.u32 %v755, 4294901760
    %908 = vmatpush2.msra.mxu0 %v907
    %v909 = vand.u32 %v754, 4294901760
    %910 = vmatprep.subr.mxu0 %v909
    %v911 = vand.u32 %v753, 4294901760
    %912 = vmatpush2.msra.mxu0 %v911
    %v913 = vand.u32 %v752, 4294901760
    %914 = vmatprep.subr.mxu0 %v913
    %v915 = vand.u32 %v751, 4294901760
    %916 = vmatpush2.msra.mxu0 %v915
    %v917 = vand.u32 %v750, 4294901760
    %918 = vmatprep.subr.mxu0 %v917
    %v919 = vand.u32 %v749, 4294901760
    %920 = vmatpush2.msra.mxu0 %v919
    %v921 = vand.u32 %v714, 4294901760
    %v922 = vsub.f32 %v714, %v921
    %v923 = vand.u32 %v922, 4294901760
    %v924 = vsub.f32 %v922, %v923
    %v925 = vand.u32 %v924, 4294901760
    %926 = vmatprep.mubr.f32.mxu0 %v925
    %v927 = vand.u32 %v713, 4294901760
    %v928 = vsub.f32 %v713, %v927
    %v929 = vand.u32 %v928, 4294901760
    %v930 = vsub.f32 %v928, %v929
    %v931 = vand.u32 %v930, 4294901760
    %932 = vmatmul.mubr.f32.gmra.mxu0 %v931
    %v933 = vpop.f32.mrf.mxu0
    %v934 = vadd.f32 %v786, %v933
    %v935 = vpop.f32.mrf.mxu0
    %v936 = vadd.f32 %v790, %v935
    %v937 = vand.u32 %v716, 4294901760
    %v938 = vsub.f32 %v716, %v937
    %v939 = vand.u32 %v938, 4294901760
    %v940 = vsub.f32 %v938, %v939
    %v941 = vand.u32 %v940, 4294901760
    %942 = vmatprep.mubr.f32.mxu0 %v941
    %v943 = vand.u32 %v715, 4294901760
    %v944 = vsub.f32 %v715, %v943
    %v945 = vand.u32 %v944, 4294901760
    %v946 = vsub.f32 %v944, %v945
    %v947 = vand.u32 %v946, 4294901760
    %948 = vmatmul.mubr.f32.gmra.mxu0 %v947
    %v949 = vpop.f32.mrf.mxu0
    %v950 = vadd.f32 %v786, %v949
    %v951 = vpop.f32.mrf.mxu0
    %v952 = vadd.f32 %v790, %v951
    %953 = vdwg.mxu0
    %v954 = vand.u32 %v748, 4294901760
    %v955 = vsub.f32 %v748, %v954
    %v956 = vand.u32 %v955, 4294901760
    %v957 = vsub.f32 %v955, %v956
    %v958 = vand.u32 %v957, 4294901760
    %959 = vmatprep.subr.mxu0 %v958
    %v960 = vand.u32 %v747, 4294901760
    %v961 = vsub.f32 %v747, %v960
    %v962 = vand.u32 %v961, 4294901760
    %v963 = vsub.f32 %v961, %v962
    %v964 = vand.u32 %v963, 4294901760
    %965 = vmatpush1.msra.mxu0 %v964
    %v966 = vand.u32 %v746, 4294901760
    %v967 = vsub.f32 %v746, %v966
    %v968 = vand.u32 %v967, 4294901760
    %v969 = vsub.f32 %v967, %v968
    %v970 = vand.u32 %v969, 4294901760
    %971 = vmatprep.subr.mxu0 %v970
    %v972 = vand.u32 %v745, 4294901760
    %v973 = vsub.f32 %v745, %v972
    %v974 = vand.u32 %v973, 4294901760
    %v975 = vsub.f32 %v973, %v974
    %v976 = vand.u32 %v975, 4294901760
    %977 = vmatpush1.msra.mxu0 %v976
    %v978 = vand.u32 %v744, 4294901760
    %v979 = vsub.f32 %v744, %v978
    %v980 = vand.u32 %v979, 4294901760
    %v981 = vsub.f32 %v979, %v980
    %v982 = vand.u32 %v981, 4294901760
    %983 = vmatprep.subr.mxu0 %v982
    %v984 = vand.u32 %v743, 4294901760
    %v985 = vsub.f32 %v743, %v984
    %v986 = vand.u32 %v985, 4294901760
    %v987 = vsub.f32 %v985, %v986
    %v988 = vand.u32 %v987, 4294901760
    %989 = vmatpush1.msra.mxu0 %v988
    %v990 = vand.u32 %v742, 4294901760
    %v991 = vsub.f32 %v742, %v990
    %v992 = vand.u32 %v991, 4294901760
    %v993 = vsub.f32 %v991, %v992
    %v994 = vand.u32 %v993, 4294901760
    %995 = vmatprep.subr.mxu0 %v994
    %v996 = vand.u32 %v741, 4294901760
    %v997 = vsub.f32 %v741, %v996
    %v998 = vand.u32 %v997, 4294901760
    %v999 = vsub.f32 %v997, %v998
    %v1000 = vand.u32 %v999, 4294901760
    %1001 = vmatpush1.msra.mxu0 %v1000
    %v1002 = vand.u32 %v740, 4294901760
    %v1003 = vsub.f32 %v740, %v1002
    %v1004 = vand.u32 %v1003, 4294901760
    %v1005 = vsub.f32 %v1003, %v1004
    %v1006 = vand.u32 %v1005, 4294901760
    %1007 = vmatprep.subr.mxu0 %v1006
    %v1008 = vand.u32 %v739, 4294901760
    %v1009 = vsub.f32 %v739, %v1008
    %v1010 = vand.u32 %v1009, 4294901760
    %v1011 = vsub.f32 %v1009, %v1010
    %v1012 = vand.u32 %v1011, 4294901760
    %1013 = vmatpush1.msra.mxu0 %v1012
    %v1014 = vand.u32 %v738, 4294901760
    %v1015 = vsub.f32 %v738, %v1014
    %v1016 = vand.u32 %v1015, 4294901760
    %v1017 = vsub.f32 %v1015, %v1016
    %v1018 = vand.u32 %v1017, 4294901760
    %1019 = vmatprep.subr.mxu0 %v1018
    %v1020 = vand.u32 %v737, 4294901760
    %v1021 = vsub.f32 %v737, %v1020
    %v1022 = vand.u32 %v1021, 4294901760
    %v1023 = vsub.f32 %v1021, %v1022
    %v1024 = vand.u32 %v1023, 4294901760
    %1025 = vmatpush1.msra.mxu0 %v1024
    %v1026 = vand.u32 %v736, 4294901760
    %v1027 = vsub.f32 %v736, %v1026
    %v1028 = vand.u32 %v1027, 4294901760
    %v1029 = vsub.f32 %v1027, %v1028
    %v1030 = vand.u32 %v1029, 4294901760
    %1031 = vmatprep.subr.mxu0 %v1030
    %v1032 = vand.u32 %v735, 4294901760
    %v1033 = vsub.f32 %v735, %v1032
    %v1034 = vand.u32 %v1033, 4294901760
    %v1035 = vsub.f32 %v1033, %v1034
    %v1036 = vand.u32 %v1035, 4294901760
    %1037 = vmatpush1.msra.mxu0 %v1036
    %v1038 = vand.u32 %v734, 4294901760
    %v1039 = vsub.f32 %v734, %v1038
    %v1040 = vand.u32 %v1039, 4294901760
    %v1041 = vsub.f32 %v1039, %v1040
    %v1042 = vand.u32 %v1041, 4294901760
    %1043 = vmatprep.subr.mxu0 %v1042
    %v1044 = vand.u32 %v733, 4294901760
    %v1045 = vsub.f32 %v733, %v1044
    %v1046 = vand.u32 %v1045, 4294901760
    %v1047 = vsub.f32 %v1045, %v1046
    %v1048 = vand.u32 %v1047, 4294901760
    %1049 = vmatpush1.msra.mxu0 %v1048
    %v1050 = vand.u32 %v732, 4294901760
    %v1051 = vsub.f32 %v732, %v1050
    %v1052 = vand.u32 %v1051, 4294901760
    %v1053 = vsub.f32 %v1051, %v1052
    %v1054 = vand.u32 %v1053, 4294901760
    %1055 = vmatprep.subr.mxu0 %v1054
    %v1056 = vand.u32 %v731, 4294901760
    %v1057 = vsub.f32 %v731, %v1056
    %v1058 = vand.u32 %v1057, 4294901760
    %v1059 = vsub.f32 %v1057, %v1058
    %v1060 = vand.u32 %v1059, 4294901760
    %1061 = vmatpush1.msra.mxu0 %v1060
    %v1062 = vand.u32 %v730, 4294901760
    %v1063 = vsub.f32 %v730, %v1062
    %v1064 = vand.u32 %v1063, 4294901760
    %v1065 = vsub.f32 %v1063, %v1064
    %v1066 = vand.u32 %v1065, 4294901760
    %1067 = vmatprep.subr.mxu0 %v1066
    %v1068 = vand.u32 %v729, 4294901760
    %v1069 = vsub.f32 %v729, %v1068
    %v1070 = vand.u32 %v1069, 4294901760
    %v1071 = vsub.f32 %v1069, %v1070
    %v1072 = vand.u32 %v1071, 4294901760
    %1073 = vmatpush1.msra.mxu0 %v1072
    %v1074 = vand.u32 %v728, 4294901760
    %v1075 = vsub.f32 %v728, %v1074
    %v1076 = vand.u32 %v1075, 4294901760
    %v1077 = vsub.f32 %v1075, %v1076
    %v1078 = vand.u32 %v1077, 4294901760
    %1079 = vmatprep.subr.mxu0 %v1078
    %v1080 = vand.u32 %v727, 4294901760
    %v1081 = vsub.f32 %v727, %v1080
    %v1082 = vand.u32 %v1081, 4294901760
    %v1083 = vsub.f32 %v1081, %v1082
    %v1084 = vand.u32 %v1083, 4294901760
    %1085 = vmatpush1.msra.mxu0 %v1084
    %v1086 = vand.u32 %v726, 4294901760
    %v1087 = vsub.f32 %v726, %v1086
    %v1088 = vand.u32 %v1087, 4294901760
    %v1089 = vsub.f32 %v1087, %v1088
    %v1090 = vand.u32 %v1089, 4294901760
    %1091 = vmatprep.subr.mxu0 %v1090
    %v1092 = vand.u32 %v725, 4294901760
    %v1093 = vsub.f32 %v725, %v1092
    %v1094 = vand.u32 %v1093, 4294901760
    %v1095 = vsub.f32 %v1093, %v1094
    %v1096 = vand.u32 %v1095, 4294901760
    %1097 = vmatpush1.msra.mxu0 %v1096
    %v1098 = vand.u32 %v724, 4294901760
    %v1099 = vsub.f32 %v724, %v1098
    %v1100 = vand.u32 %v1099, 4294901760
    %v1101 = vsub.f32 %v1099, %v1100
    %v1102 = vand.u32 %v1101, 4294901760
    %1103 = vmatprep.subr.mxu0 %v1102
    %v1104 = vand.u32 %v723, 4294901760
    %v1105 = vsub.f32 %v723, %v1104
    %v1106 = vand.u32 %v1105, 4294901760
    %v1107 = vsub.f32 %v1105, %v1106
    %v1108 = vand.u32 %v1107, 4294901760
    %1109 = vmatpush1.msra.mxu0 %v1108
    %v1110 = vand.u32 %v722, 4294901760
    %v1111 = vsub.f32 %v722, %v1110
    %v1112 = vand.u32 %v1111, 4294901760
    %v1113 = vsub.f32 %v1111, %v1112
    %v1114 = vand.u32 %v1113, 4294901760
    %1115 = vmatprep.subr.mxu0 %v1114
    %v1116 = vand.u32 %v721, 4294901760
    %v1117 = vsub.f32 %v721, %v1116
    %v1118 = vand.u32 %v1117, 4294901760
    %v1119 = vsub.f32 %v1117, %v1118
    %v1120 = vand.u32 %v1119, 4294901760
    %1121 = vmatpush1.msra.mxu0 %v1120
    %v1122 = vand.u32 %v720, 4294901760
    %v1123 = vsub.f32 %v720, %v1122
    %v1124 = vand.u32 %v1123, 4294901760
    %v1125 = vsub.f32 %v1123, %v1124
    %v1126 = vand.u32 %v1125, 4294901760
    %1127 = vmatprep.subr.mxu0 %v1126
    %v1128 = vand.u32 %v719, 4294901760
    %v1129 = vsub.f32 %v719, %v1128
    %v1130 = vand.u32 %v1129, 4294901760
    %v1131 = vsub.f32 %v1129, %v1130
    %v1132 = vand.u32 %v1131, 4294901760
    %1133 = vmatpush1.msra.mxu0 %v1132
    %v1134 = vand.u32 %v718, 4294901760
    %v1135 = vsub.f32 %v718, %v1134
    %v1136 = vand.u32 %v1135, 4294901760
    %v1137 = vsub.f32 %v1135, %v1136
    %v1138 = vand.u32 %v1137, 4294901760
    %1139 = vmatprep.subr.mxu0 %v1138
    %v1140 = vand.u32 %v717, 4294901760
    %v1141 = vsub.f32 %v717, %v1140
    %v1142 = vand.u32 %v1141, 4294901760
    %v1143 = vsub.f32 %v1141, %v1142
    %v1144 = vand.u32 %v1143, 4294901760
    %1145 = vmatpush1.msra.mxu0 %v1144
    %v1146 = vand.u32 %v780, 4294901760
    %v1147 = vsub.f32 %v780, %v1146
    %v1148 = vand.u32 %v1147, 4294901760
    %v1149 = vsub.f32 %v1147, %v1148
    %v1150 = vand.u32 %v1149, 4294901760
    %1151 = vmatprep.subr.mxu0 %v1150
    %v1152 = vand.u32 %v779, 4294901760
    %v1153 = vsub.f32 %v779, %v1152
    %v1154 = vand.u32 %v1153, 4294901760
    %v1155 = vsub.f32 %v1153, %v1154
    %v1156 = vand.u32 %v1155, 4294901760
    %1157 = vmatpush2.msra.mxu0 %v1156
    %v1158 = vand.u32 %v778, 4294901760
    %v1159 = vsub.f32 %v778, %v1158
    %v1160 = vand.u32 %v1159, 4294901760
    %v1161 = vsub.f32 %v1159, %v1160
    %v1162 = vand.u32 %v1161, 4294901760
    %1163 = vmatprep.subr.mxu0 %v1162
    %v1164 = vand.u32 %v777, 4294901760
    %v1165 = vsub.f32 %v777, %v1164
    %v1166 = vand.u32 %v1165, 4294901760
    %v1167 = vsub.f32 %v1165, %v1166
    %v1168 = vand.u32 %v1167, 4294901760
    %1169 = vmatpush2.msra.mxu0 %v1168
    %v1170 = vand.u32 %v776, 4294901760
    %v1171 = vsub.f32 %v776, %v1170
    %v1172 = vand.u32 %v1171, 4294901760
    %v1173 = vsub.f32 %v1171, %v1172
    %v1174 = vand.u32 %v1173, 4294901760
    %1175 = vmatprep.subr.mxu0 %v1174
    %v1176 = vand.u32 %v775, 4294901760
    %v1177 = vsub.f32 %v775, %v1176
    %v1178 = vand.u32 %v1177, 4294901760
    %v1179 = vsub.f32 %v1177, %v1178
    %v1180 = vand.u32 %v1179, 4294901760
    %1181 = vmatpush2.msra.mxu0 %v1180
    %v1182 = vand.u32 %v774, 4294901760
    %v1183 = vsub.f32 %v774, %v1182
    %v1184 = vand.u32 %v1183, 4294901760
    %v1185 = vsub.f32 %v1183, %v1184
    %v1186 = vand.u32 %v1185, 4294901760
    %1187 = vmatprep.subr.mxu0 %v1186
    %v1188 = vand.u32 %v773, 4294901760
    %v1189 = vsub.f32 %v773, %v1188
    %v1190 = vand.u32 %v1189, 4294901760
    %v1191 = vsub.f32 %v1189, %v1190
    %v1192 = vand.u32 %v1191, 4294901760
    %1193 = vmatpush2.msra.mxu0 %v1192
    %v1194 = vand.u32 %v772, 4294901760
    %v1195 = vsub.f32 %v772, %v1194
    %v1196 = vand.u32 %v1195, 4294901760
    %v1197 = vsub.f32 %v1195, %v1196
    %v1198 = vand.u32 %v1197, 4294901760
    %1199 = vmatprep.subr.mxu0 %v1198
    %v1200 = vand.u32 %v771, 4294901760
    %v1201 = vsub.f32 %v771, %v1200
    %v1202 = vand.u32 %v1201, 4294901760
    %v1203 = vsub.f32 %v1201, %v1202
    %v1204 = vand.u32 %v1203, 4294901760
    %1205 = vmatpush2.msra.mxu0 %v1204
    %v1206 = vand.u32 %v770, 4294901760
    %v1207 = vsub.f32 %v770, %v1206
    %v1208 = vand.u32 %v1207, 4294901760
    %v1209 = vsub.f32 %v1207, %v1208
    %v1210 = vand.u32 %v1209, 4294901760
    %1211 = vmatprep.subr.mxu0 %v1210
    %v1212 = vand.u32 %v769, 4294901760
    %v1213 = vsub.f32 %v769, %v1212
    %v1214 = vand.u32 %v1213, 4294901760
    %v1215 = vsub.f32 %v1213, %v1214
    %v1216 = vand.u32 %v1215, 4294901760
    %1217 = vmatpush2.msra.mxu0 %v1216
    %v1218 = vand.u32 %v768, 4294901760
    %v1219 = vsub.f32 %v768, %v1218
    %v1220 = vand.u32 %v1219, 4294901760
    %v1221 = vsub.f32 %v1219, %v1220
    %v1222 = vand.u32 %v1221, 4294901760
    %1223 = vmatprep.subr.mxu0 %v1222
    %v1224 = vand.u32 %v767, 4294901760
    %v1225 = vsub.f32 %v767, %v1224
    %v1226 = vand.u32 %v1225, 4294901760
    %v1227 = vsub.f32 %v1225, %v1226
    %v1228 = vand.u32 %v1227, 4294901760
    %1229 = vmatpush2.msra.mxu0 %v1228
    %v1230 = vand.u32 %v766, 4294901760
    %v1231 = vsub.f32 %v766, %v1230
    %v1232 = vand.u32 %v1231, 4294901760
    %v1233 = vsub.f32 %v1231, %v1232
    %v1234 = vand.u32 %v1233, 4294901760
    %1235 = vmatprep.subr.mxu0 %v1234
    %v1236 = vand.u32 %v765, 4294901760
    %v1237 = vsub.f32 %v765, %v1236
    %v1238 = vand.u32 %v1237, 4294901760
    %v1239 = vsub.f32 %v1237, %v1238
    %v1240 = vand.u32 %v1239, 4294901760
    %1241 = vmatpush2.msra.mxu0 %v1240
    %v1242 = vand.u32 %v764, 4294901760
    %v1243 = vsub.f32 %v764, %v1242
    %v1244 = vand.u32 %v1243, 4294901760
    %v1245 = vsub.f32 %v1243, %v1244
    %v1246 = vand.u32 %v1245, 4294901760
    %1247 = vmatprep.subr.mxu0 %v1246
    %v1248 = vand.u32 %v763, 4294901760
    %v1249 = vsub.f32 %v763, %v1248
    %v1250 = vand.u32 %v1249, 4294901760
    %v1251 = vsub.f32 %v1249, %v1250
    %v1252 = vand.u32 %v1251, 4294901760
    %1253 = vmatpush2.msra.mxu0 %v1252
    %v1254 = vand.u32 %v762, 4294901760
    %v1255 = vsub.f32 %v762, %v1254
    %v1256 = vand.u32 %v1255, 4294901760
    %v1257 = vsub.f32 %v1255, %v1256
    %v1258 = vand.u32 %v1257, 4294901760
    %1259 = vmatprep.subr.mxu0 %v1258
    %v1260 = vand.u32 %v761, 4294901760
    %v1261 = vsub.f32 %v761, %v1260
    %v1262 = vand.u32 %v1261, 4294901760
    %v1263 = vsub.f32 %v1261, %v1262
    %v1264 = vand.u32 %v1263, 4294901760
    %1265 = vmatpush2.msra.mxu0 %v1264
    %v1266 = vand.u32 %v760, 4294901760
    %v1267 = vsub.f32 %v760, %v1266
    %v1268 = vand.u32 %v1267, 4294901760
    %v1269 = vsub.f32 %v1267, %v1268
    %v1270 = vand.u32 %v1269, 4294901760
    %1271 = vmatprep.subr.mxu0 %v1270
    %v1272 = vand.u32 %v759, 4294901760
    %v1273 = vsub.f32 %v759, %v1272
    %v1274 = vand.u32 %v1273, 4294901760
    %v1275 = vsub.f32 %v1273, %v1274
    %v1276 = vand.u32 %v1275, 4294901760
    %1277 = vmatpush2.msra.mxu0 %v1276
    %v1278 = vand.u32 %v758, 4294901760
    %v1279 = vsub.f32 %v758, %v1278
    %v1280 = vand.u32 %v1279, 4294901760
    %v1281 = vsub.f32 %v1279, %v1280
    %v1282 = vand.u32 %v1281, 4294901760
    %1283 = vmatprep.subr.mxu0 %v1282
    %v1284 = vand.u32 %v757, 4294901760
    %v1285 = vsub.f32 %v757, %v1284
    %v1286 = vand.u32 %v1285, 4294901760
    %v1287 = vsub.f32 %v1285, %v1286
    %v1288 = vand.u32 %v1287, 4294901760
    %1289 = vmatpush2.msra.mxu0 %v1288
    %v1290 = vand.u32 %v756, 4294901760
    %v1291 = vsub.f32 %v756, %v1290
    %v1292 = vand.u32 %v1291, 4294901760
    %v1293 = vsub.f32 %v1291, %v1292
    %v1294 = vand.u32 %v1293, 4294901760
    %1295 = vmatprep.subr.mxu0 %v1294
    %v1296 = vand.u32 %v755, 4294901760
    %v1297 = vsub.f32 %v755, %v1296
    %v1298 = vand.u32 %v1297, 4294901760
    %v1299 = vsub.f32 %v1297, %v1298
    %v1300 = vand.u32 %v1299, 4294901760
    %1301 = vmatpush2.msra.mxu0 %v1300
    %v1302 = vand.u32 %v754, 4294901760
    %v1303 = vsub.f32 %v754, %v1302
    %v1304 = vand.u32 %v1303, 4294901760
    %v1305 = vsub.f32 %v1303, %v1304
    %v1306 = vand.u32 %v1305, 4294901760
    %1307 = vmatprep.subr.mxu0 %v1306
    %v1308 = vand.u32 %v753, 4294901760
    %v1309 = vsub.f32 %v753, %v1308
    %v1310 = vand.u32 %v1309, 4294901760
    %v1311 = vsub.f32 %v1309, %v1310
    %v1312 = vand.u32 %v1311, 4294901760
    %1313 = vmatpush2.msra.mxu0 %v1312
    %v1314 = vand.u32 %v752, 4294901760
    %v1315 = vsub.f32 %v752, %v1314
    %v1316 = vand.u32 %v1315, 4294901760
    %v1317 = vsub.f32 %v1315, %v1316
    %v1318 = vand.u32 %v1317, 4294901760
    %1319 = vmatprep.subr.mxu0 %v1318
    %v1320 = vand.u32 %v751, 4294901760
    %v1321 = vsub.f32 %v751, %v1320
    %v1322 = vand.u32 %v1321, 4294901760
    %v1323 = vsub.f32 %v1321, %v1322
    %v1324 = vand.u32 %v1323, 4294901760
    %1325 = vmatpush2.msra.mxu0 %v1324
    %v1326 = vand.u32 %v750, 4294901760
    %v1327 = vsub.f32 %v750, %v1326
    %v1328 = vand.u32 %v1327, 4294901760
    %v1329 = vsub.f32 %v1327, %v1328
    %v1330 = vand.u32 %v1329, 4294901760
    %1331 = vmatprep.subr.mxu0 %v1330
    %v1332 = vand.u32 %v749, 4294901760
    %v1333 = vsub.f32 %v749, %v1332
    %v1334 = vand.u32 %v1333, 4294901760
    %v1335 = vsub.f32 %v1333, %v1334
    %v1336 = vand.u32 %v1335, 4294901760
    %1337 = vmatpush2.msra.mxu0 %v1336
    %v1338 = vand.u32 %v714, 4294901760
    %1339 = vmatprep.mubr.f32.mxu0 %v1338
    %v1340 = vand.u32 %v713, 4294901760
    %1341 = vmatmul.mubr.f32.gmra.mxu0 %v1340
    %v1342 = vpop.f32.mrf.mxu0
    %v1343 = vadd.f32 %v934, %v1342
    %v1344 = vpop.f32.mrf.mxu0
    %v1345 = vadd.f32 %v936, %v1344
    %v1346 = vand.u32 %v716, 4294901760
    %1347 = vmatprep.mubr.f32.mxu0 %v1346
    %v1348 = vand.u32 %v715, 4294901760
    %1349 = vmatmul.mubr.f32.gmra.mxu0 %v1348
    %v1350 = vpop.f32.mrf.mxu0
    %v1351 = vadd.f32 %v950, %v1350
    %v1352 = vpop.f32.mrf.mxu0
    %v1353 = vadd.f32 %v952, %v1352
    %1354 = vdwg.mxu0
    %v1355 = vand.u32 %v748, 4294901760
    %v1356 = vsub.f32 %v748, %v1355
    %1357 = vmatprep.subr.mxu0 %v1356
    %v1358 = vand.u32 %v747, 4294901760
    %v1359 = vsub.f32 %v747, %v1358
    %1360 = vmatpush1.msra.mxu0 %v1359
    %v1361 = vand.u32 %v746, 4294901760
    %v1362 = vsub.f32 %v746, %v1361
    %1363 = vmatprep.subr.mxu0 %v1362
    %v1364 = vand.u32 %v745, 4294901760
    %v1365 = vsub.f32 %v745, %v1364
    %1366 = vmatpush1.msra.mxu0 %v1365
    %v1367 = vand.u32 %v744, 4294901760
    %v1368 = vsub.f32 %v744, %v1367
    %1369 = vmatprep.subr.mxu0 %v1368
    %v1370 = vand.u32 %v743, 4294901760
    %v1371 = vsub.f32 %v743, %v1370
    %1372 = vmatpush1.msra.mxu0 %v1371
    %v1373 = vand.u32 %v742, 4294901760
    %v1374 = vsub.f32 %v742, %v1373
    %1375 = vmatprep.subr.mxu0 %v1374
    %v1376 = vand.u32 %v741, 4294901760
    %v1377 = vsub.f32 %v741, %v1376
    %1378 = vmatpush1.msra.mxu0 %v1377
    %v1379 = vand.u32 %v740, 4294901760
    %v1380 = vsub.f32 %v740, %v1379
    %1381 = vmatprep.subr.mxu0 %v1380
    %v1382 = vand.u32 %v739, 4294901760
    %v1383 = vsub.f32 %v739, %v1382
    %1384 = vmatpush1.msra.mxu0 %v1383
    %v1385 = vand.u32 %v738, 4294901760
    %v1386 = vsub.f32 %v738, %v1385
    %1387 = vmatprep.subr.mxu0 %v1386
    %v1388 = vand.u32 %v737, 4294901760
    %v1389 = vsub.f32 %v737, %v1388
    %1390 = vmatpush1.msra.mxu0 %v1389
    %v1391 = vand.u32 %v736, 4294901760
    %v1392 = vsub.f32 %v736, %v1391
    %1393 = vmatprep.subr.mxu0 %v1392
    %v1394 = vand.u32 %v735, 4294901760
    %v1395 = vsub.f32 %v735, %v1394
    %1396 = vmatpush1.msra.mxu0 %v1395
    %v1397 = vand.u32 %v734, 4294901760
    %v1398 = vsub.f32 %v734, %v1397
    %1399 = vmatprep.subr.mxu0 %v1398
    %v1400 = vand.u32 %v733, 4294901760
    %v1401 = vsub.f32 %v733, %v1400
    %1402 = vmatpush1.msra.mxu0 %v1401
    %v1403 = vand.u32 %v732, 4294901760
    %v1404 = vsub.f32 %v732, %v1403
    %1405 = vmatprep.subr.mxu0 %v1404
    %v1406 = vand.u32 %v731, 4294901760
    %v1407 = vsub.f32 %v731, %v1406
    %1408 = vmatpush1.msra.mxu0 %v1407
    %v1409 = vand.u32 %v730, 4294901760
    %v1410 = vsub.f32 %v730, %v1409
    %1411 = vmatprep.subr.mxu0 %v1410
    %v1412 = vand.u32 %v729, 4294901760
    %v1413 = vsub.f32 %v729, %v1412
    %1414 = vmatpush1.msra.mxu0 %v1413
    %v1415 = vand.u32 %v728, 4294901760
    %v1416 = vsub.f32 %v728, %v1415
    %1417 = vmatprep.subr.mxu0 %v1416
    %v1418 = vand.u32 %v727, 4294901760
    %v1419 = vsub.f32 %v727, %v1418
    %1420 = vmatpush1.msra.mxu0 %v1419
    %v1421 = vand.u32 %v726, 4294901760
    %v1422 = vsub.f32 %v726, %v1421
    %1423 = vmatprep.subr.mxu0 %v1422
    %v1424 = vand.u32 %v725, 4294901760
    %v1425 = vsub.f32 %v725, %v1424
    %1426 = vmatpush1.msra.mxu0 %v1425
    %v1427 = vand.u32 %v724, 4294901760
    %v1428 = vsub.f32 %v724, %v1427
    %1429 = vmatprep.subr.mxu0 %v1428
    %v1430 = vand.u32 %v723, 4294901760
    %v1431 = vsub.f32 %v723, %v1430
    %1432 = vmatpush1.msra.mxu0 %v1431
    %v1433 = vand.u32 %v722, 4294901760
    %v1434 = vsub.f32 %v722, %v1433
    %1435 = vmatprep.subr.mxu0 %v1434
    %v1436 = vand.u32 %v721, 4294901760
    %v1437 = vsub.f32 %v721, %v1436
    %1438 = vmatpush1.msra.mxu0 %v1437
    %v1439 = vand.u32 %v720, 4294901760
    %v1440 = vsub.f32 %v720, %v1439
    %1441 = vmatprep.subr.mxu0 %v1440
    %v1442 = vand.u32 %v719, 4294901760
    %v1443 = vsub.f32 %v719, %v1442
    %1444 = vmatpush1.msra.mxu0 %v1443
    %v1445 = vand.u32 %v718, 4294901760
    %v1446 = vsub.f32 %v718, %v1445
    %1447 = vmatprep.subr.mxu0 %v1446
    %v1448 = vand.u32 %v717, 4294901760
    %v1449 = vsub.f32 %v717, %v1448
    %1450 = vmatpush1.msra.mxu0 %v1449
    %v1451 = vand.u32 %v780, 4294901760
    %v1452 = vsub.f32 %v780, %v1451
    %1453 = vmatprep.subr.mxu0 %v1452
    %v1454 = vand.u32 %v779, 4294901760
    %v1455 = vsub.f32 %v779, %v1454
    %1456 = vmatpush2.msra.mxu0 %v1455
    %v1457 = vand.u32 %v778, 4294901760
    %v1458 = vsub.f32 %v778, %v1457
    %1459 = vmatprep.subr.mxu0 %v1458
    %v1460 = vand.u32 %v777, 4294901760
    %v1461 = vsub.f32 %v777, %v1460
    %1462 = vmatpush2.msra.mxu0 %v1461
    %v1463 = vand.u32 %v776, 4294901760
    %v1464 = vsub.f32 %v776, %v1463
    %1465 = vmatprep.subr.mxu0 %v1464
    %v1466 = vand.u32 %v775, 4294901760
    %v1467 = vsub.f32 %v775, %v1466
    %1468 = vmatpush2.msra.mxu0 %v1467
    %v1469 = vand.u32 %v774, 4294901760
    %v1470 = vsub.f32 %v774, %v1469
    %1471 = vmatprep.subr.mxu0 %v1470
    %v1472 = vand.u32 %v773, 4294901760
    %v1473 = vsub.f32 %v773, %v1472
    %1474 = vmatpush2.msra.mxu0 %v1473
    %v1475 = vand.u32 %v772, 4294901760
    %v1476 = vsub.f32 %v772, %v1475
    %1477 = vmatprep.subr.mxu0 %v1476
    %v1478 = vand.u32 %v771, 4294901760
    %v1479 = vsub.f32 %v771, %v1478
    %1480 = vmatpush2.msra.mxu0 %v1479
    %v1481 = vand.u32 %v770, 4294901760
    %v1482 = vsub.f32 %v770, %v1481
    %1483 = vmatprep.subr.mxu0 %v1482
    %v1484 = vand.u32 %v769, 4294901760
    %v1485 = vsub.f32 %v769, %v1484
    %1486 = vmatpush2.msra.mxu0 %v1485
    %v1487 = vand.u32 %v768, 4294901760
    %v1488 = vsub.f32 %v768, %v1487
    %1489 = vmatprep.subr.mxu0 %v1488
    %v1490 = vand.u32 %v767, 4294901760
    %v1491 = vsub.f32 %v767, %v1490
    %1492 = vmatpush2.msra.mxu0 %v1491
    %v1493 = vand.u32 %v766, 4294901760
    %v1494 = vsub.f32 %v766, %v1493
    %1495 = vmatprep.subr.mxu0 %v1494
    %v1496 = vand.u32 %v765, 4294901760
    %v1497 = vsub.f32 %v765, %v1496
    %1498 = vmatpush2.msra.mxu0 %v1497
    %v1499 = vand.u32 %v764, 4294901760
    %v1500 = vsub.f32 %v764, %v1499
    %1501 = vmatprep.subr.mxu0 %v1500
    %v1502 = vand.u32 %v763, 4294901760
    %v1503 = vsub.f32 %v763, %v1502
    %1504 = vmatpush2.msra.mxu0 %v1503
    %v1505 = vand.u32 %v762, 4294901760
    %v1506 = vsub.f32 %v762, %v1505
    %1507 = vmatprep.subr.mxu0 %v1506
    %v1508 = vand.u32 %v761, 4294901760
    %v1509 = vsub.f32 %v761, %v1508
    %1510 = vmatpush2.msra.mxu0 %v1509
    %v1511 = vand.u32 %v760, 4294901760
    %v1512 = vsub.f32 %v760, %v1511
    %1513 = vmatprep.subr.mxu0 %v1512
    %v1514 = vand.u32 %v759, 4294901760
    %v1515 = vsub.f32 %v759, %v1514
    %1516 = vmatpush2.msra.mxu0 %v1515
    %v1517 = vand.u32 %v758, 4294901760
    %v1518 = vsub.f32 %v758, %v1517
    %1519 = vmatprep.subr.mxu0 %v1518
    %v1520 = vand.u32 %v757, 4294901760
    %v1521 = vsub.f32 %v757, %v1520
    %1522 = vmatpush2.msra.mxu0 %v1521
    %v1523 = vand.u32 %v756, 4294901760
    %v1524 = vsub.f32 %v756, %v1523
    %1525 = vmatprep.subr.mxu0 %v1524
    %v1526 = vand.u32 %v755, 4294901760
    %v1527 = vsub.f32 %v755, %v1526
    %1528 = vmatpush2.msra.mxu0 %v1527
    %v1529 = vand.u32 %v754, 4294901760
    %v1530 = vsub.f32 %v754, %v1529
    %1531 = vmatprep.subr.mxu0 %v1530
    %v1532 = vand.u32 %v753, 4294901760
    %v1533 = vsub.f32 %v753, %v1532
    %1534 = vmatpush2.msra.mxu0 %v1533
    %v1535 = vand.u32 %v752, 4294901760
    %v1536 = vsub.f32 %v752, %v1535
    %1537 = vmatprep.subr.mxu0 %v1536
    %v1538 = vand.u32 %v751, 4294901760
    %v1539 = vsub.f32 %v751, %v1538
    %1540 = vmatpush2.msra.mxu0 %v1539
    %v1541 = vand.u32 %v750, 4294901760
    %v1542 = vsub.f32 %v750, %v1541
    %1543 = vmatprep.subr.mxu0 %v1542
    %v1544 = vand.u32 %v749, 4294901760
    %v1545 = vsub.f32 %v749, %v1544
    %1546 = vmatpush2.msra.mxu0 %v1545
    %v1547 = vand.u32 %v714, 4294901760
    %v1548 = vsub.f32 %v714, %v1547
    %1549 = vmatprep.mubr.f32.mxu0 %v1548
    %v1550 = vand.u32 %v713, 4294901760
    %v1551 = vsub.f32 %v713, %v1550
    %1552 = vmatmul.mubr.f32.gmra.mxu0 %v1551
    %v1553 = vpop.f32.mrf.mxu0
    %v1554 = vadd.f32 %v1343, %v1553
    %v1555 = vpop.f32.mrf.mxu0
    %v1556 = vadd.f32 %v1345, %v1555
    %v1557 = vand.u32 %v716, 4294901760
    %v1558 = vsub.f32 %v716, %v1557
    %1559 = vmatprep.mubr.f32.mxu0 %v1558
    %v1560 = vand.u32 %v715, 4294901760
    %v1561 = vsub.f32 %v715, %v1560
    %1562 = vmatmul.mubr.f32.gmra.mxu0 %v1561
    %v1563 = vpop.f32.mrf.mxu0
    %v1564 = vadd.f32 %v1351, %v1563
    %v1565 = vpop.f32.mrf.mxu0
    %v1566 = vadd.f32 %v1353, %v1565
    %1567 = vdwg.mxu0
    %v1568 = vand.u32 %v748, 4294901760
    %1569 = vmatprep.subr.mxu0 %v1568
    %v1570 = vand.u32 %v747, 4294901760
    %1571 = vmatpush1.msra.mxu0 %v1570
    %v1572 = vand.u32 %v746, 4294901760
    %1573 = vmatprep.subr.mxu0 %v1572
    %v1574 = vand.u32 %v745, 4294901760
    %1575 = vmatpush1.msra.mxu0 %v1574
    %v1576 = vand.u32 %v744, 4294901760
    %1577 = vmatprep.subr.mxu0 %v1576
    %v1578 = vand.u32 %v743, 4294901760
    %1579 = vmatpush1.msra.mxu0 %v1578
    %v1580 = vand.u32 %v742, 4294901760
    %1581 = vmatprep.subr.mxu0 %v1580
    %v1582 = vand.u32 %v741, 4294901760
    %1583 = vmatpush1.msra.mxu0 %v1582
    %v1584 = vand.u32 %v740, 4294901760
    %1585 = vmatprep.subr.mxu0 %v1584
    %v1586 = vand.u32 %v739, 4294901760
    %1587 = vmatpush1.msra.mxu0 %v1586
    %v1588 = vand.u32 %v738, 4294901760
    %1589 = vmatprep.subr.mxu0 %v1588
    %v1590 = vand.u32 %v737, 4294901760
    %1591 = vmatpush1.msra.mxu0 %v1590
    %v1592 = vand.u32 %v736, 4294901760
    %1593 = vmatprep.subr.mxu0 %v1592
    %v1594 = vand.u32 %v735, 4294901760
    %1595 = vmatpush1.msra.mxu0 %v1594
    %v1596 = vand.u32 %v734, 4294901760
    %1597 = vmatprep.subr.mxu0 %v1596
    %v1598 = vand.u32 %v733, 4294901760
    %1599 = vmatpush1.msra.mxu0 %v1598
    %v1600 = vand.u32 %v732, 4294901760
    %1601 = vmatprep.subr.mxu0 %v1600
    %v1602 = vand.u32 %v731, 4294901760
    %1603 = vmatpush1.msra.mxu0 %v1602
    %v1604 = vand.u32 %v730, 4294901760
    %1605 = vmatprep.subr.mxu0 %v1604
    %v1606 = vand.u32 %v729, 4294901760
    %1607 = vmatpush1.msra.mxu0 %v1606
    %v1608 = vand.u32 %v728, 4294901760
    %1609 = vmatprep.subr.mxu0 %v1608
    %v1610 = vand.u32 %v727, 4294901760
    %1611 = vmatpush1.msra.mxu0 %v1610
    %v1612 = vand.u32 %v726, 4294901760
    %1613 = vmatprep.subr.mxu0 %v1612
    %v1614 = vand.u32 %v725, 4294901760
    %1615 = vmatpush1.msra.mxu0 %v1614
    %v1616 = vand.u32 %v724, 4294901760
    %1617 = vmatprep.subr.mxu0 %v1616
    %v1618 = vand.u32 %v723, 4294901760
    %1619 = vmatpush1.msra.mxu0 %v1618
    %v1620 = vand.u32 %v722, 4294901760
    %1621 = vmatprep.subr.mxu0 %v1620
    %v1622 = vand.u32 %v721, 4294901760
    %1623 = vmatpush1.msra.mxu0 %v1622
    %v1624 = vand.u32 %v720, 4294901760
    %1625 = vmatprep.subr.mxu0 %v1624
    %v1626 = vand.u32 %v719, 4294901760
    %1627 = vmatpush1.msra.mxu0 %v1626
    %v1628 = vand.u32 %v718, 4294901760
    %1629 = vmatprep.subr.mxu0 %v1628
    %v1630 = vand.u32 %v717, 4294901760
    %1631 = vmatpush1.msra.mxu0 %v1630
    %v1632 = vand.u32 %v780, 4294901760
    %1633 = vmatprep.subr.mxu0 %v1632
    %v1634 = vand.u32 %v779, 4294901760
    %1635 = vmatpush2.msra.mxu0 %v1634
    %v1636 = vand.u32 %v778, 4294901760
    %1637 = vmatprep.subr.mxu0 %v1636
    %v1638 = vand.u32 %v777, 4294901760
    %1639 = vmatpush2.msra.mxu0 %v1638
    %v1640 = vand.u32 %v776, 4294901760
    %1641 = vmatprep.subr.mxu0 %v1640
    %v1642 = vand.u32 %v775, 4294901760
    %1643 = vmatpush2.msra.mxu0 %v1642
    %v1644 = vand.u32 %v774, 4294901760
    %1645 = vmatprep.subr.mxu0 %v1644
    %v1646 = vand.u32 %v773, 4294901760
    %1647 = vmatpush2.msra.mxu0 %v1646
    %v1648 = vand.u32 %v772, 4294901760
    %1649 = vmatprep.subr.mxu0 %v1648
    %v1650 = vand.u32 %v771, 4294901760
    %1651 = vmatpush2.msra.mxu0 %v1650
    %v1652 = vand.u32 %v770, 4294901760
    %1653 = vmatprep.subr.mxu0 %v1652
    %v1654 = vand.u32 %v769, 4294901760
    %1655 = vmatpush2.msra.mxu0 %v1654
    %v1656 = vand.u32 %v768, 4294901760
    %1657 = vmatprep.subr.mxu0 %v1656
    %v1658 = vand.u32 %v767, 4294901760
    %1659 = vmatpush2.msra.mxu0 %v1658
    %v1660 = vand.u32 %v766, 4294901760
    %1661 = vmatprep.subr.mxu0 %v1660
    %v1662 = vand.u32 %v765, 4294901760
    %1663 = vmatpush2.msra.mxu0 %v1662
    %v1664 = vand.u32 %v764, 4294901760
    %1665 = vmatprep.subr.mxu0 %v1664
    %v1666 = vand.u32 %v763, 4294901760
    %1667 = vmatpush2.msra.mxu0 %v1666
    %v1668 = vand.u32 %v762, 4294901760
    %1669 = vmatprep.subr.mxu0 %v1668
    %v1670 = vand.u32 %v761, 4294901760
    %1671 = vmatpush2.msra.mxu0 %v1670
    %v1672 = vand.u32 %v760, 4294901760
    %1673 = vmatprep.subr.mxu0 %v1672
    %v1674 = vand.u32 %v759, 4294901760
    %1675 = vmatpush2.msra.mxu0 %v1674
    %v1676 = vand.u32 %v758, 4294901760
    %1677 = vmatprep.subr.mxu0 %v1676
    %v1678 = vand.u32 %v757, 4294901760
    %1679 = vmatpush2.msra.mxu0 %v1678
    %v1680 = vand.u32 %v756, 4294901760
    %1681 = vmatprep.subr.mxu0 %v1680
    %v1682 = vand.u32 %v755, 4294901760
    %1683 = vmatpush2.msra.mxu0 %v1682
    %v1684 = vand.u32 %v754, 4294901760
    %1685 = vmatprep.subr.mxu0 %v1684
    %v1686 = vand.u32 %v753, 4294901760
    %1687 = vmatpush2.msra.mxu0 %v1686
    %v1688 = vand.u32 %v752, 4294901760
    %1689 = vmatprep.subr.mxu0 %v1688
    %v1690 = vand.u32 %v751, 4294901760
    %1691 = vmatpush2.msra.mxu0 %v1690
    %v1692 = vand.u32 %v750, 4294901760
    %1693 = vmatprep.subr.mxu0 %v1692
    %v1694 = vand.u32 %v749, 4294901760
    %1695 = vmatpush2.msra.mxu0 %v1694
    %v1696 = vand.u32 %v714, 4294901760
    %v1697 = vsub.f32 %v714, %v1696
    %v1698 = vand.u32 %v1697, 4294901760
    %1699 = vmatprep.mubr.f32.mxu0 %v1698
    %v1700 = vand.u32 %v713, 4294901760
    %v1701 = vsub.f32 %v713, %v1700
    %v1702 = vand.u32 %v1701, 4294901760
    %1703 = vmatmul.mubr.f32.gmra.mxu0 %v1702
    %v1704 = vpop.f32.mrf.mxu0
    %v1705 = vadd.f32 %v1554, %v1704
    %v1706 = vpop.f32.mrf.mxu0
    %v1707 = vadd.f32 %v1556, %v1706
    %v1708 = vand.u32 %v716, 4294901760
    %v1709 = vsub.f32 %v716, %v1708
    %v1710 = vand.u32 %v1709, 4294901760
    %1711 = vmatprep.mubr.f32.mxu0 %v1710
    %v1712 = vand.u32 %v715, 4294901760
    %v1713 = vsub.f32 %v715, %v1712
    %v1714 = vand.u32 %v1713, 4294901760
    %1715 = vmatmul.mubr.f32.gmra.mxu0 %v1714
    %v1716 = vpop.f32.mrf.mxu0
    %v1717 = vadd.f32 %v1564, %v1716
    %v1718 = vpop.f32.mrf.mxu0
    %v1719 = vadd.f32 %v1566, %v1718
    %1720 = vdwg.mxu0
    %v1721 = vand.u32 %v748, 4294901760
    %v1722 = vsub.f32 %v748, %v1721
    %v1723 = vand.u32 %v1722, 4294901760
    %1724 = vmatprep.subr.mxu0 %v1723
    %v1725 = vand.u32 %v747, 4294901760
    %v1726 = vsub.f32 %v747, %v1725
    %v1727 = vand.u32 %v1726, 4294901760
    %1728 = vmatpush1.msra.mxu0 %v1727
    %v1729 = vand.u32 %v746, 4294901760
    %v1730 = vsub.f32 %v746, %v1729
    %v1731 = vand.u32 %v1730, 4294901760
    %1732 = vmatprep.subr.mxu0 %v1731
    %v1733 = vand.u32 %v745, 4294901760
    %v1734 = vsub.f32 %v745, %v1733
    %v1735 = vand.u32 %v1734, 4294901760
    %1736 = vmatpush1.msra.mxu0 %v1735
    %v1737 = vand.u32 %v744, 4294901760
    %v1738 = vsub.f32 %v744, %v1737
    %v1739 = vand.u32 %v1738, 4294901760
    %1740 = vmatprep.subr.mxu0 %v1739
    %v1741 = vand.u32 %v743, 4294901760
    %v1742 = vsub.f32 %v743, %v1741
    %v1743 = vand.u32 %v1742, 4294901760
    %1744 = vmatpush1.msra.mxu0 %v1743
    %v1745 = vand.u32 %v742, 4294901760
    %v1746 = vsub.f32 %v742, %v1745
    %v1747 = vand.u32 %v1746, 4294901760
    %1748 = vmatprep.subr.mxu0 %v1747
    %v1749 = vand.u32 %v741, 4294901760
    %v1750 = vsub.f32 %v741, %v1749
    %v1751 = vand.u32 %v1750, 4294901760
    %1752 = vmatpush1.msra.mxu0 %v1751
    %v1753 = vand.u32 %v740, 4294901760
    %v1754 = vsub.f32 %v740, %v1753
    %v1755 = vand.u32 %v1754, 4294901760
    %1756 = vmatprep.subr.mxu0 %v1755
    %v1757 = vand.u32 %v739, 4294901760
    %v1758 = vsub.f32 %v739, %v1757
    %v1759 = vand.u32 %v1758, 4294901760
    %1760 = vmatpush1.msra.mxu0 %v1759
    %v1761 = vand.u32 %v738, 4294901760
    %v1762 = vsub.f32 %v738, %v1761
    %v1763 = vand.u32 %v1762, 4294901760
    %1764 = vmatprep.subr.mxu0 %v1763
    %v1765 = vand.u32 %v737, 4294901760
    %v1766 = vsub.f32 %v737, %v1765
    %v1767 = vand.u32 %v1766, 4294901760
    %1768 = vmatpush1.msra.mxu0 %v1767
    %v1769 = vand.u32 %v736, 4294901760
    %v1770 = vsub.f32 %v736, %v1769
    %v1771 = vand.u32 %v1770, 4294901760
    %1772 = vmatprep.subr.mxu0 %v1771
    %v1773 = vand.u32 %v735, 4294901760
    %v1774 = vsub.f32 %v735, %v1773
    %v1775 = vand.u32 %v1774, 4294901760
    %1776 = vmatpush1.msra.mxu0 %v1775
    %v1777 = vand.u32 %v734, 4294901760
    %v1778 = vsub.f32 %v734, %v1777
    %v1779 = vand.u32 %v1778, 4294901760
    %1780 = vmatprep.subr.mxu0 %v1779
    %v1781 = vand.u32 %v733, 4294901760
    %v1782 = vsub.f32 %v733, %v1781
    %v1783 = vand.u32 %v1782, 4294901760
    %1784 = vmatpush1.msra.mxu0 %v1783
    %v1785 = vand.u32 %v732, 4294901760
    %v1786 = vsub.f32 %v732, %v1785
    %v1787 = vand.u32 %v1786, 4294901760
    %1788 = vmatprep.subr.mxu0 %v1787
    %v1789 = vand.u32 %v731, 4294901760
    %v1790 = vsub.f32 %v731, %v1789
    %v1791 = vand.u32 %v1790, 4294901760
    %1792 = vmatpush1.msra.mxu0 %v1791
    %v1793 = vand.u32 %v730, 4294901760
    %v1794 = vsub.f32 %v730, %v1793
    %v1795 = vand.u32 %v1794, 4294901760
    %1796 = vmatprep.subr.mxu0 %v1795
    %v1797 = vand.u32 %v729, 4294901760
    %v1798 = vsub.f32 %v729, %v1797
    %v1799 = vand.u32 %v1798, 4294901760
    %1800 = vmatpush1.msra.mxu0 %v1799
    %v1801 = vand.u32 %v728, 4294901760
    %v1802 = vsub.f32 %v728, %v1801
    %v1803 = vand.u32 %v1802, 4294901760
    %1804 = vmatprep.subr.mxu0 %v1803
    %v1805 = vand.u32 %v727, 4294901760
    %v1806 = vsub.f32 %v727, %v1805
    %v1807 = vand.u32 %v1806, 4294901760
    %1808 = vmatpush1.msra.mxu0 %v1807
    %v1809 = vand.u32 %v726, 4294901760
    %v1810 = vsub.f32 %v726, %v1809
    %v1811 = vand.u32 %v1810, 4294901760
    %1812 = vmatprep.subr.mxu0 %v1811
    %v1813 = vand.u32 %v725, 4294901760
    %v1814 = vsub.f32 %v725, %v1813
    %v1815 = vand.u32 %v1814, 4294901760
    %1816 = vmatpush1.msra.mxu0 %v1815
    %v1817 = vand.u32 %v724, 4294901760
    %v1818 = vsub.f32 %v724, %v1817
    %v1819 = vand.u32 %v1818, 4294901760
    %1820 = vmatprep.subr.mxu0 %v1819
    %v1821 = vand.u32 %v723, 4294901760
    %v1822 = vsub.f32 %v723, %v1821
    %v1823 = vand.u32 %v1822, 4294901760
    %1824 = vmatpush1.msra.mxu0 %v1823
    %v1825 = vand.u32 %v722, 4294901760
    %v1826 = vsub.f32 %v722, %v1825
    %v1827 = vand.u32 %v1826, 4294901760
    %1828 = vmatprep.subr.mxu0 %v1827
    %v1829 = vand.u32 %v721, 4294901760
    %v1830 = vsub.f32 %v721, %v1829
    %v1831 = vand.u32 %v1830, 4294901760
    %1832 = vmatpush1.msra.mxu0 %v1831
    %v1833 = vand.u32 %v720, 4294901760
    %v1834 = vsub.f32 %v720, %v1833
    %v1835 = vand.u32 %v1834, 4294901760
    %1836 = vmatprep.subr.mxu0 %v1835
    %v1837 = vand.u32 %v719, 4294901760
    %v1838 = vsub.f32 %v719, %v1837
    %v1839 = vand.u32 %v1838, 4294901760
    %1840 = vmatpush1.msra.mxu0 %v1839
    %v1841 = vand.u32 %v718, 4294901760
    %v1842 = vsub.f32 %v718, %v1841
    %v1843 = vand.u32 %v1842, 4294901760
    %1844 = vmatprep.subr.mxu0 %v1843
    %v1845 = vand.u32 %v717, 4294901760
    %v1846 = vsub.f32 %v717, %v1845
    %v1847 = vand.u32 %v1846, 4294901760
    %1848 = vmatpush1.msra.mxu0 %v1847
    %v1849 = vand.u32 %v780, 4294901760
    %v1850 = vsub.f32 %v780, %v1849
    %v1851 = vand.u32 %v1850, 4294901760
    %1852 = vmatprep.subr.mxu0 %v1851
    %v1853 = vand.u32 %v779, 4294901760
    %v1854 = vsub.f32 %v779, %v1853
    %v1855 = vand.u32 %v1854, 4294901760
    %1856 = vmatpush2.msra.mxu0 %v1855
    %v1857 = vand.u32 %v778, 4294901760
    %v1858 = vsub.f32 %v778, %v1857
    %v1859 = vand.u32 %v1858, 4294901760
    %1860 = vmatprep.subr.mxu0 %v1859
    %v1861 = vand.u32 %v777, 4294901760
    %v1862 = vsub.f32 %v777, %v1861
    %v1863 = vand.u32 %v1862, 4294901760
    %1864 = vmatpush2.msra.mxu0 %v1863
    %v1865 = vand.u32 %v776, 4294901760
    %v1866 = vsub.f32 %v776, %v1865
    %v1867 = vand.u32 %v1866, 4294901760
    %1868 = vmatprep.subr.mxu0 %v1867
    %v1869 = vand.u32 %v775, 4294901760
    %v1870 = vsub.f32 %v775, %v1869
    %v1871 = vand.u32 %v1870, 4294901760
    %1872 = vmatpush2.msra.mxu0 %v1871
    %v1873 = vand.u32 %v774, 4294901760
    %v1874 = vsub.f32 %v774, %v1873
    %v1875 = vand.u32 %v1874, 4294901760
    %1876 = vmatprep.subr.mxu0 %v1875
    %v1877 = vand.u32 %v773, 4294901760
    %v1878 = vsub.f32 %v773, %v1877
    %v1879 = vand.u32 %v1878, 4294901760
    %1880 = vmatpush2.msra.mxu0 %v1879
    %v1881 = vand.u32 %v772, 4294901760
    %v1882 = vsub.f32 %v772, %v1881
    %v1883 = vand.u32 %v1882, 4294901760
    %1884 = vmatprep.subr.mxu0 %v1883
    %v1885 = vand.u32 %v771, 4294901760
    %v1886 = vsub.f32 %v771, %v1885
    %v1887 = vand.u32 %v1886, 4294901760
    %1888 = vmatpush2.msra.mxu0 %v1887
    %v1889 = vand.u32 %v770, 4294901760
    %v1890 = vsub.f32 %v770, %v1889
    %v1891 = vand.u32 %v1890, 4294901760
    %1892 = vmatprep.subr.mxu0 %v1891
    %v1893 = vand.u32 %v769, 4294901760
    %v1894 = vsub.f32 %v769, %v1893
    %v1895 = vand.u32 %v1894, 4294901760
    %1896 = vmatpush2.msra.mxu0 %v1895
    %v1897 = vand.u32 %v768, 4294901760
    %v1898 = vsub.f32 %v768, %v1897
    %v1899 = vand.u32 %v1898, 4294901760
    %1900 = vmatprep.subr.mxu0 %v1899
    %v1901 = vand.u32 %v767, 4294901760
    %v1902 = vsub.f32 %v767, %v1901
    %v1903 = vand.u32 %v1902, 4294901760
    %1904 = vmatpush2.msra.mxu0 %v1903
    %v1905 = vand.u32 %v766, 4294901760
    %v1906 = vsub.f32 %v766, %v1905
    %v1907 = vand.u32 %v1906, 4294901760
    %1908 = vmatprep.subr.mxu0 %v1907
    %v1909 = vand.u32 %v765, 4294901760
    %v1910 = vsub.f32 %v765, %v1909
    %v1911 = vand.u32 %v1910, 4294901760
    %1912 = vmatpush2.msra.mxu0 %v1911
    %v1913 = vand.u32 %v764, 4294901760
    %v1914 = vsub.f32 %v764, %v1913
    %v1915 = vand.u32 %v1914, 4294901760
    %1916 = vmatprep.subr.mxu0 %v1915
    %v1917 = vand.u32 %v763, 4294901760
    %v1918 = vsub.f32 %v763, %v1917
    %v1919 = vand.u32 %v1918, 4294901760
    %1920 = vmatpush2.msra.mxu0 %v1919
    %v1921 = vand.u32 %v762, 4294901760
    %v1922 = vsub.f32 %v762, %v1921
    %v1923 = vand.u32 %v1922, 4294901760
    %1924 = vmatprep.subr.mxu0 %v1923
    %v1925 = vand.u32 %v761, 4294901760
    %v1926 = vsub.f32 %v761, %v1925
    %v1927 = vand.u32 %v1926, 4294901760
    %1928 = vmatpush2.msra.mxu0 %v1927
    %v1929 = vand.u32 %v760, 4294901760
    %v1930 = vsub.f32 %v760, %v1929
    %v1931 = vand.u32 %v1930, 4294901760
    %1932 = vmatprep.subr.mxu0 %v1931
    %v1933 = vand.u32 %v759, 4294901760
    %v1934 = vsub.f32 %v759, %v1933
    %v1935 = vand.u32 %v1934, 4294901760
    %1936 = vmatpush2.msra.mxu0 %v1935
    %v1937 = vand.u32 %v758, 4294901760
    %v1938 = vsub.f32 %v758, %v1937
    %v1939 = vand.u32 %v1938, 4294901760
    %1940 = vmatprep.subr.mxu0 %v1939
    %v1941 = vand.u32 %v757, 4294901760
    %v1942 = vsub.f32 %v757, %v1941
    %v1943 = vand.u32 %v1942, 4294901760
    %1944 = vmatpush2.msra.mxu0 %v1943
    %v1945 = vand.u32 %v756, 4294901760
    %v1946 = vsub.f32 %v756, %v1945
    %v1947 = vand.u32 %v1946, 4294901760
    %1948 = vmatprep.subr.mxu0 %v1947
    %v1949 = vand.u32 %v755, 4294901760
    %v1950 = vsub.f32 %v755, %v1949
    %v1951 = vand.u32 %v1950, 4294901760
    %1952 = vmatpush2.msra.mxu0 %v1951
    %v1953 = vand.u32 %v754, 4294901760
    %v1954 = vsub.f32 %v754, %v1953
    %v1955 = vand.u32 %v1954, 4294901760
    %1956 = vmatprep.subr.mxu0 %v1955
    %v1957 = vand.u32 %v753, 4294901760
    %v1958 = vsub.f32 %v753, %v1957
    %v1959 = vand.u32 %v1958, 4294901760
    %1960 = vmatpush2.msra.mxu0 %v1959
    %v1961 = vand.u32 %v752, 4294901760
    %v1962 = vsub.f32 %v752, %v1961
    %v1963 = vand.u32 %v1962, 4294901760
    %1964 = vmatprep.subr.mxu0 %v1963
    %v1965 = vand.u32 %v751, 4294901760
    %v1966 = vsub.f32 %v751, %v1965
    %v1967 = vand.u32 %v1966, 4294901760
    %1968 = vmatpush2.msra.mxu0 %v1967
    %v1969 = vand.u32 %v750, 4294901760
    %v1970 = vsub.f32 %v750, %v1969
    %v1971 = vand.u32 %v1970, 4294901760
    %1972 = vmatprep.subr.mxu0 %v1971
    %v1973 = vand.u32 %v749, 4294901760
    %v1974 = vsub.f32 %v749, %v1973
    %v1975 = vand.u32 %v1974, 4294901760
    %1976 = vmatpush2.msra.mxu0 %v1975
    %v1977 = vand.u32 %v714, 4294901760
    %1978 = vmatprep.mubr.f32.mxu0 %v1977
    %v1979 = vand.u32 %v713, 4294901760
    %1980 = vmatmul.mubr.f32.gmra.mxu0 %v1979
    %v1981 = vpop.f32.mrf.mxu0
    %v1982 = vadd.f32 %v1705, %v1981
    %v1983 = vpop.f32.mrf.mxu0
    %v1984 = vadd.f32 %v1707, %v1983
    %v1985 = vand.u32 %v716, 4294901760
    %1986 = vmatprep.mubr.f32.mxu0 %v1985
    %v1987 = vand.u32 %v715, 4294901760
    %1988 = vmatmul.mubr.f32.gmra.mxu0 %v1987
    %v1989 = vpop.f32.mrf.mxu0
    %v1990 = vadd.f32 %v1717, %v1989
    %v1991 = vpop.f32.mrf.mxu0
    %v1992 = vadd.f32 %v1719, %v1991
    %1993 = vdwg.mxu0
    %v1994 = vand.u32 %v748, 4294901760
    %1995 = vmatprep.subr.mxu0 %v1994
    %v1996 = vand.u32 %v747, 4294901760
    %1997 = vmatpush1.msra.mxu0 %v1996
    %v1998 = vand.u32 %v746, 4294901760
    %1999 = vmatprep.subr.mxu0 %v1998
    %v2000 = vand.u32 %v745, 4294901760
    %2001 = vmatpush1.msra.mxu0 %v2000
    %v2002 = vand.u32 %v744, 4294901760
    %2003 = vmatprep.subr.mxu0 %v2002
    %v2004 = vand.u32 %v743, 4294901760
    %2005 = vmatpush1.msra.mxu0 %v2004
    %v2006 = vand.u32 %v742, 4294901760
    %2007 = vmatprep.subr.mxu0 %v2006
    %v2008 = vand.u32 %v741, 4294901760
    %2009 = vmatpush1.msra.mxu0 %v2008
    %v2010 = vand.u32 %v740, 4294901760
    %2011 = vmatprep.subr.mxu0 %v2010
    %v2012 = vand.u32 %v739, 4294901760
    %2013 = vmatpush1.msra.mxu0 %v2012
    %v2014 = vand.u32 %v738, 4294901760
    %2015 = vmatprep.subr.mxu0 %v2014
    %v2016 = vand.u32 %v737, 4294901760
    %2017 = vmatpush1.msra.mxu0 %v2016
    %v2018 = vand.u32 %v736, 4294901760
    %2019 = vmatprep.subr.mxu0 %v2018
    %v2020 = vand.u32 %v735, 4294901760
    %2021 = vmatpush1.msra.mxu0 %v2020
    %v2022 = vand.u32 %v734, 4294901760
    %2023 = vmatprep.subr.mxu0 %v2022
    %v2024 = vand.u32 %v733, 4294901760
    %2025 = vmatpush1.msra.mxu0 %v2024
    %v2026 = vand.u32 %v732, 4294901760
    %2027 = vmatprep.subr.mxu0 %v2026
    %v2028 = vand.u32 %v731, 4294901760
    %2029 = vmatpush1.msra.mxu0 %v2028
    %v2030 = vand.u32 %v730, 4294901760
    %2031 = vmatprep.subr.mxu0 %v2030
    %v2032 = vand.u32 %v729, 4294901760
    %2033 = vmatpush1.msra.mxu0 %v2032
    %v2034 = vand.u32 %v728, 4294901760
    %2035 = vmatprep.subr.mxu0 %v2034
    %v2036 = vand.u32 %v727, 4294901760
    %2037 = vmatpush1.msra.mxu0 %v2036
    %v2038 = vand.u32 %v726, 4294901760
    %2039 = vmatprep.subr.mxu0 %v2038
    %v2040 = vand.u32 %v725, 4294901760
    %2041 = vmatpush1.msra.mxu0 %v2040
    %v2042 = vand.u32 %v724, 4294901760
    %2043 = vmatprep.subr.mxu0 %v2042
    %v2044 = vand.u32 %v723, 4294901760
    %2045 = vmatpush1.msra.mxu0 %v2044
    %v2046 = vand.u32 %v722, 4294901760
    %2047 = vmatprep.subr.mxu0 %v2046
    %v2048 = vand.u32 %v721, 4294901760
    %2049 = vmatpush1.msra.mxu0 %v2048
    %v2050 = vand.u32 %v720, 4294901760
    %2051 = vmatprep.subr.mxu0 %v2050
    %v2052 = vand.u32 %v719, 4294901760
    %2053 = vmatpush1.msra.mxu0 %v2052
    %v2054 = vand.u32 %v718, 4294901760
    %2055 = vmatprep.subr.mxu0 %v2054
    %v2056 = vand.u32 %v717, 4294901760
    %2057 = vmatpush1.msra.mxu0 %v2056
    %v2058 = vand.u32 %v780, 4294901760
    %2059 = vmatprep.subr.mxu0 %v2058
    %v2060 = vand.u32 %v779, 4294901760
    %2061 = vmatpush2.msra.mxu0 %v2060
    %v2062 = vand.u32 %v778, 4294901760
    %2063 = vmatprep.subr.mxu0 %v2062
    %v2064 = vand.u32 %v777, 4294901760
    %2065 = vmatpush2.msra.mxu0 %v2064
    %v2066 = vand.u32 %v776, 4294901760
    %2067 = vmatprep.subr.mxu0 %v2066
    %v2068 = vand.u32 %v775, 4294901760
    %2069 = vmatpush2.msra.mxu0 %v2068
    %v2070 = vand.u32 %v774, 4294901760
    %2071 = vmatprep.subr.mxu0 %v2070
    %v2072 = vand.u32 %v773, 4294901760
    %2073 = vmatpush2.msra.mxu0 %v2072
    %v2074 = vand.u32 %v772, 4294901760
    %2075 = vmatprep.subr.mxu0 %v2074
    %v2076 = vand.u32 %v771, 4294901760
    %2077 = vmatpush2.msra.mxu0 %v2076
    %v2078 = vand.u32 %v770, 4294901760
    %2079 = vmatprep.subr.mxu0 %v2078
    %v2080 = vand.u32 %v769, 4294901760
    %2081 = vmatpush2.msra.mxu0 %v2080
    %v2082 = vand.u32 %v768, 4294901760
    %2083 = vmatprep.subr.mxu0 %v2082
    %v2084 = vand.u32 %v767, 4294901760
    %2085 = vmatpush2.msra.mxu0 %v2084
    %v2086 = vand.u32 %v766, 4294901760
    %2087 = vmatprep.subr.mxu0 %v2086
    %v2088 = vand.u32 %v765, 4294901760
    %2089 = vmatpush2.msra.mxu0 %v2088
    %v2090 = vand.u32 %v764, 4294901760
    %2091 = vmatprep.subr.mxu0 %v2090
    %v2092 = vand.u32 %v763, 4294901760
    %2093 = vmatpush2.msra.mxu0 %v2092
    %v2094 = vand.u32 %v762, 4294901760
    %2095 = vmatprep.subr.mxu0 %v2094
    %v2096 = vand.u32 %v761, 4294901760
    %2097 = vmatpush2.msra.mxu0 %v2096
    %v2098 = vand.u32 %v760, 4294901760
    %2099 = vmatprep.subr.mxu0 %v2098
    %v2100 = vand.u32 %v759, 4294901760
    %2101 = vmatpush2.msra.mxu0 %v2100
    %v2102 = vand.u32 %v758, 4294901760
    %2103 = vmatprep.subr.mxu0 %v2102
    %v2104 = vand.u32 %v757, 4294901760
    %2105 = vmatpush2.msra.mxu0 %v2104
    %v2106 = vand.u32 %v756, 4294901760
    %2107 = vmatprep.subr.mxu0 %v2106
    %v2108 = vand.u32 %v755, 4294901760
    %2109 = vmatpush2.msra.mxu0 %v2108
    %v2110 = vand.u32 %v754, 4294901760
    %2111 = vmatprep.subr.mxu0 %v2110
    %v2112 = vand.u32 %v753, 4294901760
    %2113 = vmatpush2.msra.mxu0 %v2112
    %v2114 = vand.u32 %v752, 4294901760
    %2115 = vmatprep.subr.mxu0 %v2114
    %v2116 = vand.u32 %v751, 4294901760
    %2117 = vmatpush2.msra.mxu0 %v2116
    %v2118 = vand.u32 %v750, 4294901760
    %2119 = vmatprep.subr.mxu0 %v2118
    %v2120 = vand.u32 %v749, 4294901760
    %2121 = vmatpush2.msra.mxu0 %v2120
    %v2122 = vand.u32 %v714, 4294901760
    %2123 = vmatprep.mubr.f32.mxu0 %v2122
    %v2124 = vand.u32 %v713, 4294901760
    %2125 = vmatmul.mubr.f32.gmra.mxu0 %v2124
    %v2126 = vpop.f32.mrf.mxu0
    %v2127 = vadd.f32 %v1982, %v2126
    %v2128 = vpop.f32.mrf.mxu0
    %v2129 = vadd.f32 %v1984, %v2128
    %v2130 = vand.u32 %v716, 4294901760
    %2131 = vmatprep.mubr.f32.mxu0 %v2130
    %v2132 = vand.u32 %v715, 4294901760
    %2133 = vmatmul.mubr.f32.gmra.mxu0 %v2132
    %v2134 = vpop.f32.mrf.mxu0
    %v2135 = vadd.f32 %v1990, %v2134
    %v2136 = vpop.f32.mrf.mxu0
    %v2137 = vadd.f32 %v1992, %v2136
    %2138 = vdwg.mxu0
    %v2139 = vmul.f32 %v2127, %v90
    %v2140 = vmul.f32 %v2129, %v90
    %v2141 = vmul.f32 %v2135, %v91
    %v2142 = vmul.f32 %v2137, %v91
    %v2143 = vadd.f32 %v2139, %v2141
    %v2144 = vrot.slane %v2143, 4
    %v2145 = vadd.f32 %v2143, %v2144
    %v2146 = vrot.slane %v2145, 2
    %v2147 = vadd.f32 %v2145, %v2146
    %v2148 = vrot.slane %v2147, 1
    %v2149 = vadd.f32 %v2147, %v2148
    %v2150 = vadd.f32 %v2140, %v2142
    %v2151 = vrot.slane %v2150, 4
    %v2152 = vadd.f32 %v2150, %v2151
    %v2153 = vrot.slane %v2152, 2
    %v2154 = vadd.f32 %v2152, %v2153
    %v2155 = vrot.slane %v2154, 1
    %v2156 = vadd.f32 %v2154, %v2155
    %v2157 = vstv %s81
    %v2158 = vmul.f32 %v2149, %v2157
    %v2159 = vmul.f32 %v2156, %v2157
    %v2160 = vsub.f32 %v2127, %v2158
    %v2161 = vsub.f32 %v2129, %v2159
    %v2162 = vsub.f32 %v2135, %v2158
    %v2163 = vsub.f32 %v2137, %v2159
    %v2164 = vmul.f32 %v2160, %v90
    %v2165 = vmul.f32 %v2161, %v90
    %v2166 = vmul.f32 %v2162, %v91
    %v2167 = vmul.f32 %v2163, %v91
    %v2168 = vmul.f32 %v2164, %v2164
    %v2169 = vmul.f32 %v2165, %v2165
    %v2170 = vmul.f32 %v2166, %v2166
    %v2171 = vmul.f32 %v2167, %v2167
    %v2172 = vadd.f32 %v2168, %v2170
    %v2173 = vrot.slane %v2172, 4
    %v2174 = vadd.f32 %v2172, %v2173
    %v2175 = vrot.slane %v2174, 2
    %v2176 = vadd.f32 %v2174, %v2175
    %v2177 = vrot.slane %v2176, 1
    %v2178 = vadd.f32 %v2176, %v2177
    %v2179 = vadd.f32 %v2169, %v2171
    %v2180 = vrot.slane %v2179, 4
    %v2181 = vadd.f32 %v2179, %v2180
    %v2182 = vrot.slane %v2181, 2
    %v2183 = vadd.f32 %v2181, %v2182
    %v2184 = vrot.slane %v2183, 1
    %v2185 = vadd.f32 %v2183, %v2184
    %v2186 = vmul.f32 %v2178, %v2157
    %v2187 = vmul.f32 %v2185, %v2157
    %v2188 = vadd.f32 %v2186, 1e-05
    %v2189 = vadd.f32 %v2187, 1e-05
    %v2190 = vrsqrt.pop %v2188
    %v2191 = vrsqrt.pop %v2189
    %v2192 = vmul.f32 %v2160, %v2190
    %v2193 = vmul.f32 %v2161, %v2191
    %v2194 = vmul.f32 %v2162, %v2190
    %v2195 = vmul.f32 %v2163, %v2191
    %v2196 = vld [vmem:[%s6] sm:$0x3]
    %v2198 = vlaneseq
    %v2199 = vshrl.u32 %v2198, 7
    %v2200 = vsub.s32 0, %v2199
    %v2201 = vrot.slane %v2196, %v2200
    %v2202 = vlaneseq
    %v2203 = vshrl.u32 %v2202, 7
    %v2204 = vsub.s32 1, %v2203
    %v2205 = vrot.slane %v2196, %v2204
    %v2208 = vmul.f32 %v2192, %v2201
    %v2209 = vmul.f32 %v2193, %v2205
    %v2210 = vmul.f32 %v2194, %v2201
    %v2211 = vmul.f32 %v2195, %v2205
    %v2212 = vld [vmem:[%s7] sm:$0x3]
    %v2214 = vlaneseq
    %v2215 = vshrl.u32 %v2214, 7
    %v2216 = vsub.s32 0, %v2215
    %v2217 = vrot.slane %v2212, %v2216
    %v2218 = vlaneseq
    %v2219 = vshrl.u32 %v2218, 7
    %v2220 = vsub.s32 1, %v2219
    %v2221 = vrot.slane %v2212, %v2220
    %v2224 = vadd.f32 %v2208, %v2217
    %v2225 = vadd.f32 %v2209, %v2221
    %v2226 = vadd.f32 %v2210, %v2217
    %v2227 = vadd.f32 %v2211, %v2221
    %v2228 = vmax.f32 %v2224, 0.0
    %v2229 = vmax.f32 %v2225, 0.0
    %v2230 = vmax.f32 %v2226, 0.0
    %v2231 = vmax.f32 %v2227, 0.0
    %v2232 = vld [vmem:[#allocation7] sm:$0xff]
    %v2233 = vld [vmem:[#allocation7 + $0x8] sm:$0xff]
    %v2234 = vld [vmem:[#allocation7 + $0x10] sm:$0xff]
    %v2235 = vld [vmem:[#allocation7 + $0x18] sm:$0xff]
    %v2236 = vld [vmem:[#allocation7 + $0x20] sm:$0xff]
    %v2237 = vld [vmem:[#allocation7 + $0x28] sm:$0xff]
    %v2238 = vld [vmem:[#allocation7 + $0x30] sm:$0xff]
    %v2239 = vld [vmem:[#allocation7 + $0x38] sm:$0xff]
    %v2240 = vld [vmem:[#allocation7 + $0x40] sm:$0xff]
    %v2241 = vld [vmem:[#allocation7 + $0x48] sm:$0xff]
    %v2242 = vld [vmem:[#allocation7 + $0x50] sm:$0xff]
    %v2243 = vld [vmem:[#allocation7 + $0x58] sm:$0xff]
    %v2244 = vld [vmem:[#allocation7 + $0x60] sm:$0xff]
    %v2245 = vld [vmem:[#allocation7 + $0x68] sm:$0xff]
    %v2246 = vld [vmem:[#allocation7 + $0x70] sm:$0xff]
    %v2247 = vld [vmem:[#allocation7 + $0x78] sm:$0xff]
    %v2248 = vld [vmem:[#allocation7 + $0x80] sm:$0xff]
    %v2249 = vld [vmem:[#allocation7 + $0x88] sm:$0xff]
    %v2250 = vld [vmem:[#allocation7 + $0x90] sm:$0xff]
    %v2251 = vld [vmem:[#allocation7 + $0x98] sm:$0xff]
    %v2252 = vld [vmem:[#allocation7 + $0xa0] sm:$0xff]
    %v2253 = vld [vmem:[#allocation7 + $0xa8] sm:$0xff]
    %v2254 = vld [vmem:[#allocation7 + $0xb0] sm:$0xff]
    %v2255 = vld [vmem:[#allocation7 + $0xb8] sm:$0xff]
    %v2256 = vld [vmem:[#allocation7 + $0xc0] sm:$0xff]
    %v2257 = vld [vmem:[#allocation7 + $0xc8] sm:$0xff]
    %v2258 = vld [vmem:[#allocation7 + $0xd0] sm:$0xff]
    %v2259 = vld [vmem:[#allocation7 + $0xd8] sm:$0xff]
    %v2260 = vld [vmem:[#allocation7 + $0xe0] sm:$0xff]
    %v2261 = vld [vmem:[#allocation7 + $0xe8] sm:$0xff]
    %v2262 = vld [vmem:[#allocation7 + $0xf0] sm:$0xff]
    %v2263 = vld [vmem:[#allocation7 + $0xf8] sm:$0xff]
    %v2264 = vld [vmem:[%s9] sm:$0x1]
    %v2266 = vlaneseq
    %v2267 = vshrl.u32 %v2266, 7
    %v2268 = vsub.s32 0, %v2267
    %v2269 = vrot.slane %v2264, %v2268
    %2271 = vmatprep.subr.mxu0 0.0
    %v2272 = vand.u32 %v2247, 4294901760
    %2273 = vmatpush1.msra.mxu0 %v2272
    %2274 = vmatprep.subr.mxu0 0.0
    %v2275 = vand.u32 %v2246, 4294901760
    %2276 = vmatpush1.msra.mxu0 %v2275
    %2277 = vmatprep.subr.mxu0 0.0
    %v2278 = vand.u32 %v2245, 4294901760
    %2279 = vmatpush1.msra.mxu0 %v2278
    %2280 = vmatprep.subr.mxu0 0.0
    %v2281 = vand.u32 %v2244, 4294901760
    %2282 = vmatpush1.msra.mxu0 %v2281
    %2283 = vmatprep.subr.mxu0 0.0
    %v2284 = vand.u32 %v2243, 4294901760
    %2285 = vmatpush1.msra.mxu0 %v2284
    %2286 = vmatprep.subr.mxu0 0.0
    %v2287 = vand.u32 %v2242, 4294901760
    %2288 = vmatpush1.msra.mxu0 %v2287
    %2289 = vmatprep.subr.mxu0 0.0
    %v2290 = vand.u32 %v2241, 4294901760
    %2291 = vmatpush1.msra.mxu0 %v2290
    %2292 = vmatprep.subr.mxu0 0.0
    %v2293 = vand.u32 %v2240, 4294901760
    %2294 = vmatpush1.msra.mxu0 %v2293
    %2295 = vmatprep.subr.mxu0 0.0
    %v2296 = vand.u32 %v2239, 4294901760
    %2297 = vmatpush1.msra.mxu0 %v2296
    %2298 = vmatprep.subr.mxu0 0.0
    %v2299 = vand.u32 %v2238, 4294901760
    %2300 = vmatpush1.msra.mxu0 %v2299
    %2301 = vmatprep.subr.mxu0 0.0
    %v2302 = vand.u32 %v2237, 4294901760
    %2303 = vmatpush1.msra.mxu0 %v2302
    %2304 = vmatprep.subr.mxu0 0.0
    %v2305 = vand.u32 %v2236, 4294901760
    %2306 = vmatpush1.msra.mxu0 %v2305
    %2307 = vmatprep.subr.mxu0 0.0
    %v2308 = vand.u32 %v2235, 4294901760
    %2309 = vmatpush1.msra.mxu0 %v2308
    %2310 = vmatprep.subr.mxu0 0.0
    %v2311 = vand.u32 %v2234, 4294901760
    %2312 = vmatpush1.msra.mxu0 %v2311
    %2313 = vmatprep.subr.mxu0 0.0
    %v2314 = vand.u32 %v2233, 4294901760
    %2315 = vmatpush1.msra.mxu0 %v2314
    %2316 = vmatprep.subr.mxu0 0.0
    %v2317 = vand.u32 %v2232, 4294901760
    %2318 = vmatpush1.msra.mxu0 %v2317
    %2319 = vmatprep.subr.mxu0 0.0
    %v2320 = vand.u32 %v2263, 4294901760
    %2321 = vmatpush2.msra.mxu0 %v2320
    %2322 = vmatprep.subr.mxu0 0.0
    %v2323 = vand.u32 %v2262, 4294901760
    %2324 = vmatpush2.msra.mxu0 %v2323
    %2325 = vmatprep.subr.mxu0 0.0
    %v2326 = vand.u32 %v2261, 4294901760
    %2327 = vmatpush2.msra.mxu0 %v2326
    %2328 = vmatprep.subr.mxu0 0.0
    %v2329 = vand.u32 %v2260, 4294901760
    %2330 = vmatpush2.msra.mxu0 %v2329
    %2331 = vmatprep.subr.mxu0 0.0
    %v2332 = vand.u32 %v2259, 4294901760
    %2333 = vmatpush2.msra.mxu0 %v2332
    %2334 = vmatprep.subr.mxu0 0.0
    %v2335 = vand.u32 %v2258, 4294901760
    %2336 = vmatpush2.msra.mxu0 %v2335
    %2337 = vmatprep.subr.mxu0 0.0
    %v2338 = vand.u32 %v2257, 4294901760
    %2339 = vmatpush2.msra.mxu0 %v2338
    %2340 = vmatprep.subr.mxu0 0.0
    %v2341 = vand.u32 %v2256, 4294901760
    %2342 = vmatpush2.msra.mxu0 %v2341
    %2343 = vmatprep.subr.mxu0 0.0
    %v2344 = vand.u32 %v2255, 4294901760
    %2345 = vmatpush2.msra.mxu0 %v2344
    %2346 = vmatprep.subr.mxu0 0.0
    %v2347 = vand.u32 %v2254, 4294901760
    %2348 = vmatpush2.msra.mxu0 %v2347
    %2349 = vmatprep.subr.mxu0 0.0
    %v2350 = vand.u32 %v2253, 4294901760
    %2351 = vmatpush2.msra.mxu0 %v2350
    %2352 = vmatprep.subr.mxu0 0.0
    %v2353 = vand.u32 %v2252, 4294901760
    %2354 = vmatpush2.msra.mxu0 %v2353
    %2355 = vmatprep.subr.mxu0 0.0
    %v2356 = vand.u32 %v2251, 4294901760
    %2357 = vmatpush2.msra.mxu0 %v2356
    %2358 = vmatprep.subr.mxu0 0.0
    %v2359 = vand.u32 %v2250, 4294901760
    %2360 = vmatpush2.msra.mxu0 %v2359
    %2361 = vmatprep.subr.mxu0 0.0
    %v2362 = vand.u32 %v2249, 4294901760
    %2363 = vmatpush2.msra.mxu0 %v2362
    %2364 = vmatprep.subr.mxu0 0.0
    %v2365 = vand.u32 %v2248, 4294901760
    %2366 = vmatpush2.msra.mxu0 %v2365
    %v2367 = vand.u32 %v2229, 4294901760
    %v2368 = vsub.f32 %v2229, %v2367
    %v2369 = vand.u32 %v2368, 4294901760
    %v2370 = vsub.f32 %v2368, %v2369
    %v2371 = vand.u32 %v2370, 4294901760
    %2372 = vmatprep.mubr.f32.mxu0 %v2371
    %v2373 = vand.u32 %v2228, 4294901760
    %v2374 = vsub.f32 %v2228, %v2373
    %v2375 = vand.u32 %v2374, 4294901760
    %v2376 = vsub.f32 %v2374, %v2375
    %v2377 = vand.u32 %v2376, 4294901760
    %2378 = vmatmul.mubr.f32.gmra.mxu0 %v2377
    %v2379 = vpop.f32.mrf.mxu0
    %v2380 = vadd.f32 %v2269, %v2379
    %v2381 = vpop.f32.mrf.mxu0
    %v2382 = vand.u32 %v2231, 4294901760
    %v2383 = vsub.f32 %v2231, %v2382
    %v2384 = vand.u32 %v2383, 4294901760
    %v2385 = vsub.f32 %v2383, %v2384
    %v2386 = vand.u32 %v2385, 4294901760
    %2387 = vmatprep.mubr.f32.mxu0 %v2386
    %v2388 = vand.u32 %v2230, 4294901760
    %v2389 = vsub.f32 %v2230, %v2388
    %v2390 = vand.u32 %v2389, 4294901760
    %v2391 = vsub.f32 %v2389, %v2390
    %v2392 = vand.u32 %v2391, 4294901760
    %2393 = vmatmul.mubr.f32.gmra.mxu0 %v2392
    %v2394 = vpop.f32.mrf.mxu0
    %v2395 = vadd.f32 %v2269, %v2394
    %v2396 = vpop.f32.mrf.mxu0
    %2397 = vdwg.mxu0
    %2398 = vmatprep.subr.mxu0 0.0
    %v2399 = vand.u32 %v2247, 4294901760
    %v2400 = vsub.f32 %v2247, %v2399
    %v2401 = vand.u32 %v2400, 4294901760
    %v2402 = vsub.f32 %v2400, %v2401
    %v2403 = vand.u32 %v2402, 4294901760
    %2404 = vmatpush1.msra.mxu0 %v2403
    %2405 = vmatprep.subr.mxu0 0.0
    %v2406 = vand.u32 %v2246, 4294901760
    %v2407 = vsub.f32 %v2246, %v2406
    %v2408 = vand.u32 %v2407, 4294901760
    %v2409 = vsub.f32 %v2407, %v2408
    %v2410 = vand.u32 %v2409, 4294901760
    %2411 = vmatpush1.msra.mxu0 %v2410
    %2412 = vmatprep.subr.mxu0 0.0
    %v2413 = vand.u32 %v2245, 4294901760
    %v2414 = vsub.f32 %v2245, %v2413
    %v2415 = vand.u32 %v2414, 4294901760
    %v2416 = vsub.f32 %v2414, %v2415
    %v2417 = vand.u32 %v2416, 4294901760
    %2418 = vmatpush1.msra.mxu0 %v2417
    %2419 = vmatprep.subr.mxu0 0.0
    %v2420 = vand.u32 %v2244, 4294901760
    %v2421 = vsub.f32 %v2244, %v2420
    %v2422 = vand.u32 %v2421, 4294901760
    %v2423 = vsub.f32 %v2421, %v2422
    %v2424 = vand.u32 %v2423, 4294901760
    %2425 = vmatpush1.msra.mxu0 %v2424
    %2426 = vmatprep.subr.mxu0 0.0
    %v2427 = vand.u32 %v2243, 4294901760
    %v2428 = vsub.f32 %v2243, %v2427
    %v2429 = vand.u32 %v2428, 4294901760
    %v2430 = vsub.f32 %v2428, %v2429
    %v2431 = vand.u32 %v2430, 4294901760
    %2432 = vmatpush1.msra.mxu0 %v2431
    %2433 = vmatprep.subr.mxu0 0.0
    %v2434 = vand.u32 %v2242, 4294901760
    %v2435 = vsub.f32 %v2242, %v2434
    %v2436 = vand.u32 %v2435, 4294901760
    %v2437 = vsub.f32 %v2435, %v2436
    %v2438 = vand.u32 %v2437, 4294901760
    %2439 = vmatpush1.msra.mxu0 %v2438
    %2440 = vmatprep.subr.mxu0 0.0
    %v2441 = vand.u32 %v2241, 4294901760
    %v2442 = vsub.f32 %v2241, %v2441
    %v2443 = vand.u32 %v2442, 4294901760
    %v2444 = vsub.f32 %v2442, %v2443
    %v2445 = vand.u32 %v2444, 4294901760
    %2446 = vmatpush1.msra.mxu0 %v2445
    %2447 = vmatprep.subr.mxu0 0.0
    %v2448 = vand.u32 %v2240, 4294901760
    %v2449 = vsub.f32 %v2240, %v2448
    %v2450 = vand.u32 %v2449, 4294901760
    %v2451 = vsub.f32 %v2449, %v2450
    %v2452 = vand.u32 %v2451, 4294901760
    %2453 = vmatpush1.msra.mxu0 %v2452
    %2454 = vmatprep.subr.mxu0 0.0
    %v2455 = vand.u32 %v2239, 4294901760
    %v2456 = vsub.f32 %v2239, %v2455
    %v2457 = vand.u32 %v2456, 4294901760
    %v2458 = vsub.f32 %v2456, %v2457
    %v2459 = vand.u32 %v2458, 4294901760
    %2460 = vmatpush1.msra.mxu0 %v2459
    %2461 = vmatprep.subr.mxu0 0.0
    %v2462 = vand.u32 %v2238, 4294901760
    %v2463 = vsub.f32 %v2238, %v2462
    %v2464 = vand.u32 %v2463, 4294901760
    %v2465 = vsub.f32 %v2463, %v2464
    %v2466 = vand.u32 %v2465, 4294901760
    %2467 = vmatpush1.msra.mxu0 %v2466
    %2468 = vmatprep.subr.mxu0 0.0
    %v2469 = vand.u32 %v2237, 4294901760
    %v2470 = vsub.f32 %v2237, %v2469
    %v2471 = vand.u32 %v2470, 4294901760
    %v2472 = vsub.f32 %v2470, %v2471
    %v2473 = vand.u32 %v2472, 4294901760
    %2474 = vmatpush1.msra.mxu0 %v2473
    %2475 = vmatprep.subr.mxu0 0.0
    %v2476 = vand.u32 %v2236, 4294901760
    %v2477 = vsub.f32 %v2236, %v2476
    %v2478 = vand.u32 %v2477, 4294901760
    %v2479 = vsub.f32 %v2477, %v2478
    %v2480 = vand.u32 %v2479, 4294901760
    %2481 = vmatpush1.msra.mxu0 %v2480
    %2482 = vmatprep.subr.mxu0 0.0
    %v2483 = vand.u32 %v2235, 4294901760
    %v2484 = vsub.f32 %v2235, %v2483
    %v2485 = vand.u32 %v2484, 4294901760
    %v2486 = vsub.f32 %v2484, %v2485
    %v2487 = vand.u32 %v2486, 4294901760
    %2488 = vmatpush1.msra.mxu0 %v2487
    %2489 = vmatprep.subr.mxu0 0.0
    %v2490 = vand.u32 %v2234, 4294901760
    %v2491 = vsub.f32 %v2234, %v2490
    %v2492 = vand.u32 %v2491, 4294901760
    %v2493 = vsub.f32 %v2491, %v2492
    %v2494 = vand.u32 %v2493, 4294901760
    %2495 = vmatpush1.msra.mxu0 %v2494
    %2496 = vmatprep.subr.mxu0 0.0
    %v2497 = vand.u32 %v2233, 4294901760
    %v2498 = vsub.f32 %v2233, %v2497
    %v2499 = vand.u32 %v2498, 4294901760
    %v2500 = vsub.f32 %v2498, %v2499
    %v2501 = vand.u32 %v2500, 4294901760
    %2502 = vmatpush1.msra.mxu0 %v2501
    %2503 = vmatprep.subr.mxu0 0.0
    %v2504 = vand.u32 %v2232, 4294901760
    %v2505 = vsub.f32 %v2232, %v2504
    %v2506 = vand.u32 %v2505, 4294901760
    %v2507 = vsub.f32 %v2505, %v2506
    %v2508 = vand.u32 %v2507, 4294901760
    %2509 = vmatpush1.msra.mxu0 %v2508
    %2510 = vmatprep.subr.mxu0 0.0
    %v2511 = vand.u32 %v2263, 4294901760
    %v2512 = vsub.f32 %v2263, %v2511
    %v2513 = vand.u32 %v2512, 4294901760
    %v2514 = vsub.f32 %v2512, %v2513
    %v2515 = vand.u32 %v2514, 4294901760
    %2516 = vmatpush2.msra.mxu0 %v2515
    %2517 = vmatprep.subr.mxu0 0.0
    %v2518 = vand.u32 %v2262, 4294901760
    %v2519 = vsub.f32 %v2262, %v2518
    %v2520 = vand.u32 %v2519, 4294901760
    %v2521 = vsub.f32 %v2519, %v2520
    %v2522 = vand.u32 %v2521, 4294901760
    %2523 = vmatpush2.msra.mxu0 %v2522
    %2524 = vmatprep.subr.mxu0 0.0
    %v2525 = vand.u32 %v2261, 4294901760
    %v2526 = vsub.f32 %v2261, %v2525
    %v2527 = vand.u32 %v2526, 4294901760
    %v2528 = vsub.f32 %v2526, %v2527
    %v2529 = vand.u32 %v2528, 4294901760
    %2530 = vmatpush2.msra.mxu0 %v2529
    %2531 = vmatprep.subr.mxu0 0.0
    %v2532 = vand.u32 %v2260, 4294901760
    %v2533 = vsub.f32 %v2260, %v2532
    %v2534 = vand.u32 %v2533, 4294901760
    %v2535 = vsub.f32 %v2533, %v2534
    %v2536 = vand.u32 %v2535, 4294901760
    %2537 = vmatpush2.msra.mxu0 %v2536
    %2538 = vmatprep.subr.mxu0 0.0
    %v2539 = vand.u32 %v2259, 4294901760
    %v2540 = vsub.f32 %v2259, %v2539
    %v2541 = vand.u32 %v2540, 4294901760
    %v2542 = vsub.f32 %v2540, %v2541
    %v2543 = vand.u32 %v2542, 4294901760
    %2544 = vmatpush2.msra.mxu0 %v2543
    %2545 = vmatprep.subr.mxu0 0.0
    %v2546 = vand.u32 %v2258, 4294901760
    %v2547 = vsub.f32 %v2258, %v2546
    %v2548 = vand.u32 %v2547, 4294901760
    %v2549 = vsub.f32 %v2547, %v2548
    %v2550 = vand.u32 %v2549, 4294901760
    %2551 = vmatpush2.msra.mxu0 %v2550
    %2552 = vmatprep.subr.mxu0 0.0
    %v2553 = vand.u32 %v2257, 4294901760
    %v2554 = vsub.f32 %v2257, %v2553
    %v2555 = vand.u32 %v2554, 4294901760
    %v2556 = vsub.f32 %v2554, %v2555
    %v2557 = vand.u32 %v2556, 4294901760
    %2558 = vmatpush2.msra.mxu0 %v2557
    %2559 = vmatprep.subr.mxu0 0.0
    %v2560 = vand.u32 %v2256, 4294901760
    %v2561 = vsub.f32 %v2256, %v2560
    %v2562 = vand.u32 %v2561, 4294901760
    %v2563 = vsub.f32 %v2561, %v2562
    %v2564 = vand.u32 %v2563, 4294901760
    %2565 = vmatpush2.msra.mxu0 %v2564
    %2566 = vmatprep.subr.mxu0 0.0
    %v2567 = vand.u32 %v2255, 4294901760
    %v2568 = vsub.f32 %v2255, %v2567
    %v2569 = vand.u32 %v2568, 4294901760
    %v2570 = vsub.f32 %v2568, %v2569
    %v2571 = vand.u32 %v2570, 4294901760
    %2572 = vmatpush2.msra.mxu0 %v2571
    %2573 = vmatprep.subr.mxu0 0.0
    %v2574 = vand.u32 %v2254, 4294901760
    %v2575 = vsub.f32 %v2254, %v2574
    %v2576 = vand.u32 %v2575, 4294901760
    %v2577 = vsub.f32 %v2575, %v2576
    %v2578 = vand.u32 %v2577, 4294901760
    %2579 = vmatpush2.msra.mxu0 %v2578
    %2580 = vmatprep.subr.mxu0 0.0
    %v2581 = vand.u32 %v2253, 4294901760
    %v2582 = vsub.f32 %v2253, %v2581
    %v2583 = vand.u32 %v2582, 4294901760
    %v2584 = vsub.f32 %v2582, %v2583
    %v2585 = vand.u32 %v2584, 4294901760
    %2586 = vmatpush2.msra.mxu0 %v2585
    %2587 = vmatprep.subr.mxu0 0.0
    %v2588 = vand.u32 %v2252, 4294901760
    %v2589 = vsub.f32 %v2252, %v2588
    %v2590 = vand.u32 %v2589, 4294901760
    %v2591 = vsub.f32 %v2589, %v2590
    %v2592 = vand.u32 %v2591, 4294901760
    %2593 = vmatpush2.msra.mxu0 %v2592
    %2594 = vmatprep.subr.mxu0 0.0
    %v2595 = vand.u32 %v2251, 4294901760
    %v2596 = vsub.f32 %v2251, %v2595
    %v2597 = vand.u32 %v2596, 4294901760
    %v2598 = vsub.f32 %v2596, %v2597
    %v2599 = vand.u32 %v2598, 4294901760
    %2600 = vmatpush2.msra.mxu0 %v2599
    %2601 = vmatprep.subr.mxu0 0.0
    %v2602 = vand.u32 %v2250, 4294901760
    %v2603 = vsub.f32 %v2250, %v2602
    %v2604 = vand.u32 %v2603, 4294901760
    %v2605 = vsub.f32 %v2603, %v2604
    %v2606 = vand.u32 %v2605, 4294901760
    %2607 = vmatpush2.msra.mxu0 %v2606
    %2608 = vmatprep.subr.mxu0 0.0
    %v2609 = vand.u32 %v2249, 4294901760
    %v2610 = vsub.f32 %v2249, %v2609
    %v2611 = vand.u32 %v2610, 4294901760
    %v2612 = vsub.f32 %v2610, %v2611
    %v2613 = vand.u32 %v2612, 4294901760
    %2614 = vmatpush2.msra.mxu0 %v2613
    %2615 = vmatprep.subr.mxu0 0.0
    %v2616 = vand.u32 %v2248, 4294901760
    %v2617 = vsub.f32 %v2248, %v2616
    %v2618 = vand.u32 %v2617, 4294901760
    %v2619 = vsub.f32 %v2617, %v2618
    %v2620 = vand.u32 %v2619, 4294901760
    %2621 = vmatpush2.msra.mxu0 %v2620
    %v2622 = vand.u32 %v2229, 4294901760
    %2623 = vmatprep.mubr.f32.mxu0 %v2622
    %v2624 = vand.u32 %v2228, 4294901760
    %2625 = vmatmul.mubr.f32.gmra.mxu0 %v2624
    %v2626 = vpop.f32.mrf.mxu0
    %v2627 = vadd.f32 %v2380, %v2626
    %v2628 = vpop.f32.mrf.mxu0
    %v2629 = vand.u32 %v2231, 4294901760
    %2630 = vmatprep.mubr.f32.mxu0 %v2629
    %v2631 = vand.u32 %v2230, 4294901760
    %2632 = vmatmul.mubr.f32.gmra.mxu0 %v2631
    %v2633 = vpop.f32.mrf.mxu0
    %v2634 = vadd.f32 %v2395, %v2633
    %v2635 = vpop.f32.mrf.mxu0
    %2636 = vdwg.mxu0
    %2637 = vmatprep.subr.mxu0 0.0
    %v2638 = vand.u32 %v2247, 4294901760
    %v2639 = vsub.f32 %v2247, %v2638
    %2640 = vmatpush1.msra.mxu0 %v2639
    %2641 = vmatprep.subr.mxu0 0.0
    %v2642 = vand.u32 %v2246, 4294901760
    %v2643 = vsub.f32 %v2246, %v2642
    %2644 = vmatpush1.msra.mxu0 %v2643
    %2645 = vmatprep.subr.mxu0 0.0
    %v2646 = vand.u32 %v2245, 4294901760
    %v2647 = vsub.f32 %v2245, %v2646
    %2648 = vmatpush1.msra.mxu0 %v2647
    %2649 = vmatprep.subr.mxu0 0.0
    %v2650 = vand.u32 %v2244, 4294901760
    %v2651 = vsub.f32 %v2244, %v2650
    %2652 = vmatpush1.msra.mxu0 %v2651
    %2653 = vmatprep.subr.mxu0 0.0
    %v2654 = vand.u32 %v2243, 4294901760
    %v2655 = vsub.f32 %v2243, %v2654
    %2656 = vmatpush1.msra.mxu0 %v2655
    %2657 = vmatprep.subr.mxu0 0.0
    %v2658 = vand.u32 %v2242, 4294901760
    %v2659 = vsub.f32 %v2242, %v2658
    %2660 = vmatpush1.msra.mxu0 %v2659
    %2661 = vmatprep.subr.mxu0 0.0
    %v2662 = vand.u32 %v2241, 4294901760
    %v2663 = vsub.f32 %v2241, %v2662
    %2664 = vmatpush1.msra.mxu0 %v2663
    %2665 = vmatprep.subr.mxu0 0.0
    %v2666 = vand.u32 %v2240, 4294901760
    %v2667 = vsub.f32 %v2240, %v2666
    %2668 = vmatpush1.msra.mxu0 %v2667
    %2669 = vmatprep.subr.mxu0 0.0
    %v2670 = vand.u32 %v2239, 4294901760
    %v2671 = vsub.f32 %v2239, %v2670
    %2672 = vmatpush1.msra.mxu0 %v2671
    %2673 = vmatprep.subr.mxu0 0.0
    %v2674 = vand.u32 %v2238, 4294901760
    %v2675 = vsub.f32 %v2238, %v2674
    %2676 = vmatpush1.msra.mxu0 %v2675
    %2677 = vmatprep.subr.mxu0 0.0
    %v2678 = vand.u32 %v2237, 4294901760
    %v2679 = vsub.f32 %v2237, %v2678
    %2680 = vmatpush1.msra.mxu0 %v2679
    %2681 = vmatprep.subr.mxu0 0.0
    %v2682 = vand.u32 %v2236, 4294901760
    %v2683 = vsub.f32 %v2236, %v2682
    %2684 = vmatpush1.msra.mxu0 %v2683
    %2685 = vmatprep.subr.mxu0 0.0
    %v2686 = vand.u32 %v2235, 4294901760
    %v2687 = vsub.f32 %v2235, %v2686
    %2688 = vmatpush1.msra.mxu0 %v2687
    %2689 = vmatprep.subr.mxu0 0.0
    %v2690 = vand.u32 %v2234, 4294901760
    %v2691 = vsub.f32 %v2234, %v2690
    %2692 = vmatpush1.msra.mxu0 %v2691
    %2693 = vmatprep.subr.mxu0 0.0
    %v2694 = vand.u32 %v2233, 4294901760
    %v2695 = vsub.f32 %v2233, %v2694
    %2696 = vmatpush1.msra.mxu0 %v2695
    %2697 = vmatprep.subr.mxu0 0.0
    %v2698 = vand.u32 %v2232, 4294901760
    %v2699 = vsub.f32 %v2232, %v2698
    %2700 = vmatpush1.msra.mxu0 %v2699
    %2701 = vmatprep.subr.mxu0 0.0
    %v2702 = vand.u32 %v2263, 4294901760
    %v2703 = vsub.f32 %v2263, %v2702
    %2704 = vmatpush2.msra.mxu0 %v2703
    %2705 = vmatprep.subr.mxu0 0.0
    %v2706 = vand.u32 %v2262, 4294901760
    %v2707 = vsub.f32 %v2262, %v2706
    %2708 = vmatpush2.msra.mxu0 %v2707
    %2709 = vmatprep.subr.mxu0 0.0
    %v2710 = vand.u32 %v2261, 4294901760
    %v2711 = vsub.f32 %v2261, %v2710
    %2712 = vmatpush2.msra.mxu0 %v2711
    %2713 = vmatprep.subr.mxu0 0.0
    %v2714 = vand.u32 %v2260, 4294901760
    %v2715 = vsub.f32 %v2260, %v2714
    %2716 = vmatpush2.msra.mxu0 %v2715
    %2717 = vmatprep.subr.mxu0 0.0
    %v2718 = vand.u32 %v2259, 4294901760
    %v2719 = vsub.f32 %v2259, %v2718
    %2720 = vmatpush2.msra.mxu0 %v2719
    %2721 = vmatprep.subr.mxu0 0.0
    %v2722 = vand.u32 %v2258, 4294901760
    %v2723 = vsub.f32 %v2258, %v2722
    %2724 = vmatpush2.msra.mxu0 %v2723
    %2725 = vmatprep.subr.mxu0 0.0
    %v2726 = vand.u32 %v2257, 4294901760
    %v2727 = vsub.f32 %v2257, %v2726
    %2728 = vmatpush2.msra.mxu0 %v2727
    %2729 = vmatprep.subr.mxu0 0.0
    %v2730 = vand.u32 %v2256, 4294901760
    %v2731 = vsub.f32 %v2256, %v2730
    %2732 = vmatpush2.msra.mxu0 %v2731
    %2733 = vmatprep.subr.mxu0 0.0
    %v2734 = vand.u32 %v2255, 4294901760
    %v2735 = vsub.f32 %v2255, %v2734
    %2736 = vmatpush2.msra.mxu0 %v2735
    %2737 = vmatprep.subr.mxu0 0.0
    %v2738 = vand.u32 %v2254, 4294901760
    %v2739 = vsub.f32 %v2254, %v2738
    %2740 = vmatpush2.msra.mxu0 %v2739
    %2741 = vmatprep.subr.mxu0 0.0
    %v2742 = vand.u32 %v2253, 4294901760
    %v2743 = vsub.f32 %v2253, %v2742
    %2744 = vmatpush2.msra.mxu0 %v2743
    %2745 = vmatprep.subr.mxu0 0.0
    %v2746 = vand.u32 %v2252, 4294901760
    %v2747 = vsub.f32 %v2252, %v2746
    %2748 = vmatpush2.msra.mxu0 %v2747
    %2749 = vmatprep.subr.mxu0 0.0
    %v2750 = vand.u32 %v2251, 4294901760
    %v2751 = vsub.f32 %v2251, %v2750
    %2752 = vmatpush2.msra.mxu0 %v2751
    %2753 = vmatprep.subr.mxu0 0.0
    %v2754 = vand.u32 %v2250, 4294901760
    %v2755 = vsub.f32 %v2250, %v2754
    %2756 = vmatpush2.msra.mxu0 %v2755
    %2757 = vmatprep.subr.mxu0 0.0
    %v2758 = vand.u32 %v2249, 4294901760
    %v2759 = vsub.f32 %v2249, %v2758
    %2760 = vmatpush2.msra.mxu0 %v2759
    %2761 = vmatprep.subr.mxu0 0.0
    %v2762 = vand.u32 %v2248, 4294901760
    %v2763 = vsub.f32 %v2248, %v2762
    %2764 = vmatpush2.msra.mxu0 %v2763
    %v2765 = vand.u32 %v2229, 4294901760
    %v2766 = vsub.f32 %v2229, %v2765
    %2767 = vmatprep.mubr.f32.mxu0 %v2766
    %v2768 = vand.u32 %v2228, 4294901760
    %v2769 = vsub.f32 %v2228, %v2768
    %2770 = vmatmul.mubr.f32.gmra.mxu0 %v2769
    %v2771 = vpop.f32.mrf.mxu0
    %v2772 = vadd.f32 %v2627, %v2771
    %v2773 = vpop.f32.mrf.mxu0
    %v2774 = vand.u32 %v2231, 4294901760
    %v2775 = vsub.f32 %v2231, %v2774
    %2776 = vmatprep.mubr.f32.mxu0 %v2775
    %v2777 = vand.u32 %v2230, 4294901760
    %v2778 = vsub.f32 %v2230, %v2777
    %2779 = vmatmul.mubr.f32.gmra.mxu0 %v2778
    %v2780 = vpop.f32.mrf.mxu0
    %v2781 = vadd.f32 %v2634, %v2780
    %v2782 = vpop.f32.mrf.mxu0
    %2783 = vdwg.mxu0
    %2784 = vmatprep.subr.mxu0 0.0
    %v2785 = vand.u32 %v2247, 4294901760
    %2786 = vmatpush1.msra.mxu0 %v2785
    %2787 = vmatprep.subr.mxu0 0.0
    %v2788 = vand.u32 %v2246, 4294901760
    %2789 = vmatpush1.msra.mxu0 %v2788
    %2790 = vmatprep.subr.mxu0 0.0
    %v2791 = vand.u32 %v2245, 4294901760
    %2792 = vmatpush1.msra.mxu0 %v2791
    %2793 = vmatprep.subr.mxu0 0.0
    %v2794 = vand.u32 %v2244, 4294901760
    %2795 = vmatpush1.msra.mxu0 %v2794
    %2796 = vmatprep.subr.mxu0 0.0
    %v2797 = vand.u32 %v2243, 4294901760
    %2798 = vmatpush1.msra.mxu0 %v2797
    %2799 = vmatprep.subr.mxu0 0.0
    %v2800 = vand.u32 %v2242, 4294901760
    %2801 = vmatpush1.msra.mxu0 %v2800
    %2802 = vmatprep.subr.mxu0 0.0
    %v2803 = vand.u32 %v2241, 4294901760
    %2804 = vmatpush1.msra.mxu0 %v2803
    %2805 = vmatprep.subr.mxu0 0.0
    %v2806 = vand.u32 %v2240, 4294901760
    %2807 = vmatpush1.msra.mxu0 %v2806
    %2808 = vmatprep.subr.mxu0 0.0
    %v2809 = vand.u32 %v2239, 4294901760
    %2810 = vmatpush1.msra.mxu0 %v2809
    %2811 = vmatprep.subr.mxu0 0.0
    %v2812 = vand.u32 %v2238, 4294901760
    %2813 = vmatpush1.msra.mxu0 %v2812
    %2814 = vmatprep.subr.mxu0 0.0
    %v2815 = vand.u32 %v2237, 4294901760
    %2816 = vmatpush1.msra.mxu0 %v2815
    %2817 = vmatprep.subr.mxu0 0.0
    %v2818 = vand.u32 %v2236, 4294901760
    %2819 = vmatpush1.msra.mxu0 %v2818
    %2820 = vmatprep.subr.mxu0 0.0
    %v2821 = vand.u32 %v2235, 4294901760
    %2822 = vmatpush1.msra.mxu0 %v2821
    %2823 = vmatprep.subr.mxu0 0.0
    %v2824 = vand.u32 %v2234, 4294901760
    %2825 = vmatpush1.msra.mxu0 %v2824
    %2826 = vmatprep.subr.mxu0 0.0
    %v2827 = vand.u32 %v2233, 4294901760
    %2828 = vmatpush1.msra.mxu0 %v2827
    %2829 = vmatprep.subr.mxu0 0.0
    %v2830 = vand.u32 %v2232, 4294901760
    %2831 = vmatpush1.msra.mxu0 %v2830
    %2832 = vmatprep.subr.mxu0 0.0
    %v2833 = vand.u32 %v2263, 4294901760
    %2834 = vmatpush2.msra.mxu0 %v2833
    %2835 = vmatprep.subr.mxu0 0.0
    %v2836 = vand.u32 %v2262, 4294901760
    %2837 = vmatpush2.msra.mxu0 %v2836
    %2838 = vmatprep.subr.mxu0 0.0
    %v2839 = vand.u32 %v2261, 4294901760
    %2840 = vmatpush2.msra.mxu0 %v2839
    %2841 = vmatprep.subr.mxu0 0.0
    %v2842 = vand.u32 %v2260, 4294901760
    %2843 = vmatpush2.msra.mxu0 %v2842
    %2844 = vmatprep.subr.mxu0 0.0
    %v2845 = vand.u32 %v2259, 4294901760
    %2846 = vmatpush2.msra.mxu0 %v2845
    %2847 = vmatprep.subr.mxu0 0.0
    %v2848 = vand.u32 %v2258, 4294901760
    %2849 = vmatpush2.msra.mxu0 %v2848
    %2850 = vmatprep.subr.mxu0 0.0
    %v2851 = vand.u32 %v2257, 4294901760
    %2852 = vmatpush2.msra.mxu0 %v2851
    %2853 = vmatprep.subr.mxu0 0.0
    %v2854 = vand.u32 %v2256, 4294901760
    %2855 = vmatpush2.msra.mxu0 %v2854
    %2856 = vmatprep.subr.mxu0 0.0
    %v2857 = vand.u32 %v2255, 4294901760
    %2858 = vmatpush2.msra.mxu0 %v2857
    %2859 = vmatprep.subr.mxu0 0.0
    %v2860 = vand.u32 %v2254, 4294901760
    %2861 = vmatpush2.msra.mxu0 %v2860
    %2862 = vmatprep.subr.mxu0 0.0
    %v2863 = vand.u32 %v2253, 4294901760
    %2864 = vmatpush2.msra.mxu0 %v2863
    %2865 = vmatprep.subr.mxu0 0.0
    %v2866 = vand.u32 %v2252, 4294901760
    %2867 = vmatpush2.msra.mxu0 %v2866
    %2868 = vmatprep.subr.mxu0 0.0
    %v2869 = vand.u32 %v2251, 4294901760
    %2870 = vmatpush2.msra.mxu0 %v2869
    %2871 = vmatprep.subr.mxu0 0.0
    %v2872 = vand.u32 %v2250, 4294901760
    %2873 = vmatpush2.msra.mxu0 %v2872
    %2874 = vmatprep.subr.mxu0 0.0
    %v2875 = vand.u32 %v2249, 4294901760
    %2876 = vmatpush2.msra.mxu0 %v2875
    %2877 = vmatprep.subr.mxu0 0.0
    %v2878 = vand.u32 %v2248, 4294901760
    %2879 = vmatpush2.msra.mxu0 %v2878
    %v2880 = vand.u32 %v2229, 4294901760
    %v2881 = vsub.f32 %v2229, %v2880
    %v2882 = vand.u32 %v2881, 4294901760
    %2883 = vmatprep.mubr.f32.mxu0 %v2882
    %v2884 = vand.u32 %v2228, 4294901760
    %v2885 = vsub.f32 %v2228, %v2884
    %v2886 = vand.u32 %v2885, 4294901760
    %2887 = vmatmul.mubr.f32.gmra.mxu0 %v2886
    %v2888 = vpop.f32.mrf.mxu0
    %v2889 = vadd.f32 %v2772, %v2888
    %v2890 = vpop.f32.mrf.mxu0
    %v2891 = vand.u32 %v2231, 4294901760
    %v2892 = vsub.f32 %v2231, %v2891
    %v2893 = vand.u32 %v2892, 4294901760
    %2894 = vmatprep.mubr.f32.mxu0 %v2893
    %v2895 = vand.u32 %v2230, 4294901760
    %v2896 = vsub.f32 %v2230, %v2895
    %v2897 = vand.u32 %v2896, 4294901760
    %2898 = vmatmul.mubr.f32.gmra.mxu0 %v2897
    %v2899 = vpop.f32.mrf.mxu0
    %v2900 = vadd.f32 %v2781, %v2899
    %v2901 = vpop.f32.mrf.mxu0
    %2902 = vdwg.mxu0
    %2903 = vmatprep.subr.mxu0 0.0
    %v2904 = vand.u32 %v2247, 4294901760
    %v2905 = vsub.f32 %v2247, %v2904
    %v2906 = vand.u32 %v2905, 4294901760
    %2907 = vmatpush1.msra.mxu0 %v2906
    %2908 = vmatprep.subr.mxu0 0.0
    %v2909 = vand.u32 %v2246, 4294901760
    %v2910 = vsub.f32 %v2246, %v2909
    %v2911 = vand.u32 %v2910, 4294901760
    %2912 = vmatpush1.msra.mxu0 %v2911
    %2913 = vmatprep.subr.mxu0 0.0
    %v2914 = vand.u32 %v2245, 4294901760
    %v2915 = vsub.f32 %v2245, %v2914
    %v2916 = vand.u32 %v2915, 4294901760
    %2917 = vmatpush1.msra.mxu0 %v2916
    %2918 = vmatprep.subr.mxu0 0.0
    %v2919 = vand.u32 %v2244, 4294901760
    %v2920 = vsub.f32 %v2244, %v2919
    %v2921 = vand.u32 %v2920, 4294901760
    %2922 = vmatpush1.msra.mxu0 %v2921
    %2923 = vmatprep.subr.mxu0 0.0
    %v2924 = vand.u32 %v2243, 4294901760
    %v2925 = vsub.f32 %v2243, %v2924
    %v2926 = vand.u32 %v2925, 4294901760
    %2927 = vmatpush1.msra.mxu0 %v2926
    %2928 = vmatprep.subr.mxu0 0.0
    %v2929 = vand.u32 %v2242, 4294901760
    %v2930 = vsub.f32 %v2242, %v2929
    %v2931 = vand.u32 %v2930, 4294901760
    %2932 = vmatpush1.msra.mxu0 %v2931
    %2933 = vmatprep.subr.mxu0 0.0
    %v2934 = vand.u32 %v2241, 4294901760
    %v2935 = vsub.f32 %v2241, %v2934
    %v2936 = vand.u32 %v2935, 4294901760
    %2937 = vmatpush1.msra.mxu0 %v2936
    %2938 = vmatprep.subr.mxu0 0.0
    %v2939 = vand.u32 %v2240, 4294901760
    %v2940 = vsub.f32 %v2240, %v2939
    %v2941 = vand.u32 %v2940, 4294901760
    %2942 = vmatpush1.msra.mxu0 %v2941
    %2943 = vmatprep.subr.mxu0 0.0
    %v2944 = vand.u32 %v2239, 4294901760
    %v2945 = vsub.f32 %v2239, %v2944
    %v2946 = vand.u32 %v2945, 4294901760
    %2947 = vmatpush1.msra.mxu0 %v2946
    %2948 = vmatprep.subr.mxu0 0.0
    %v2949 = vand.u32 %v2238, 4294901760
    %v2950 = vsub.f32 %v2238, %v2949
    %v2951 = vand.u32 %v2950, 4294901760
    %2952 = vmatpush1.msra.mxu0 %v2951
    %2953 = vmatprep.subr.mxu0 0.0
    %v2954 = vand.u32 %v2237, 4294901760
    %v2955 = vsub.f32 %v2237, %v2954
    %v2956 = vand.u32 %v2955, 4294901760
    %2957 = vmatpush1.msra.mxu0 %v2956
    %2958 = vmatprep.subr.mxu0 0.0
    %v2959 = vand.u32 %v2236, 4294901760
    %v2960 = vsub.f32 %v2236, %v2959
    %v2961 = vand.u32 %v2960, 4294901760
    %2962 = vmatpush1.msra.mxu0 %v2961
    %2963 = vmatprep.subr.mxu0 0.0
    %v2964 = vand.u32 %v2235, 4294901760
    %v2965 = vsub.f32 %v2235, %v2964
    %v2966 = vand.u32 %v2965, 4294901760
    %2967 = vmatpush1.msra.mxu0 %v2966
    %2968 = vmatprep.subr.mxu0 0.0
    %v2969 = vand.u32 %v2234, 4294901760
    %v2970 = vsub.f32 %v2234, %v2969
    %v2971 = vand.u32 %v2970, 4294901760
    %2972 = vmatpush1.msra.mxu0 %v2971
    %2973 = vmatprep.subr.mxu0 0.0
    %v2974 = vand.u32 %v2233, 4294901760
    %v2975 = vsub.f32 %v2233, %v2974
    %v2976 = vand.u32 %v2975, 4294901760
    %2977 = vmatpush1.msra.mxu0 %v2976
    %2978 = vmatprep.subr.mxu0 0.0
    %v2979 = vand.u32 %v2232, 4294901760
    %v2980 = vsub.f32 %v2232, %v2979
    %v2981 = vand.u32 %v2980, 4294901760
    %2982 = vmatpush1.msra.mxu0 %v2981
    %2983 = vmatprep.subr.mxu0 0.0
    %v2984 = vand.u32 %v2263, 4294901760
    %v2985 = vsub.f32 %v2263, %v2984
    %v2986 = vand.u32 %v2985, 4294901760
    %2987 = vmatpush2.msra.mxu0 %v2986
    %2988 = vmatprep.subr.mxu0 0.0
    %v2989 = vand.u32 %v2262, 4294901760
    %v2990 = vsub.f32 %v2262, %v2989
    %v2991 = vand.u32 %v2990, 4294901760
    %2992 = vmatpush2.msra.mxu0 %v2991
    %2993 = vmatprep.subr.mxu0 0.0
    %v2994 = vand.u32 %v2261, 4294901760
    %v2995 = vsub.f32 %v2261, %v2994
    %v2996 = vand.u32 %v2995, 4294901760
    %2997 = vmatpush2.msra.mxu0 %v2996
    %2998 = vmatprep.subr.mxu0 0.0
    %v2999 = vand.u32 %v2260, 4294901760
    %v3000 = vsub.f32 %v2260, %v2999
    %v3001 = vand.u32 %v3000, 4294901760
    %3002 = vmatpush2.msra.mxu0 %v3001
    %3003 = vmatprep.subr.mxu0 0.0
    %v3004 = vand.u32 %v2259, 4294901760
    %v3005 = vsub.f32 %v2259, %v3004
    %v3006 = vand.u32 %v3005, 4294901760
    %3007 = vmatpush2.msra.mxu0 %v3006
    %3008 = vmatprep.subr.mxu0 0.0
    %v3009 = vand.u32 %v2258, 4294901760
    %v3010 = vsub.f32 %v2258, %v3009
    %v3011 = vand.u32 %v3010, 4294901760
    %3012 = vmatpush2.msra.mxu0 %v3011
    %3013 = vmatprep.subr.mxu0 0.0
    %v3014 = vand.u32 %v2257, 4294901760
    %v3015 = vsub.f32 %v2257, %v3014
    %v3016 = vand.u32 %v3015, 4294901760
    %3017 = vmatpush2.msra.mxu0 %v3016
    %3018 = vmatprep.subr.mxu0 0.0
    %v3019 = vand.u32 %v2256, 4294901760
    %v3020 = vsub.f32 %v2256, %v3019
    %v3021 = vand.u32 %v3020, 4294901760
    %3022 = vmatpush2.msra.mxu0 %v3021
    %3023 = vmatprep.subr.mxu0 0.0
    %v3024 = vand.u32 %v2255, 4294901760
    %v3025 = vsub.f32 %v2255, %v3024
    %v3026 = vand.u32 %v3025, 4294901760
    %3027 = vmatpush2.msra.mxu0 %v3026
    %3028 = vmatprep.subr.mxu0 0.0
    %v3029 = vand.u32 %v2254, 4294901760
    %v3030 = vsub.f32 %v2254, %v3029
    %v3031 = vand.u32 %v3030, 4294901760
    %3032 = vmatpush2.msra.mxu0 %v3031
    %3033 = vmatprep.subr.mxu0 0.0
    %v3034 = vand.u32 %v2253, 4294901760
    %v3035 = vsub.f32 %v2253, %v3034
    %v3036 = vand.u32 %v3035, 4294901760
    %3037 = vmatpush2.msra.mxu0 %v3036
    %3038 = vmatprep.subr.mxu0 0.0
    %v3039 = vand.u32 %v2252, 4294901760
    %v3040 = vsub.f32 %v2252, %v3039
    %v3041 = vand.u32 %v3040, 4294901760
    %3042 = vmatpush2.msra.mxu0 %v3041
    %3043 = vmatprep.subr.mxu0 0.0
    %v3044 = vand.u32 %v2251, 4294901760
    %v3045 = vsub.f32 %v2251, %v3044
    %v3046 = vand.u32 %v3045, 4294901760
    %3047 = vmatpush2.msra.mxu0 %v3046
    %3048 = vmatprep.subr.mxu0 0.0
    %v3049 = vand.u32 %v2250, 4294901760
    %v3050 = vsub.f32 %v2250, %v3049
    %v3051 = vand.u32 %v3050, 4294901760
    %3052 = vmatpush2.msra.mxu0 %v3051
    %3053 = vmatprep.subr.mxu0 0.0
    %v3054 = vand.u32 %v2249, 4294901760
    %v3055 = vsub.f32 %v2249, %v3054
    %v3056 = vand.u32 %v3055, 4294901760
    %3057 = vmatpush2.msra.mxu0 %v3056
    %3058 = vmatprep.subr.mxu0 0.0
    %v3059 = vand.u32 %v2248, 4294901760
    %v3060 = vsub.f32 %v2248, %v3059
    %v3061 = vand.u32 %v3060, 4294901760
    %3062 = vmatpush2.msra.mxu0 %v3061
    %v3063 = vand.u32 %v2229, 4294901760
    %3064 = vmatprep.mubr.f32.mxu0 %v3063
    %v3065 = vand.u32 %v2228, 4294901760
    %3066 = vmatmul.mubr.f32.gmra.mxu0 %v3065
    %v3067 = vpop.f32.mrf.mxu0
    %v3068 = vadd.f32 %v2889, %v3067
    %v3069 = vpop.f32.mrf.mxu0
    %v3070 = vand.u32 %v2231, 4294901760
    %3071 = vmatprep.mubr.f32.mxu0 %v3070
    %v3072 = vand.u32 %v2230, 4294901760
    %3073 = vmatmul.mubr.f32.gmra.mxu0 %v3072
    %v3074 = vpop.f32.mrf.mxu0
    %v3075 = vadd.f32 %v2900, %v3074
    %v3076 = vpop.f32.mrf.mxu0
    %3077 = vdwg.mxu0
    %3078 = vmatprep.subr.mxu0 0.0
    %v3079 = vand.u32 %v2247, 4294901760
    %3080 = vmatpush1.msra.mxu0 %v3079
    %3081 = vmatprep.subr.mxu0 0.0
    %v3082 = vand.u32 %v2246, 4294901760
    %3083 = vmatpush1.msra.mxu0 %v3082
    %3084 = vmatprep.subr.mxu0 0.0
    %v3085 = vand.u32 %v2245, 4294901760
    %3086 = vmatpush1.msra.mxu0 %v3085
    %3087 = vmatprep.subr.mxu0 0.0
    %v3088 = vand.u32 %v2244, 4294901760
    %3089 = vmatpush1.msra.mxu0 %v3088
    %3090 = vmatprep.subr.mxu0 0.0
    %v3091 = vand.u32 %v2243, 4294901760
    %3092 = vmatpush1.msra.mxu0 %v3091
    %3093 = vmatprep.subr.mxu0 0.0
    %v3094 = vand.u32 %v2242, 4294901760
    %3095 = vmatpush1.msra.mxu0 %v3094
    %3096 = vmatprep.subr.mxu0 0.0
    %v3097 = vand.u32 %v2241, 4294901760
    %3098 = vmatpush1.msra.mxu0 %v3097
    %3099 = vmatprep.subr.mxu0 0.0
    %v3100 = vand.u32 %v2240, 4294901760
    %3101 = vmatpush1.msra.mxu0 %v3100
    %3102 = vmatprep.subr.mxu0 0.0
    %v3103 = vand.u32 %v2239, 4294901760
    %3104 = vmatpush1.msra.mxu0 %v3103
    %3105 = vmatprep.subr.mxu0 0.0
    %v3106 = vand.u32 %v2238, 4294901760
    %3107 = vmatpush1.msra.mxu0 %v3106
    %3108 = vmatprep.subr.mxu0 0.0
    %v3109 = vand.u32 %v2237, 4294901760
    %3110 = vmatpush1.msra.mxu0 %v3109
    %3111 = vmatprep.subr.mxu0 0.0
    %v3112 = vand.u32 %v2236, 4294901760
    %3113 = vmatpush1.msra.mxu0 %v3112
    %3114 = vmatprep.subr.mxu0 0.0
    %v3115 = vand.u32 %v2235, 4294901760
    %3116 = vmatpush1.msra.mxu0 %v3115
    %3117 = vmatprep.subr.mxu0 0.0
    %v3118 = vand.u32 %v2234, 4294901760
    %3119 = vmatpush1.msra.mxu0 %v3118
    %3120 = vmatprep.subr.mxu0 0.0
    %v3121 = vand.u32 %v2233, 4294901760
    %3122 = vmatpush1.msra.mxu0 %v3121
    %3123 = vmatprep.subr.mxu0 0.0
    %v3124 = vand.u32 %v2232, 4294901760
    %3125 = vmatpush1.msra.mxu0 %v3124
    %3126 = vmatprep.subr.mxu0 0.0
    %v3127 = vand.u32 %v2263, 4294901760
    %3128 = vmatpush2.msra.mxu0 %v3127
    %3129 = vmatprep.subr.mxu0 0.0
    %v3130 = vand.u32 %v2262, 4294901760
    %3131 = vmatpush2.msra.mxu0 %v3130
    %3132 = vmatprep.subr.mxu0 0.0
    %v3133 = vand.u32 %v2261, 4294901760
    %3134 = vmatpush2.msra.mxu0 %v3133
    %3135 = vmatprep.subr.mxu0 0.0
    %v3136 = vand.u32 %v2260, 4294901760
    %3137 = vmatpush2.msra.mxu0 %v3136
    %3138 = vmatprep.subr.mxu0 0.0
    %v3139 = vand.u32 %v2259, 4294901760
    %3140 = vmatpush2.msra.mxu0 %v3139
    %3141 = vmatprep.subr.mxu0 0.0
    %v3142 = vand.u32 %v2258, 4294901760
    %3143 = vmatpush2.msra.mxu0 %v3142
    %3144 = vmatprep.subr.mxu0 0.0
    %v3145 = vand.u32 %v2257, 4294901760
    %3146 = vmatpush2.msra.mxu0 %v3145
    %3147 = vmatprep.subr.mxu0 0.0
    %v3148 = vand.u32 %v2256, 4294901760
    %3149 = vmatpush2.msra.mxu0 %v3148
    %3150 = vmatprep.subr.mxu0 0.0
    %v3151 = vand.u32 %v2255, 4294901760
    %3152 = vmatpush2.msra.mxu0 %v3151
    %3153 = vmatprep.subr.mxu0 0.0
    %v3154 = vand.u32 %v2254, 4294901760
    %3155 = vmatpush2.msra.mxu0 %v3154
    %3156 = vmatprep.subr.mxu0 0.0
    %v3157 = vand.u32 %v2253, 4294901760
    %3158 = vmatpush2.msra.mxu0 %v3157
    %3159 = vmatprep.subr.mxu0 0.0
    %v3160 = vand.u32 %v2252, 4294901760
    %3161 = vmatpush2.msra.mxu0 %v3160
    %3162 = vmatprep.subr.mxu0 0.0
    %v3163 = vand.u32 %v2251, 4294901760
    %3164 = vmatpush2.msra.mxu0 %v3163
    %3165 = vmatprep.subr.mxu0 0.0
    %v3166 = vand.u32 %v2250, 4294901760
    %3167 = vmatpush2.msra.mxu0 %v3166
    %3168 = vmatprep.subr.mxu0 0.0
    %v3169 = vand.u32 %v2249, 4294901760
    %3170 = vmatpush2.msra.mxu0 %v3169
    %3171 = vmatprep.subr.mxu0 0.0
    %v3172 = vand.u32 %v2248, 4294901760
    %3173 = vmatpush2.msra.mxu0 %v3172
    %v3174 = vand.u32 %v2229, 4294901760
    %3175 = vmatprep.mubr.f32.mxu0 %v3174
    %v3176 = vand.u32 %v2228, 4294901760
    %3177 = vmatmul.mubr.f32.gmra.mxu0 %v3176
    %v3178 = vpop.f32.mrf.mxu0
    %v3179 = vadd.f32 %v3068, %v3178
    %v3180 = vpop.f32.mrf.mxu0
    %v3181 = vand.u32 %v2231, 4294901760
    %3182 = vmatprep.mubr.f32.mxu0 %v3181
    %v3183 = vand.u32 %v2230, 4294901760
    %3184 = vmatmul.mubr.f32.gmra.mxu0 %v3183
    %v3185 = vpop.f32.mrf.mxu0
    %v3186 = vadd.f32 %v3075, %v3185
    %v3187 = vpop.f32.mrf.mxu0
    %3188 = vdwg.mxu0
    %v3189 = vlaneseq
    %v3190 = vand.u32 %v3189, 127
    %vm3191 = vcmp.ge.s32.totalorder %v3190, 1
    %vm3192 = vcmp.lt.s32.totalorder %v3190, 17
    %vm3193 = vmand %vm3191, %vm3192
    %v3194 = vsel %vm3193, 1, 0
    %v3195 = vcvt.s32.f32 %v3194
    %v3196 = vmul.f32 %v3179, %v3195
    %v3197 = vmul.f32 %v3186, %v3195
    %3198 = vadd.xlane.f32.xlu0 %v3196
    %v3199 = vpop.xlane.xlu0 %3198
    %3200 = vadd.xlane.f32.xlu0 %v3197
    %v3201 = vpop.xlane.xlu0 %3200
    %v3202 = vmul.f32 %v3199, %v90
    %v3203 = vmul.f32 %v3201, %v91
    %vm3204 = vcmask 7168
    %v3205 = vsel %vm3204, %v3202, 0.0
    %v3206 = vsel %vm3204, %v3203, 0.0
    %v3207 = vadd.f32 %v3205, %v3206
    %3208 = vadd.xlane.f32.xlu0 %v3207
    %v3209 = vpop.xlane.xlu0 %3208
    %v3210 = vrot.slane %v3209, 4
    %v3211 = vadd.f32 %v3209, %v3210
    %v3212 = vrot.slane %v3211, 2
    %v3213 = vadd.f32 %v3211, %v3212
    %v3214 = vrot.slane %v3213, 1
    %v3215 = vadd.f32 %v3213, %v3214
    %s3216 = vtos %v3215
    %s3217 = smul.f32 %s3216, %s81
    %s3218 = smul.f32 %s3217, 0.0625
    %3220 = vset.pattern.permute.xlu0 0
    %3221 = vperm.xlu0 %3220, %v3179
    %v3222 = vpop.permute.xlu0 %3221
    %3225 = vset.pattern.permute.xlu0 0
    %3226 = vperm.xlu0 %3225, %v3186
    %v3227 = vpop.permute.xlu0 %3226
    %v3229 = vadd.f32 %v3222, %v3179
    %v3230 = vadd.f32 %v3227, %v3186
    %v3231 = vstv %s3218
    %v3232 = vsub.f32 %v3229, %v3231
    %v3233 = vsub.f32 %v3230, %v3231
    %3234 = vst [vmem:[%s10] sm:$0xff] %v3232
    %3235 = vst [vmem:[%s10 + $0x8] sm:$0xff] %v3233
    // Predicated region
    $region54: #{dqn_forward.1} parent=1 // pred_check
      _
    $region55: #{dqn_forward.1} parent=1 // pred_check_branch
      %3237 = sbr.rel (0) target = $region57
    $region56: #{dqn_forward.1} parent=1 // pred_region
      _
    $region57: #{dqn_forward.1} parent=1 // pred_fallthru
      _
    // Predicated region
    $region58: #{dqn_forward.1} parent=1 // pred_check
      _
    $region59: #{dqn_forward.1} parent=1 // pred_check_branch
      %3239 = sbr.rel (0) target = $region61
    $region60: #{dqn_forward.1} parent=1 // pred_region
      _
    $region61: #{dqn_forward.1} parent=1 // pred_fallthru
      _
    %3240 = vsyncpa [#allocation4], 1
    %3241 = vsyncpa [#allocation6], 1

</llo_original>
